<compile_context>
chip_gen: v5e
topology: v5e:2x2
jax: 0.10.0
libtpu: 0.0.40
codegen_flags: <defaults>
</compile_context>

<pallas_src>
import functools

import jax
import jax.numpy as jnp
from jax.experimental import pallas as pl
from jax.experimental.pallas import tpu as pltpu

LANES = 128


def _round_up(x, m):
    return (x + m - 1) // m * m


def _sigmoid(y):
    # exp on EUP + approx reciprocal on EUP keeps the divide off the VALU slots.
    return pl.reciprocal(1.0 + jnp.exp(jnp.minimum(-y, 60.0)), approx=True)


def _swish(y):
    return y * _sigmoid(y)


# ----------------------------------------------------------------------------- kernels

def _stem_matmul_kernel(x_ref, w_ref, s_ref, b_ref, o_ref):
    # x: (tm, K) bf16 patches, w: (K, 128) bf16, scale/shift: (1, 128) f32
    y = jnp.dot(x_ref[...], w_ref[...], preferred_element_type=jnp.float32)
    y = y * s_ref[...] + b_ref[...]
    o_ref[...] = _swish(y).astype(o_ref.dtype)


def _mbconv_stage_kernel(ph_ref, dw_w_ref, dw_s_ref, dw_b_ref,
                         se_w1_ref, se_b1_ref, se_w2_ref, se_b2_ref,
                         pw_w_ref, pw_s_ref, pw_b_ref, o_ref, *, Ho, Wo):
    """Fused depthwise(3x3,s2) + BN + swish -> SE -> pointwise conv + BN for ONE image.

    ph_ref: (1, 4, Ho+1, Wo+1, 128) bf16 -- 4 spatial phases (row/col parity) of the
            zero-padded input, so every one of the 9 taps is an unstrided shifted slice.
    """
    C = ph_ref.shape[-1]
    ph = ph_ref[0].astype(jnp.float32)                 # (4, Ho+1, Wo+1, C)
    dw_w = dw_w_ref[...]                               # (9, C) f32

    # depthwise 3x3 stride-2: tap (di,dj) = phase[di%2, dj%2][di//2 : di//2+Ho, dj//2 : dj//2+Wo]
    acc = None
    for di in range(3):
        for dj in range(3):
            p = (di % 2) * 2 + (dj % 2)
            oi, oj = di // 2, dj // 2
            tap = ph[p, oi:oi + Ho, oj:oj + Wo, :]     # (Ho, Wo, C) unstrided slice
            w_k = dw_w[di * 3 + dj:di * 3 + dj + 1, :]  # (1, C)
            t = tap * w_k[None]                        # broadcast over (Ho, Wo)
            acc = t if acc is None else acc + t

    y2 = acc.reshape(Ho * Wo, C)                       # lane-dense 2-D working layout
    y2 = y2 * dw_s_ref[...] + dw_b_ref[...]            # folded BN
    y2 = _swish(y2)

    # squeeze-excite: mean + 2 tiny FCs + sigmoid gate, all on the VMEM-resident tile.
    m = jnp.mean(y2, axis=0, keepdims=True)                                        # (1, C)
    h = jnp.dot(m, se_w1_ref[...], preferred_element_type=jnp.float32) + se_b1_ref[...]
    h = _swish(h)
    g = jnp.dot(h, se_w2_ref[...], preferred_element_type=jnp.float32) + se_b2_ref[...]
    y2 = y2 * _sigmoid(g)

    # pointwise conv on the MXU (bf16 operands, f32 accumulate) + folded BN.
    out = jnp.dot(y2.astype(jnp.bfloat16), pw_w_ref[...],
                  preferred_element_type=jnp.float32)                              # (HW, 128)
    out = out * pw_s_ref[...] + pw_b_ref[...]
    o_ref[0] = out.astype(o_ref.dtype)


# ----------------------------------------------------------------------------- wrappers

def stem_conv(patches2d, w, scale, shift):
    # patches2d: (M, 27) bf16 -> (M, 128) bf16
    M, K = patches2d.shape
    Nout = w.shape[1]
    tm = min(512, _round_up(M, 8))
    Mp = _round_up(M, tm)
    if Mp != M:
        patches2d = jnp.pad(patches2d, ((0, Mp - M), (0, 0)))
    out = pl.pallas_call(
        _stem_matmul_kernel,
        out_shape=jax.ShapeDtypeStruct((Mp, Nout), jnp.bfloat16),
        grid=(Mp // tm,),
        in_specs=[
            pl.BlockSpec((tm, K), lambda i: (i, 0)),
            pl.BlockSpec((K, Nout), lambda i: (0, 0)),
            pl.BlockSpec((1, Nout), lambda i: (0, 0)),
            pl.BlockSpec((1, Nout), lambda i: (0, 0)),
        ],
        out_specs=pl.BlockSpec((tm, Nout), lambda i: (i, 0)),
        compiler_params=pltpu.CompilerParams(dimension_semantics=("parallel",)),
    )(patches2d, w, scale, shift)
    return out[:M]


def mbconv_stage(phases, blk, Ho, Wo, out_dtype):
    # phases: (N, 4, Ho+1, Wo+1, 128) bf16 -> (N, Ho*Wo, 128) out_dtype
    N, _, Hp, Wp, C = phases.shape
    kern = functools.partial(_mbconv_stage_kernel, Ho=Ho, Wo=Wo)
    full2 = lambda n: (0, 0)
    return pl.pallas_call(
        kern,
        out_shape=jax.ShapeDtypeStruct((N, Ho * Wo, C), out_dtype),
        grid=(N,),
        in_specs=[
            pl.BlockSpec((1, 4, Hp, Wp, C), lambda n: (n, 0, 0, 0, 0)),
            pl.BlockSpec((9, C), full2),     # dw_w
            pl.BlockSpec((1, C), full2),     # dw_scale
            pl.BlockSpec((1, C), full2),     # dw_shift
            pl.BlockSpec((C, C), full2),     # se_w1
            pl.BlockSpec((1, C), full2),     # se_b1
            pl.BlockSpec((C, C), full2),     # se_w2
            pl.BlockSpec((1, C), full2),     # se_b2
            pl.BlockSpec((C, C), full2),     # pw_w
            pl.BlockSpec((1, C), full2),     # pw_scale
            pl.BlockSpec((1, C), full2),     # pw_shift
        ],
        out_specs=pl.BlockSpec((1, Ho * Wo, C), lambda n: (n, 0, 0)),
        compiler_params=pltpu.CompilerParams(dimension_semantics=("parallel",)),
    )(phases, blk["dw_w"], blk["dw_scale"], blk["dw_shift"],
      blk["se_w1"], blk["se_b1"], blk["se_w2"], blk["se_b2"],
      blk["pw_w"], blk["pw_scale"], blk["pw_shift"])


# ----------------------------------------------------------------------------- glue

def extract_patches(x, ksize=3, stride=2, pad=1):
    # Stem-only im2col (3 input channels -> K=27, negligible blow-up).
    # NOTE: K ordering is tap-major then channel; random init, so no pretrained permute.
    N, H, W, C = x.shape
    xp = jnp.pad(x, ((0, 0), (pad, pad), (pad, pad), (0, 0)))
    Ho = (H + 2 * pad - ksize) // stride + 1
    Wo = (W + 2 * pad - ksize) // stride + 1
    taps = []
    for di in range(ksize):
        for dj in range(ksize):
            taps.append(xp[:, di:di + stride * Ho:stride, dj:dj + stride * Wo:stride, :])
    return jnp.stack(taps, axis=3)                     # (N, Ho, Wo, 9, C)


def make_phases(x):
    # x: (N, H, W, 128), H/W even -> (N, 4, H//2+1, W//2+1, 128) bf16
    # Row/col parity decomposition of the 1-padded input so the in-kernel depthwise
    # conv needs only unstrided shifted slices (no 9x im2col tensor in HBM).
    xp = jnp.pad(x, ((0, 0), (1, 1), (1, 1), (0, 0)))
    phases = [xp[:, pi::2, pj::2, :] for pi in (0, 1) for pj in (0, 1)]
    return jnp.stack(phases, axis=1).astype(jnp.bfloat16)


def init_params(key):
    # Logical channel progression 16 -> 32 -> 64 -> 128; everything stored zero-padded to
    # 128 lanes so all kernel I/O is lane-dense (padded lanes stay exactly zero).
    chans = [(16, 32), (32, 64), (64, 128)]
    keys = jax.random.split(key, 40)
    ki = iter(range(40))

    def nxt():
        return keys[next(ki)]

    def nrm(shape, fan_in):
        return jax.random.normal(nxt(), shape, jnp.float32) / jnp.sqrt(float(fan_in))

    def pad2(a, rows, cols):
        return jnp.pad(a, ((0, rows - a.shape[0]), (0, cols - a.shape[1])))

    params = {}
    params["stem_w"] = pad2(nrm((27, 16), 27), 27, LANES).astype(jnp.bfloat16)
    params["stem_scale"] = pad2(1.0 + 0.01 * jax.random.normal(nxt(), (1, 16), jnp.float32), 1, LANES)
    params["stem_shift"] = pad2(0.01 * jax.random.normal(nxt(), (1, 16), jnp.float32), 1, LANES)

    blocks = []
    for cin, cout in chans:
        cse = max(cin // 4, 8)
        blk = {}
        blk["dw_w"] = pad2(nrm((9, cin), 9), 9, LANES)
        blk["dw_scale"] = pad2(1.0 + 0.01 * jax.random.normal(nxt(), (1, cin), jnp.float32), 1, LANES)
        blk["dw_shift"] = pad2(0.01 * jax.random.normal(nxt(), (1, cin), jnp.float32), 1, LANES)
        blk["se_w1"] = pad2(nrm((cin, cse), cin), LANES, LANES)
        blk["se_b1"] = pad2(0.01 * jax.random.normal(nxt(), (1, cse), jnp.float32), 1, LANES)
        blk["se_w2"] = pad2(nrm((cse, cin), cse), LANES, LANES)
        blk["se_b2"] = pad2(0.01 * jax.random.normal(nxt(), (1, cin), jnp.float32), 1, LANES)
        blk["pw_w"] = pad2(nrm((cin, cout), cin), LANES, LANES).astype(jnp.bfloat16)
        blk["pw_scale"] = pad2(1.0 + 0.01 * jax.random.normal(nxt(), (1, cout), jnp.float32), 1, LANES)
        blk["pw_shift"] = pad2(0.01 * jax.random.normal(nxt(), (1, cout), jnp.float32), 1, LANES)
        blocks.append(blk)
    params["blocks"] = blocks
    return params


def efficientnet_b3_forward(x_nchw, params):
    # NCHW (PyTorch) in -> NHWC inside -> (N, H/16 * W/16, 128) out (== flatten(2,3).transpose(1,2)).
    x = jnp.transpose(x_nchw, (0, 2, 3, 1)).astype(jnp.float32)
    N = x.shape[0]

    # --- stem: 3x3 stride-2 conv (tiny im2col + MXU matmul), folded BN, swish ---
    p = extract_patches(x, 3, 2, 1)                                   # (N, Ho, Wo, 9, 3)
    _, Ho, Wo, T, Cin = p.shape
    y = stem_conv(p.reshape(N * Ho * Wo, T * Cin).astype(jnp.bfloat16),
                  params["stem_w"], params["stem_scale"], params["stem_shift"])
    x = y.reshape(N, Ho, Wo, LANES)                                   # bf16, lane-dense

    # --- fused MBConv-style stages: one pallas_call per stage, activation VMEM-resident ---
    nblk = len(params["blocks"])
    for bi, blk in enumerate(params["blocks"]):
        Hn, Wn = x.shape[1] // 2, x.shape[2] // 2
        ph = make_phases(x)                                           # (N, 4, Hn+1, Wn+1, 128)
        out_dtype = jnp.float32 if bi == nblk - 1 else jnp.bfloat16
        y = mbconv_stage(ph, blk, Hn, Wn, out_dtype)                  # (N, Hn*Wn, 128)
        x = y.reshape(N, Hn, Wn, LANES)

    return x.reshape(N, x.shape[1] * x.shape[2], LANES)


# ----------------------------------------------------------------------------- main

if __name__ == "__main__":
    key = jax.random.PRNGKey(0)
    k_x, k_p = jax.random.split(key)
    # small NCHW input; cube((32, 64)) -> (2, 4, 128) so output is (2, 8, 128)
    x = jax.random.normal(k_x, (2, 3, 32, 64), jnp.float32)
    params = init_params(k_p)

    out = jax.jit(efficientnet_b3_forward)(x, params)
    out = jax.block_until_ready(out)

    assert out.shape == (2, (32 // 16) * (64 // 16), 128), out.shape
    assert out.dtype == jnp.float32
    assert bool(jnp.all(jnp.isfinite(out)))
    print("KERNEL_OK")
</pallas_src>

<mosaic_0001>
module attributes {stable_mosaic.version = 11 : i64} {
  func.func @_stem_matmul_kernel(%arg0: i32, %arg1: memref<512x27xbf16, #tpu.memory_space<vmem>>, %arg2: memref<27x128xbf16, #tpu.memory_space<vmem>>, %arg3: memref<1x128xf32, #tpu.memory_space<vmem>>, %arg4: memref<1x128xf32, #tpu.memory_space<vmem>>, %arg5: memref<512x128xbf16, #tpu.memory_space<vmem>>) attributes {dimension_semantics = [#tpu.dimension_semantics<parallel>], iteration_bounds = array<i64: 2>, scalar_prefetch = 0 : i64, scratch_operands = 0 : i64, tpu.core_type = #tpu.core_type<tc>, window_params = [{transform_indices = @transform_0, window_bounds = array<i64: 512, 27>}, {pipeline_mode = #tpu.pipeline_mode<synchronous>, transform_indices = @transform_1, window_bounds = array<i64: 27, 128>}, {pipeline_mode = #tpu.pipeline_mode<synchronous>, transform_indices = @transform_2, window_bounds = array<i64: 1, 128>}, {pipeline_mode = #tpu.pipeline_mode<synchronous>, transform_indices = @transform_3, window_bounds = array<i64: 1, 128>}, {transform_indices = @transform_4, window_bounds = array<i64: 512, 128>}]} {
    %c0 = arith.constant 0 : index
    %c0_0 = arith.constant 0 : index
    %0 = vector.load %arg1[%c0, %c0_0] : memref<512x27xbf16, #tpu.memory_space<vmem>>, vector<512x27xbf16>
    %c0_1 = arith.constant 0 : index
    %c0_2 = arith.constant 0 : index
    %1 = vector.load %arg2[%c0_1, %c0_2] : memref<27x128xbf16, #tpu.memory_space<vmem>>, vector<27x128xbf16>
    %cst = arith.constant dense<0.000000e+00> : vector<512x128xf32>
    %2 = tpu.matmul %0, %1, %cst {dimension_numbers = #tpu.dot_dimension_numbers<[1], [0], [0], [1], [0, 0, 1, 1], [], []>} : vector<512x27xbf16>, vector<27x128xbf16>, vector<512x128xf32> -> vector<512x128xf32>
    %c0_3 = arith.constant 0 : index
    %c0_4 = arith.constant 0 : index
    %3 = vector.load %arg3[%c0_3, %c0_4] : memref<1x128xf32, #tpu.memory_space<vmem>>, vector<1x128xf32>
    %4 = vector.broadcast %3 : vector<1x128xf32> to vector<512x128xf32>
    %5 = arith.mulf %2, %4 : vector<512x128xf32>
    %c0_5 = arith.constant 0 : index
    %c0_6 = arith.constant 0 : index
    %6 = vector.load %arg4[%c0_5, %c0_6] : memref<1x128xf32, #tpu.memory_space<vmem>>, vector<1x128xf32>
    %7 = vector.broadcast %6 : vector<1x128xf32> to vector<512x128xf32>
    %8 = arith.addf %5, %7 : vector<512x128xf32>
    %cst_7 = arith.constant 0.000000e+00 : f32
    %9 = vector.broadcast %cst_7 : f32 to vector<512x128xf32>
    %10 = arith.subf %9, %8 : vector<512x128xf32>
    %cst_8 = arith.constant 6.000000e+01 : f32
    %11 = vector.broadcast %cst_8 : f32 to vector<512x128xf32>
    %12 = arith.minimumf %10, %11 : vector<512x128xf32>
    %13 = math.exp %12 : vector<512x128xf32>
    %cst_9 = arith.constant 1.000000e+00 : f32
    %14 = vector.broadcast %cst_9 : f32 to vector<512x128xf32>
    %15 = arith.addf %14, %13 : vector<512x128xf32>
    %16 = tpu.reciprocal %15 {approx = true} : vector<512x128xf32> -> vector<512x128xf32>
    %17 = arith.mulf %8, %16 : vector<512x128xf32>
    %18 = arith.truncf %17 : vector<512x128xf32> to vector<512x128xbf16>
    %c0_10 = arith.constant 0 : index
    %c0_11 = arith.constant 0 : index
    %19 = vector.load %arg5[%c0_10, %c0_11] : memref<512x128xbf16, #tpu.memory_space<vmem>>, vector<512x128xbf16>
    tpu.vector_store %arg5[%c0_10, %c0_11], %18 {strides = array<i32>} : memref<512x128xbf16, #tpu.memory_space<vmem>>, vector<512x128xbf16>,
    return
  }
  func.func @transform_0(%arg0: i32) -> (i32, i32) {
    %c0_i32 = arith.constant 0 : i32
    %c0_i32_0 = arith.constant 0 : i32
    return %arg0, %c0_i32 : i32, i32
  }
  func.func @transform_1(%arg0: i32) -> (i32, i32) {
    %c0_i32 = arith.constant 0 : i32
    %c0_i32_0 = arith.constant 0 : i32
    %c0_i32_1 = arith.constant 0 : i32
    return %c0_i32, %c0_i32_0 : i32, i32
  }
  func.func @transform_2(%arg0: i32) -> (i32, i32) {
    %c0_i32 = arith.constant 0 : i32
    %c0_i32_0 = arith.constant 0 : i32
    %c0_i32_1 = arith.constant 0 : i32
    return %c0_i32, %c0_i32_0 : i32, i32
  }
  func.func @transform_3(%arg0: i32) -> (i32, i32) {
    %c0_i32 = arith.constant 0 : i32
    %c0_i32_0 = arith.constant 0 : i32
    %c0_i32_1 = arith.constant 0 : i32
    return %c0_i32, %c0_i32_0 : i32, i32
  }
  func.func @transform_4(%arg0: i32) -> (i32, i32) {
    %c0_i32 = arith.constant 0 : i32
    %c0_i32_0 = arith.constant 0 : i32
    return %arg0, %c0_i32 : i32, i32
  }
}

module attributes {stable_mosaic.version = 11 : i64} {
  func.func @_mbconv_stage_kernel(%arg0: i32, %arg1: memref<1x4x9x17x128xbf16, #tpu.memory_space<vmem>>, %arg2: memref<9x128xf32, #tpu.memory_space<vmem>>, %arg3: memref<1x128xf32, #tpu.memory_space<vmem>>, %arg4: memref<1x128xf32, #tpu.memory_space<vmem>>, %arg5: memref<128x128xf32, #tpu.memory_space<vmem>>, %arg6: memref<1x128xf32, #tpu.memory_space<vmem>>, %arg7: memref<128x128xf32, #tpu.memory_space<vmem>>, %arg8: memref<1x128xf32, #tpu.memory_space<vmem>>, %arg9: memref<128x128xbf16, #tpu.memory_space<vmem>>, %arg10: memref<1x128xf32, #tpu.memory_space<vmem>>, %arg11: memref<1x128xf32, #tpu.memory_space<vmem>>, %arg12: memref<1x128x128xbf16, #tpu.memory_space<vmem>>) attributes {dimension_semantics = [#tpu.dimension_semantics<parallel>], iteration_bounds = array<i64: 2>, scalar_prefetch = 0 : i64, scratch_operands = 0 : i64, tpu.core_type = #tpu.core_type<tc>, window_params = [{transform_indices = @transform_0, window_bounds = array<i64: 1, 4, 9, 17, 128>}, {pipeline_mode = #tpu.pipeline_mode<synchronous>, transform_indices = @transform_1, window_bounds = array<i64: 9, 128>}, {pipeline_mode = #tpu.pipeline_mode<synchronous>, transform_indices = @transform_2, window_bounds = array<i64: 1, 128>}, {pipeline_mode = #tpu.pipeline_mode<synchronous>, transform_indices = @transform_3, window_bounds = array<i64: 1, 128>}, {pipeline_mode = #tpu.pipeline_mode<synchronous>, transform_indices = @transform_4, window_bounds = array<i64: 128, 128>}, {pipeline_mode = #tpu.pipeline_mode<synchronous>, transform_indices = @transform_5, window_bounds = array<i64: 1, 128>}, {pipeline_mode = #tpu.pipeline_mode<synchronous>, transform_indices = @transform_6, window_bounds = array<i64: 128, 128>}, {pipeline_mode = #tpu.pipeline_mode<synchronous>, transform_indices = @transform_7, window_bounds = array<i64: 1, 128>}, {pipeline_mode = #tpu.pipeline_mode<synchronous>, transform_indices = @transform_8, window_bounds = array<i64: 128, 128>}, {pipeline_mode = #tpu.pipeline_mode<synchronous>, transform_indices = @transform_9, window_bounds = array<i64: 1, 128>}, {pipeline_mode = #tpu.pipeline_mode<synchronous>, transform_indices = @transform_10, window_bounds = array<i64: 1, 128>}, {transform_indices = @transform_11, window_bounds = array<i64: 1, 128, 128>}]} {
    %c0 = arith.constant 0 : index
    %c0_0 = arith.constant 0 : index
    %c0_1 = arith.constant 0 : index
    %c0_2 = arith.constant 0 : index
    %c0_3 = arith.constant 0 : index
    %0 = vector.load %arg1[%c0, %c0_0, %c0_1, %c0_2, %c0_3] : memref<1x4x9x17x128xbf16, #tpu.memory_space<vmem>>, vector<1x4x9x17x128xbf16>
    %1 = vector.shape_cast %0 : vector<1x4x9x17x128xbf16> to vector<4x9x17x128xbf16>
    %2 = arith.extf %1 : vector<4x9x17x128xbf16> to vector<4x9x17x128xf32>
    %c0_4 = arith.constant 0 : index
    %c0_5 = arith.constant 0 : index
    %3 = vector.load %arg2[%c0_4, %c0_5] : memref<9x128xf32, #tpu.memory_space<vmem>>, vector<9x128xf32>
    %4 = vector.extract_strided_slice %2 {offsets = [0, 0, 0, 0], sizes = [1, 8, 16, 128], strides = [1, 1, 1, 1]} : vector<4x9x17x128xf32> to vector<1x8x16x128xf32>
    %5 = vector.shape_cast %4 : vector<1x8x16x128xf32> to vector<8x16x128xf32>
    %6 = vector.extract_strided_slice %3 {offsets = [0, 0], sizes = [1, 128], strides = [1, 1]} : vector<9x128xf32> to vector<1x128xf32>
    %7 = vector.shape_cast %6 : vector<1x128xf32> to vector<1x1x128xf32>
    %8 = vector.broadcast %7 : vector<1x1x128xf32> to vector<8x16x128xf32>
    %9 = arith.mulf %5, %8 : vector<8x16x128xf32>
    %10 = vector.extract_strided_slice %2 {offsets = [1, 0, 0, 0], sizes = [1, 8, 16, 128], strides = [1, 1, 1, 1]} : vector<4x9x17x128xf32> to vector<1x8x16x128xf32>
    %11 = vector.shape_cast %10 : vector<1x8x16x128xf32> to vector<8x16x128xf32>
    %12 = vector.extract_strided_slice %3 {offsets = [1, 0], sizes = [1, 128], strides = [1, 1]} : vector<9x128xf32> to vector<1x128xf32>
    %13 = vector.shape_cast %12 : vector<1x128xf32> to vector<1x1x128xf32>
    %14 = vector.broadcast %13 : vector<1x1x128xf32> to vector<8x16x128xf32>
    %15 = arith.mulf %11, %14 : vector<8x16x128xf32>
    %16 = arith.addf %9, %15 : vector<8x16x128xf32>
    %17 = vector.extract_strided_slice %2 {offsets = [0, 0, 1, 0], sizes = [1, 8, 16, 128], strides = [1, 1, 1, 1]} : vector<4x9x17x128xf32> to vector<1x8x16x128xf32>
    %18 = vector.shape_cast %17 : vector<1x8x16x128xf32> to vector<8x16x128xf32>
    %19 = vector.extract_strided_slice %3 {offsets = [2, 0], sizes = [1, 128], strides = [1, 1]} : vector<9x128xf32> to vector<1x128xf32>
    %20 = vector.shape_cast %19 : vector<1x128xf32> to vector<1x1x128xf32>
    %21 = vector.broadcast %20 : vector<1x1x128xf32> to vector<8x16x128xf32>
    %22 = arith.mulf %18, %21 : vector<8x16x128xf32>
    %23 = arith.addf %16, %22 : vector<8x16x128xf32>
    %24 = vector.extract_strided_slice %2 {offsets = [2, 0, 0, 0], sizes = [1, 8, 16, 128], strides = [1, 1, 1, 1]} : vector<4x9x17x128xf32> to vector<1x8x16x128xf32>
    %25 = vector.shape_cast %24 : vector<1x8x16x128xf32> to vector<8x16x128xf32>
    %26 = vector.extract_strided_slice %3 {offsets = [3, 0], sizes = [1, 128], strides = [1, 1]} : vector<9x128xf32> to vector<1x128xf32>
    %27 = vector.shape_cast %26 : vector<1x128xf32> to vector<1x1x128xf32>
    %28 = vector.broadcast %27 : vector<1x1x128xf32> to vector<8x16x128xf32>
    %29 = arith.mulf %25, %28 : vector<8x16x128xf32>
    %30 = arith.addf %23, %29 : vector<8x16x128xf32>
    %31 = vector.extract_strided_slice %2 {offsets = [3, 0, 0, 0], sizes = [1, 8, 16, 128], strides = [1, 1, 1, 1]} : vector<4x9x17x128xf32> to vector<1x8x16x128xf32>
    %32 = vector.shape_cast %31 : vector<1x8x16x128xf32> to vector<8x16x128xf32>
    %33 = vector.extract_strided_slice %3 {offsets = [4, 0], sizes = [1, 128], strides = [1, 1]} : vector<9x128xf32> to vector<1x128xf32>
    %34 = vector.shape_cast %33 : vector<1x128xf32> to vector<1x1x128xf32>
    %35 = vector.broadcast %34 : vector<1x1x128xf32> to vector<8x16x128xf32>
    %36 = arith.mulf %32, %35 : vector<8x16x128xf32>
    %37 = arith.addf %30, %36 : vector<8x16x128xf32>
    %38 = vector.extract_strided_slice %2 {offsets = [2, 0, 1, 0], sizes = [1, 8, 16, 128], strides = [1, 1, 1, 1]} : vector<4x9x17x128xf32> to vector<1x8x16x128xf32>
    %39 = vector.shape_cast %38 : vector<1x8x16x128xf32> to vector<8x16x128xf32>
    %40 = vector.extract_strided_slice %3 {offsets = [5, 0], sizes = [1, 128], strides = [1, 1]} : vector<9x128xf32> to vector<1x128xf32>
    %41 = vector.shape_cast %40 : vector<1x128xf32> to vector<1x1x128xf32>
    %42 = vector.broadcast %41 : vector<1x1x128xf32> to vector<8x16x128xf32>
    %43 = arith.mulf %39, %42 : vector<8x16x128xf32>
    %44 = arith.addf %37, %43 : vector<8x16x128xf32>
    %45 = vector.extract_strided_slice %2 {offsets = [0, 1, 0, 0], sizes = [1, 8, 16, 128], strides = [1, 1, 1, 1]} : vector<4x9x17x128xf32> to vector<1x8x16x128xf32>
    %46 = vector.shape_cast %45 : vector<1x8x16x128xf32> to vector<8x16x128xf32>
    %47 = vector.extract_strided_slice %3 {offsets = [6, 0], sizes = [1, 128], strides = [1, 1]} : vector<9x128xf32> to vector<1x128xf32>
    %48 = vector.shape_cast %47 : vector<1x128xf32> to vector<1x1x128xf32>
    %49 = vector.broadcast %48 : vector<1x1x128xf32> to vector<8x16x128xf32>
    %50 = arith.mulf %46, %49 : vector<8x16x128xf32>
    %51 = arith.addf %44, %50 : vector<8x16x128xf32>
    %52 = vector.extract_strided_slice %2 {offsets = [1, 1, 0, 0], sizes = [1, 8, 16, 128], strides = [1, 1, 1, 1]} : vector<4x9x17x128xf32> to vector<1x8x16x128xf32>
    %53 = vector.shape_cast %52 : vector<1x8x16x128xf32> to vector<8x16x128xf32>
    %54 = vector.extract_strided_slice %3 {offsets = [7, 0], sizes = [1, 128], strides = [1, 1]} : vector<9x128xf32> to vector<1x128xf32>
    %55 = vector.shape_cast %54 : vector<1x128xf32> to vector<1x1x128xf32>
    %56 = vector.broadcast %55 : vector<1x1x128xf32> to vector<8x16x128xf32>
    %57 = arith.mulf %53, %56 : vector<8x16x128xf32>
    %58 = arith.addf %51, %57 : vector<8x16x128xf32>
    %59 = vector.extract_strided_slice %2 {offsets = [0, 1, 1, 0], sizes = [1, 8, 16, 128], strides = [1, 1, 1, 1]} : vector<4x9x17x128xf32> to vector<1x8x16x128xf32>
    %60 = vector.shape_cast %59 : vector<1x8x16x128xf32> to vector<8x16x128xf32>
    %61 = vector.extract_strided_slice %3 {offsets = [8, 0], sizes = [1, 128], strides = [1, 1]} : vector<9x128xf32> to vector<1x128xf32>
    %62 = vector.shape_cast %61 : vector<1x128xf32> to vector<1x1x128xf32>
    %63 = vector.broadcast %62 : vector<1x1x128xf32> to vector<8x16x128xf32>
    %64 = arith.mulf %60, %63 : vector<8x16x128xf32>
    %65 = arith.addf %58, %64 : vector<8x16x128xf32>
    %66 = vector.shape_cast %65 : vector<8x16x128xf32> to vector<128x128xf32>
    %c0_6 = arith.constant 0 : index
    %c0_7 = arith.constant 0 : index
    %67 = vector.load %arg3[%c0_6, %c0_7] : memref<1x128xf32, #tpu.memory_space<vmem>>, vector<1x128xf32>
    %68 = vector.broadcast %67 : vector<1x128xf32> to vector<128x128xf32>
    %69 = arith.mulf %66, %68 : vector<128x128xf32>
    %c0_8 = arith.constant 0 : index
    %c0_9 = arith.constant 0 : index
    %70 = vector.load %arg4[%c0_8, %c0_9] : memref<1x128xf32, #tpu.memory_space<vmem>>, vector<1x128xf32>
    %71 = vector.broadcast %70 : vector<1x128xf32> to vector<128x128xf32>
    %72 = arith.addf %69, %71 : vector<128x128xf32>
    %cst = arith.constant 0.000000e+00 : f32
    %73 = vector.broadcast %cst : f32 to vector<128x128xf32>
    %74 = arith.subf %73, %72 : vector<128x128xf32>
    %cst_10 = arith.constant 6.000000e+01 : f32
    %75 = vector.broadcast %cst_10 : f32 to vector<128x128xf32>
    %76 = arith.minimumf %74, %75 : vector<128x128xf32>
    %77 = math.exp %76 : vector<128x128xf32>
    %cst_11 = arith.constant 1.000000e+00 : f32
    %78 = vector.broadcast %cst_11 : f32 to vector<128x128xf32>
    %79 = arith.addf %78, %77 : vector<128x128xf32>
    %80 = tpu.reciprocal %79 {approx = true} : vector<128x128xf32> -> vector<128x128xf32>
    %81 = arith.mulf %72, %80 : vector<128x128xf32>
    %cst_12 = arith.constant dense<0.000000e+00> : vector<128xf32>
    %82 = vector.multi_reduction <add>, %81, %cst_12 [0] : vector<128x128xf32> to vector<128xf32>
    %83 = vector.shape_cast %82 : vector<128xf32> to vector<1x128xf32>
    %cst_13 = arith.constant 1.280000e+02 : f32
    %84 = vector.broadcast %cst_13 : f32 to vector<1x128xf32>
    %85 = arith.divf %83, %84 : vector<1x128xf32>
    %c0_14 = arith.constant 0 : index
    %c0_15 = arith.constant 0 : index
    %86 = vector.load %arg5[%c0_14, %c0_15] : memref<128x128xf32, #tpu.memory_space<vmem>>, vector<128x128xf32>
    %cst_16 = arith.constant dense<0.000000e+00> : vector<1x128xf32>
    %87 = tpu.matmul %85, %86, %cst_16 {dimension_numbers = #tpu.dot_dimension_numbers<[1], [0], [0], [1], [0, 0, 1, 1], [], []>} : vector<1x128xf32>, vector<128x128xf32>, vector<1x128xf32> -> vector<1x128xf32>
    %c0_17 = arith.constant 0 : index
    %c0_18 = arith.constant 0 : index
    %88 = vector.load %arg6[%c0_17, %c0_18] : memref<1x128xf32, #tpu.memory_space<vmem>>, vector<1x128xf32>
    %89 = arith.addf %87, %88 : vector<1x128xf32>
    %cst_19 = arith.constant 0.000000e+00 : f32
    %90 = vector.broadcast %cst_19 : f32 to vector<1x128xf32>
    %91 = arith.subf %90, %89 : vector<1x128xf32>
    %cst_20 = arith.constant 6.000000e+01 : f32
    %92 = vector.broadcast %cst_20 : f32 to vector<1x128xf32>
    %93 = arith.minimumf %91, %92 : vector<1x128xf32>
    %94 = math.exp %93 : vector<1x128xf32>
    %cst_21 = arith.constant 1.000000e+00 : f32
    %95 = vector.broadcast %cst_21 : f32 to vector<1x128xf32>
    %96 = arith.addf %95, %94 : vector<1x128xf32>
    %97 = tpu.reciprocal %96 {approx = true} : vector<1x128xf32> -> vector<1x128xf32>
    %98 = arith.mulf %89, %97 : vector<1x128xf32>
    %c0_22 = arith.constant 0 : index
    %c0_23 = arith.constant 0 : index
    %99 = vector.load %arg7[%c0_22, %c0_23] : memref<128x128xf32, #tpu.memory_space<vmem>>, vector<128x128xf32>
    %cst_24 = arith.constant dense<0.000000e+00> : vector<1x128xf32>
    %100 = tpu.matmul %98, %99, %cst_24 {dimension_numbers = #tpu.dot_dimension_numbers<[1], [0], [0], [1], [0, 0, 1, 1], [], []>} : vector<1x128xf32>, vector<128x128xf32>, vector<1x128xf32> -> vector<1x128xf32>
    %c0_25 = arith.constant 0 : index
    %c0_26 = arith.constant 0 : index
    %101 = vector.load %arg8[%c0_25, %c0_26] : memref<1x128xf32, #tpu.memory_space<vmem>>, vector<1x128xf32>
    %102 = arith.addf %100, %101 : vector<1x128xf32>
    %cst_27 = arith.constant 0.000000e+00 : f32
    %103 = vector.broadcast %cst_27 : f32 to vector<1x128xf32>
    %104 = arith.subf %103, %102 : vector<1x128xf32>
    %cst_28 = arith.constant 6.000000e+01 : f32
    %105 = vector.broadcast %cst_28 : f32 to vector<1x128xf32>
    %106 = arith.minimumf %104, %105 : vector<1x128xf32>
    %107 = math.exp %106 : vector<1x128xf32>
    %cst_29 = arith.constant 1.000000e+00 : f32
    %108 = vector.broadcast %cst_29 : f32 to vector<1x128xf32>
    %109 = arith.addf %108, %107 : vector<1x128xf32>
    %110 = tpu.reciprocal %109 {approx = true} : vector<1x128xf32> -> vector<1x128xf32>
    %111 = vector.broadcast %110 : vector<1x128xf32> to vector<128x128xf32>
    %112 = arith.mulf %81, %111 : vector<128x128xf32>
    %113 = arith.truncf %112 : vector<128x128xf32> to vector<128x128xbf16>
    %c0_30 = arith.constant 0 : index
    %c0_31 = arith.constant 0 : index
    %114 = vector.load %arg9[%c0_30, %c0_31] : memref<128x128xbf16, #tpu.memory_space<vmem>>, vector<128x128xbf16>
    %cst_32 = arith.constant dense<0.000000e+00> : vector<128x128xf32>
    %115 = tpu.matmul %113, %114, %cst_32 {dimension_numbers = #tpu.dot_dimension_numbers<[1], [0], [0], [1], [0, 0, 1, 1], [], []>} : vector<128x128xbf16>, vector<128x128xbf16>, vector<128x128xf32> -> vector<128x128xf32>
    %c0_33 = arith.constant 0 : index
    %c0_34 = arith.constant 0 : index
    %116 = vector.load %arg10[%c0_33, %c0_34] : memref<1x128xf32, #tpu.memory_space<vmem>>, vector<1x128xf32>
    %117 = vector.broadcast %116 : vector<1x128xf32> to vector<128x128xf32>
    %118 = arith.mulf %115, %117 : vector<128x128xf32>
    %c0_35 = arith.constant 0 : index
    %c0_36 = arith.constant 0 : index
    %119 = vector.load %arg11[%c0_35, %c0_36] : memref<1x128xf32, #tpu.memory_space<vmem>>, vector<1x128xf32>
    %120 = vector.broadcast %119 : vector<1x128xf32> to vector<128x128xf32>
    %121 = arith.addf %118, %120 : vector<128x128xf32>
    %122 = arith.truncf %121 : vector<128x128xf32> to vector<128x128xbf16>
    %c0_37 = arith.constant 0 : index
    %c0_38 = arith.constant 0 : index
    %c0_39 = arith.constant 0 : index
    %123 = vector.load %arg12[%c0_37, %c0_38, %c0_39] : memref<1x128x128xbf16, #tpu.memory_space<vmem>>, vector<1x128x128xbf16>
    %124 = vector.shape_cast %123 : vector<1x128x128xbf16> to vector<128x128xbf16>
    %125 = vector.shape_cast %122 : vector<128x128xbf16> to vector<1x128x128xbf16>
    tpu.vector_store %arg12[%c0_37, %c0_38, %c0_39], %125 {strides = array<i32>} : memref<1x128x128xbf16, #tpu.memory_space<vmem>>, vector<1x128x128xbf16>,
    return
  }
  func.func @transform_0(%arg0: i32) -> (i32, i32, i32, i32, i32) {
    %c0_i32 = arith.constant 0 : i32
    %c0_i32_0 = arith.constant 0 : i32
    %c0_i32_1 = arith.constant 0 : i32
    %c0_i32_2 = arith.constant 0 : i32
    %c0_i32_3 = arith.constant 0 : i32
    return %arg0, %c0_i32, %c0_i32_0, %c0_i32_1, %c0_i32_2 : i32, i32, i32, i32, i32
  }
  func.func @transform_1(%arg0: i32) -> (i32, i32) {
    %c0_i32 = arith.constant 0 : i32
    %c0_i32_0 = arith.constant 0 : i32
    %c0_i32_1 = arith.constant 0 : i32
    return %c0_i32, %c0_i32_0 : i32, i32
  }
  func.func @transform_2(%arg0: i32) -> (i32, i32) {
    %c0_i32 = arith.constant 0 : i32
    %c0_i32_0 = arith.constant 0 : i32
    %c0_i32_1 = arith.constant 0 : i32
    return %c0_i32, %c0_i32_0 : i32, i32
  }
  func.func @transform_3(%arg0: i32) -> (i32, i32) {
    %c0_i32 = arith.constant 0 : i32
    %c0_i32_0 = arith.constant 0 : i32
    %c0_i32_1 = arith.constant 0 : i32
    return %c0_i32, %c0_i32_0 : i32, i32
  }
  func.func @transform_4(%arg0: i32) -> (i32, i32) {
    %c0_i32 = arith.constant 0 : i32
    %c0_i32_0 = arith.constant 0 : i32
    %c0_i32_1 = arith.constant 0 : i32
    return %c0_i32, %c0_i32_0 : i32, i32
  }
  func.func @transform_5(%arg0: i32) -> (i32, i32) {
    %c0_i32 = arith.constant 0 : i32
    %c0_i32_0 = arith.constant 0 : i32
    %c0_i32_1 = arith.constant 0 : i32
    return %c0_i32, %c0_i32_0 : i32, i32
  }
  func.func @transform_6(%arg0: i32) -> (i32, i32) {
    %c0_i32 = arith.constant 0 : i32
    %c0_i32_0 = arith.constant 0 : i32
    %c0_i32_1 = arith.constant 0 : i32
    return %c0_i32, %c0_i32_0 : i32, i32
  }
  func.func @transform_7(%arg0: i32) -> (i32, i32) {
    %c0_i32 = arith.constant 0 : i32
    %c0_i32_0 = arith.constant 0 : i32
    %c0_i32_1 = arith.constant 0 : i32
    return %c0_i32, %c0_i32_0 : i32, i32
  }
  func.func @transform_8(%arg0: i32) -> (i32, i32) {
    %c0_i32 = arith.constant 0 : i32
    %c0_i32_0 = arith.constant 0 : i32
    %c0_i32_1 = arith.constant 0 : i32
    return %c0_i32, %c0_i32_0 : i32, i32
  }
  func.func @transform_9(%arg0: i32) -> (i32, i32) {
    %c0_i32 = arith.constant 0 : i32
    %c0_i32_0 = arith.constant 0 : i32
    %c0_i32_1 = arith.constant 0 : i32
    return %c0_i32, %c0_i32_0 : i32, i32
  }
  func.func @transform_10(%arg0: i32) -> (i32, i32) {
    %c0_i32 = arith.constant 0 : i32
    %c0_i32_0 = arith.constant 0 : i32
    %c0_i32_1 = arith.constant 0 : i32
    return %c0_i32, %c0_i32_0 : i32, i32
  }
  func.func @transform_11(%arg0: i32) -> (i32, i32, i32) {
    %c0_i32 = arith.constant 0 : i32
    %c0_i32_0 = arith.constant 0 : i32
    %c0_i32_1 = arith.constant 0 : i32
    return %arg0, %c0_i32, %c0_i32_0 : i32, i32, i32
  }
}

module attributes {stable_mosaic.version = 11 : i64} {
  func.func @_mbconv_stage_kernel(%arg0: i32, %arg1: memref<1x4x5x9x128xbf16, #tpu.memory_space<vmem>>, %arg2: memref<9x128xf32, #tpu.memory_space<vmem>>, %arg3: memref<1x128xf32, #tpu.memory_space<vmem>>, %arg4: memref<1x128xf32, #tpu.memory_space<vmem>>, %arg5: memref<128x128xf32, #tpu.memory_space<vmem>>, %arg6: memref<1x128xf32, #tpu.memory_space<vmem>>, %arg7: memref<128x128xf32, #tpu.memory_space<vmem>>, %arg8: memref<1x128xf32, #tpu.memory_space<vmem>>, %arg9: memref<128x128xbf16, #tpu.memory_space<vmem>>, %arg10: memref<1x128xf32, #tpu.memory_space<vmem>>, %arg11: memref<1x128xf32, #tpu.memory_space<vmem>>, %arg12: memref<1x32x128xbf16, #tpu.memory_space<vmem>>) attributes {dimension_semantics = [#tpu.dimension_semantics<parallel>], iteration_bounds = array<i64: 2>, scalar_prefetch = 0 : i64, scratch_operands = 0 : i64, tpu.core_type = #tpu.core_type<tc>, window_params = [{transform_indices = @transform_0, window_bounds = array<i64: 1, 4, 5, 9, 128>}, {pipeline_mode = #tpu.pipeline_mode<synchronous>, transform_indices = @transform_1, window_bounds = array<i64: 9, 128>}, {pipeline_mode = #tpu.pipeline_mode<synchronous>, transform_indices = @transform_2, window_bounds = array<i64: 1, 128>}, {pipeline_mode = #tpu.pipeline_mode<synchronous>, transform_indices = @transform_3, window_bounds = array<i64: 1, 128>}, {pipeline_mode = #tpu.pipeline_mode<synchronous>, transform_indices = @transform_4, window_bounds = array<i64: 128, 128>}, {pipeline_mode = #tpu.pipeline_mode<synchronous>, transform_indices = @transform_5, window_bounds = array<i64: 1, 128>}, {pipeline_mode = #tpu.pipeline_mode<synchronous>, transform_indices = @transform_6, window_bounds = array<i64: 128, 128>}, {pipeline_mode = #tpu.pipeline_mode<synchronous>, transform_indices = @transform_7, window_bounds = array<i64: 1, 128>}, {pipeline_mode = #tpu.pipeline_mode<synchronous>, transform_indices = @transform_8, window_bounds = array<i64: 128, 128>}, {pipeline_mode = #tpu.pipeline_mode<synchronous>, transform_indices = @transform_9, window_bounds = array<i64: 1, 128>}, {pipeline_mode = #tpu.pipeline_mode<synchronous>, transform_indices = @transform_10, window_bounds = array<i64: 1, 128>}, {transform_indices = @transform_11, window_bounds = array<i64: 1, 32, 128>}]} {
    %c0 = arith.constant 0 : index
    %c0_0 = arith.constant 0 : index
    %c0_1 = arith.constant 0 : index
    %c0_2 = arith.constant 0 : index
    %c0_3 = arith.constant 0 : index
    %0 = vector.load %arg1[%c0, %c0_0, %c0_1, %c0_2, %c0_3] : memref<1x4x5x9x128xbf16, #tpu.memory_space<vmem>>, vector<1x4x5x9x128xbf16>
    %1 = vector.shape_cast %0 : vector<1x4x5x9x128xbf16> to vector<4x5x9x128xbf16>
    %2 = arith.extf %1 : vector<4x5x9x128xbf16> to vector<4x5x9x128xf32>
    %c0_4 = arith.constant 0 : index
    %c0_5 = arith.constant 0 : index
    %3 = vector.load %arg2[%c0_4, %c0_5] : memref<9x128xf32, #tpu.memory_space<vmem>>, vector<9x128xf32>
    %4 = vector.extract_strided_slice %2 {offsets = [0, 0, 0, 0], sizes = [1, 4, 8, 128], strides = [1, 1, 1, 1]} : vector<4x5x9x128xf32> to vector<1x4x8x128xf32>
    %5 = vector.shape_cast %4 : vector<1x4x8x128xf32> to vector<4x8x128xf32>
    %6 = vector.extract_strided_slice %3 {offsets = [0, 0], sizes = [1, 128], strides = [1, 1]} : vector<9x128xf32> to vector<1x128xf32>
    %7 = vector.shape_cast %6 : vector<1x128xf32> to vector<1x1x128xf32>
    %8 = vector.broadcast %7 : vector<1x1x128xf32> to vector<4x8x128xf32>
    %9 = arith.mulf %5, %8 : vector<4x8x128xf32>
    %10 = vector.extract_strided_slice %2 {offsets = [1, 0, 0, 0], sizes = [1, 4, 8, 128], strides = [1, 1, 1, 1]} : vector<4x5x9x128xf32> to vector<1x4x8x128xf32>
    %11 = vector.shape_cast %10 : vector<1x4x8x128xf32> to vector<4x8x128xf32>
    %12 = vector.extract_strided_slice %3 {offsets = [1, 0], sizes = [1, 128], strides = [1, 1]} : vector<9x128xf32> to vector<1x128xf32>
    %13 = vector.shape_cast %12 : vector<1x128xf32> to vector<1x1x128xf32>
    %14 = vector.broadcast %13 : vector<1x1x128xf32> to vector<4x8x128xf32>
    %15 = arith.mulf %11, %14 : vector<4x8x128xf32>
    %16 = arith.addf %9, %15 : vector<4x8x128xf32>
    %17 = vector.extract_strided_slice %2 {offsets = [0, 0, 1, 0], sizes = [1, 4, 8, 128], strides = [1, 1, 1, 1]} : vector<4x5x9x128xf32> to vector<1x4x8x128xf32>
    %18 = vector.shape_cast %17 : vector<1x4x8x128xf32> to vector<4x8x128xf32>
    %19 = vector.extract_strided_slice %3 {offsets = [2, 0], sizes = [1, 128], strides = [1, 1]} : vector<9x128xf32> to vector<1x128xf32>
    %20 = vector.shape_cast %19 : vector<1x128xf32> to vector<1x1x128xf32>
    %21 = vector.broadcast %20 : vector<1x1x128xf32> to vector<4x8x128xf32>
    %22 = arith.mulf %18, %21 : vector<4x8x128xf32>
    %23 = arith.addf %16, %22 : vector<4x8x128xf32>
    %24 = vector.extract_strided_slice %2 {offsets = [2, 0, 0, 0], sizes = [1, 4, 8, 128], strides = [1, 1, 1, 1]} : vector<4x5x9x128xf32> to vector<1x4x8x128xf32>
    %25 = vector.shape_cast %24 : vector<1x4x8x128xf32> to vector<4x8x128xf32>
    %26 = vector.extract_strided_slice %3 {offsets = [3, 0], sizes = [1, 128], strides = [1, 1]} : vector<9x128xf32> to vector<1x128xf32>
    %27 = vector.shape_cast %26 : vector<1x128xf32> to vector<1x1x128xf32>
    %28 = vector.broadcast %27 : vector<1x1x128xf32> to vector<4x8x128xf32>
    %29 = arith.mulf %25, %28 : vector<4x8x128xf32>
    %30 = arith.addf %23, %29 : vector<4x8x128xf32>
    %31 = vector.extract_strided_slice %2 {offsets = [3, 0, 0, 0], sizes = [1, 4, 8, 128], strides = [1, 1, 1, 1]} : vector<4x5x9x128xf32> to vector<1x4x8x128xf32>
    %32 = vector.shape_cast %31 : vector<1x4x8x128xf32> to vector<4x8x128xf32>
    %33 = vector.extract_strided_slice %3 {offsets = [4, 0], sizes = [1, 128], strides = [1, 1]} : vector<9x128xf32> to vector<1x128xf32>
    %34 = vector.shape_cast %33 : vector<1x128xf32> to vector<1x1x128xf32>
    %35 = vector.broadcast %34 : vector<1x1x128xf32> to vector<4x8x128xf32>
    %36 = arith.mulf %32, %35 : vector<4x8x128xf32>
    %37 = arith.addf %30, %36 : vector<4x8x128xf32>
    %38 = vector.extract_strided_slice %2 {offsets = [2, 0, 1, 0], sizes = [1, 4, 8, 128], strides = [1, 1, 1, 1]} : vector<4x5x9x128xf32> to vector<1x4x8x128xf32>
    %39 = vector.shape_cast %38 : vector<1x4x8x128xf32> to vector<4x8x128xf32>
    %40 = vector.extract_strided_slice %3 {offsets = [5, 0], sizes = [1, 128], strides = [1, 1]} : vector<9x128xf32> to vector<1x128xf32>
    %41 = vector.shape_cast %40 : vector<1x128xf32> to vector<1x1x128xf32>
    %42 = vector.broadcast %41 : vector<1x1x128xf32> to vector<4x8x128xf32>
    %43 = arith.mulf %39, %42 : vector<4x8x128xf32>
    %44 = arith.addf %37, %43 : vector<4x8x128xf32>
    %45 = vector.extract_strided_slice %2 {offsets = [0, 1, 0, 0], sizes = [1, 4, 8, 128], strides = [1, 1, 1, 1]} : vector<4x5x9x128xf32> to vector<1x4x8x128xf32>
    %46 = vector.shape_cast %45 : vector<1x4x8x128xf32> to vector<4x8x128xf32>
    %47 = vector.extract_strided_slice %3 {offsets = [6, 0], sizes = [1, 128], strides = [1, 1]} : vector<9x128xf32> to vector<1x128xf32>
    %48 = vector.shape_cast %47 : vector<1x128xf32> to vector<1x1x128xf32>
    %49 = vector.broadcast %48 : vector<1x1x128xf32> to vector<4x8x128xf32>
    %50 = arith.mulf %46, %49 : vector<4x8x128xf32>
    %51 = arith.addf %44, %50 : vector<4x8x128xf32>
    %52 = vector.extract_strided_slice %2 {offsets = [1, 1, 0, 0], sizes = [1, 4, 8, 128], strides = [1, 1, 1, 1]} : vector<4x5x9x128xf32> to vector<1x4x8x128xf32>
    %53 = vector.shape_cast %52 : vector<1x4x8x128xf32> to vector<4x8x128xf32>
    %54 = vector.extract_strided_slice %3 {offsets = [7, 0], sizes = [1, 128], strides = [1, 1]} : vector<9x128xf32> to vector<1x128xf32>
    %55 = vector.shape_cast %54 : vector<1x128xf32> to vector<1x1x128xf32>
    %56 = vector.broadcast %55 : vector<1x1x128xf32> to vector<4x8x128xf32>
    %57 = arith.mulf %53, %56 : vector<4x8x128xf32>
    %58 = arith.addf %51, %57 : vector<4x8x128xf32>
    %59 = vector.extract_strided_slice %2 {offsets = [0, 1, 1, 0], sizes = [1, 4, 8, 128], strides = [1, 1, 1, 1]} : vector<4x5x9x128xf32> to vector<1x4x8x128xf32>
    %60 = vector.shape_cast %59 : vector<1x4x8x128xf32> to vector<4x8x128xf32>
    %61 = vector.extract_strided_slice %3 {offsets = [8, 0], sizes = [1, 128], strides = [1, 1]} : vector<9x128xf32> to vector<1x128xf32>
    %62 = vector.shape_cast %61 : vector<1x128xf32> to vector<1x1x128xf32>
    %63 = vector.broadcast %62 : vector<1x1x128xf32> to vector<4x8x128xf32>
    %64 = arith.mulf %60, %63 : vector<4x8x128xf32>
    %65 = arith.addf %58, %64 : vector<4x8x128xf32>
    %66 = vector.shape_cast %65 : vector<4x8x128xf32> to vector<32x128xf32>
    %c0_6 = arith.constant 0 : index
    %c0_7 = arith.constant 0 : index
    %67 = vector.load %arg3[%c0_6, %c0_7] : memref<1x128xf32, #tpu.memory_space<vmem>>, vector<1x128xf32>
    %68 = vector.broadcast %67 : vector<1x128xf32> to vector<32x128xf32>
    %69 = arith.mulf %66, %68 : vector<32x128xf32>
    %c0_8 = arith.constant 0 : index
    %c0_9 = arith.constant 0 : index
    %70 = vector.load %arg4[%c0_8, %c0_9] : memref<1x128xf32, #tpu.memory_space<vmem>>, vector<1x128xf32>
    %71 = vector.broadcast %70 : vector<1x128xf32> to vector<32x128xf32>
    %72 = arith.addf %69, %71 : vector<32x128xf32>
    %cst = arith.constant 0.000000e+00 : f32
    %73 = vector.broadcast %cst : f32 to vector<32x128xf32>
    %74 = arith.subf %73, %72 : vector<32x128xf32>
    %cst_10 = arith.constant 6.000000e+01 : f32
    %75 = vector.broadcast %cst_10 : f32 to vector<32x128xf32>
    %76 = arith.minimumf %74, %75 : vector<32x128xf32>
    %77 = math.exp %76 : vector<32x128xf32>
    %cst_11 = arith.constant 1.000000e+00 : f32
    %78 = vector.broadcast %cst_11 : f32 to vector<32x128xf32>
    %79 = arith.addf %78, %77 : vector<32x128xf32>
    %80 = tpu.reciprocal %79 {approx = true} : vector<32x128xf32> -> vector<32x128xf32>
    %81 = arith.mulf %72, %80 : vector<32x128xf32>
    %cst_12 = arith.constant dense<0.000000e+00> : vector<128xf32>
    %82 = vector.multi_reduction <add>, %81, %cst_12 [0] : vector<32x128xf32> to vector<128xf32>
    %83 = vector.shape_cast %82 : vector<128xf32> to vector<1x128xf32>
    %cst_13 = arith.constant 3.200000e+01 : f32
    %84 = vector.broadcast %cst_13 : f32 to vector<1x128xf32>
    %85 = arith.divf %83, %84 : vector<1x128xf32>
    %c0_14 = arith.constant 0 : index
    %c0_15 = arith.constant 0 : index
    %86 = vector.load %arg5[%c0_14, %c0_15] : memref<128x128xf32, #tpu.memory_space<vmem>>, vector<128x128xf32>
    %cst_16 = arith.constant dense<0.000000e+00> : vector<1x128xf32>
    %87 = tpu.matmul %85, %86, %cst_16 {dimension_numbers = #tpu.dot_dimension_numbers<[1], [0], [0], [1], [0, 0, 1, 1], [], []>} : vector<1x128xf32>, vector<128x128xf32>, vector<1x128xf32> -> vector<1x128xf32>
    %c0_17 = arith.constant 0 : index
    %c0_18 = arith.constant 0 : index
    %88 = vector.load %arg6[%c0_17, %c0_18] : memref<1x128xf32, #tpu.memory_space<vmem>>, vector<1x128xf32>
    %89 = arith.addf %87, %88 : vector<1x128xf32>
    %cst_19 = arith.constant 0.000000e+00 : f32
    %90 = vector.broadcast %cst_19 : f32 to vector<1x128xf32>
    %91 = arith.subf %90, %89 : vector<1x128xf32>
    %cst_20 = arith.constant 6.000000e+01 : f32
    %92 = vector.broadcast %cst_20 : f32 to vector<1x128xf32>
    %93 = arith.minimumf %91, %92 : vector<1x128xf32>
    %94 = math.exp %93 : vector<1x128xf32>
    %cst_21 = arith.constant 1.000000e+00 : f32
    %95 = vector.broadcast %cst_21 : f32 to vector<1x128xf32>
    %96 = arith.addf %95, %94 : vector<1x128xf32>
    %97 = tpu.reciprocal %96 {approx = true} : vector<1x128xf32> -> vector<1x128xf32>
    %98 = arith.mulf %89, %97 : vector<1x128xf32>
    %c0_22 = arith.constant 0 : index
    %c0_23 = arith.constant 0 : index
    %99 = vector.load %arg7[%c0_22, %c0_23] : memref<128x128xf32, #tpu.memory_space<vmem>>, vector<128x128xf32>
    %cst_24 = arith.constant dense<0.000000e+00> : vector<1x128xf32>
    %100 = tpu.matmul %98, %99, %cst_24 {dimension_numbers = #tpu.dot_dimension_numbers<[1], [0], [0], [1], [0, 0, 1, 1], [], []>} : vector<1x128xf32>, vector<128x128xf32>, vector<1x128xf32> -> vector<1x128xf32>
    %c0_25 = arith.constant 0 : index
    %c0_26 = arith.constant 0 : index
    %101 = vector.load %arg8[%c0_25, %c0_26] : memref<1x128xf32, #tpu.memory_space<vmem>>, vector<1x128xf32>
    %102 = arith.addf %100, %101 : vector<1x128xf32>
    %cst_27 = arith.constant 0.000000e+00 : f32
    %103 = vector.broadcast %cst_27 : f32 to vector<1x128xf32>
    %104 = arith.subf %103, %102 : vector<1x128xf32>
    %cst_28 = arith.constant 6.000000e+01 : f32
    %105 = vector.broadcast %cst_28 : f32 to vector<1x128xf32>
    %106 = arith.minimumf %104, %105 : vector<1x128xf32>
    %107 = math.exp %106 : vector<1x128xf32>
    %cst_29 = arith.constant 1.000000e+00 : f32
    %108 = vector.broadcast %cst_29 : f32 to vector<1x128xf32>
    %109 = arith.addf %108, %107 : vector<1x128xf32>
    %110 = tpu.reciprocal %109 {approx = true} : vector<1x128xf32> -> vector<1x128xf32>
    %111 = vector.broadcast %110 : vector<1x128xf32> to vector<32x128xf32>
    %112 = arith.mulf %81, %111 : vector<32x128xf32>
    %113 = arith.truncf %112 : vector<32x128xf32> to vector<32x128xbf16>
    %c0_30 = arith.constant 0 : index
    %c0_31 = arith.constant 0 : index
    %114 = vector.load %arg9[%c0_30, %c0_31] : memref<128x128xbf16, #tpu.memory_space<vmem>>, vector<128x128xbf16>
    %cst_32 = arith.constant dense<0.000000e+00> : vector<32x128xf32>
    %115 = tpu.matmul %113, %114, %cst_32 {dimension_numbers = #tpu.dot_dimension_numbers<[1], [0], [0], [1], [0, 0, 1, 1], [], []>} : vector<32x128xbf16>, vector<128x128xbf16>, vector<32x128xf32> -> vector<32x128xf32>
    %c0_33 = arith.constant 0 : index
    %c0_34 = arith.constant 0 : index
    %116 = vector.load %arg10[%c0_33, %c0_34] : memref<1x128xf32, #tpu.memory_space<vmem>>, vector<1x128xf32>
    %117 = vector.broadcast %116 : vector<1x128xf32> to vector<32x128xf32>
    %118 = arith.mulf %115, %117 : vector<32x128xf32>
    %c0_35 = arith.constant 0 : index
    %c0_36 = arith.constant 0 : index
    %119 = vector.load %arg11[%c0_35, %c0_36] : memref<1x128xf32, #tpu.memory_space<vmem>>, vector<1x128xf32>
    %120 = vector.broadcast %119 : vector<1x128xf32> to vector<32x128xf32>
    %121 = arith.addf %118, %120 : vector<32x128xf32>
    %122 = arith.truncf %121 : vector<32x128xf32> to vector<32x128xbf16>
    %c0_37 = arith.constant 0 : index
    %c0_38 = arith.constant 0 : index
    %c0_39 = arith.constant 0 : index
    %123 = vector.load %arg12[%c0_37, %c0_38, %c0_39] : memref<1x32x128xbf16, #tpu.memory_space<vmem>>, vector<1x32x128xbf16>
    %124 = vector.shape_cast %123 : vector<1x32x128xbf16> to vector<32x128xbf16>
    %125 = vector.shape_cast %122 : vector<32x128xbf16> to vector<1x32x128xbf16>
    tpu.vector_store %arg12[%c0_37, %c0_38, %c0_39], %125 {strides = array<i32>} : memref<1x32x128xbf16, #tpu.memory_space<vmem>>, vector<1x32x128xbf16>,
    return
  }
  func.func @transform_0(%arg0: i32) -> (i32, i32, i32, i32, i32) {
    %c0_i32 = arith.constant 0 : i32
    %c0_i32_0 = arith.constant 0 : i32
    %c0_i32_1 = arith.constant 0 : i32
    %c0_i32_2 = arith.constant 0 : i32
    %c0_i32_3 = arith.constant 0 : i32
    return %arg0, %c0_i32, %c0_i32_0, %c0_i32_1, %c0_i32_2 : i32, i32, i32, i32, i32
  }
  func.func @transform_1(%arg0: i32) -> (i32, i32) {
    %c0_i32 = arith.constant 0 : i32
    %c0_i32_0 = arith.constant 0 : i32
    %c0_i32_1 = arith.constant 0 : i32
    return %c0_i32, %c0_i32_0 : i32, i32
  }
  func.func @transform_2(%arg0: i32) -> (i32, i32) {
    %c0_i32 = arith.constant 0 : i32
    %c0_i32_0 = arith.constant 0 : i32
    %c0_i32_1 = arith.constant 0 : i32
    return %c0_i32, %c0_i32_0 : i32, i32
  }
  func.func @transform_3(%arg0: i32) -> (i32, i32) {
    %c0_i32 = arith.constant 0 : i32
    %c0_i32_0 = arith.constant 0 : i32
    %c0_i32_1 = arith.constant 0 : i32
    return %c0_i32, %c0_i32_0 : i32, i32
  }
  func.func @transform_4(%arg0: i32) -> (i32, i32) {
    %c0_i32 = arith.constant 0 : i32
    %c0_i32_0 = arith.constant 0 : i32
    %c0_i32_1 = arith.constant 0 : i32
    return %c0_i32, %c0_i32_0 : i32, i32
  }
  func.func @transform_5(%arg0: i32) -> (i32, i32) {
    %c0_i32 = arith.constant 0 : i32
    %c0_i32_0 = arith.constant 0 : i32
    %c0_i32_1 = arith.constant 0 : i32
    return %c0_i32, %c0_i32_0 : i32, i32
  }
  func.func @transform_6(%arg0: i32) -> (i32, i32) {
    %c0_i32 = arith.constant 0 : i32
    %c0_i32_0 = arith.constant 0 : i32
    %c0_i32_1 = arith.constant 0 : i32
    return %c0_i32, %c0_i32_0 : i32, i32
  }
  func.func @transform_7(%arg0: i32) -> (i32, i32) {
    %c0_i32 = arith.constant 0 : i32
    %c0_i32_0 = arith.constant 0 : i32
    %c0_i32_1 = arith.constant 0 : i32
    return %c0_i32, %c0_i32_0 : i32, i32
  }
  func.func @transform_8(%arg0: i32) -> (i32, i32) {
    %c0_i32 = arith.constant 0 : i32
    %c0_i32_0 = arith.constant 0 : i32
    %c0_i32_1 = arith.constant 0 : i32
    return %c0_i32, %c0_i32_0 : i32, i32
  }
  func.func @transform_9(%arg0: i32) -> (i32, i32) {
    %c0_i32 = arith.constant 0 : i32
    %c0_i32_0 = arith.constant 0 : i32
    %c0_i32_1 = arith.constant 0 : i32
    return %c0_i32, %c0_i32_0 : i32, i32
  }
  func.func @transform_10(%arg0: i32) -> (i32, i32) {
    %c0_i32 = arith.constant 0 : i32
    %c0_i32_0 = arith.constant 0 : i32
    %c0_i32_1 = arith.constant 0 : i32
    return %c0_i32, %c0_i32_0 : i32, i32
  }
  func.func @transform_11(%arg0: i32) -> (i32, i32, i32) {
    %c0_i32 = arith.constant 0 : i32
    %c0_i32_0 = arith.constant 0 : i32
    %c0_i32_1 = arith.constant 0 : i32
    return %arg0, %c0_i32, %c0_i32_0 : i32, i32, i32
  }
}

module attributes {stable_mosaic.version = 11 : i64} {
  func.func @_mbconv_stage_kernel(%arg0: i32, %arg1: memref<1x4x3x5x128xbf16, #tpu.memory_space<vmem>>, %arg2: memref<9x128xf32, #tpu.memory_space<vmem>>, %arg3: memref<1x128xf32, #tpu.memory_space<vmem>>, %arg4: memref<1x128xf32, #tpu.memory_space<vmem>>, %arg5: memref<128x128xf32, #tpu.memory_space<vmem>>, %arg6: memref<1x128xf32, #tpu.memory_space<vmem>>, %arg7: memref<128x128xf32, #tpu.memory_space<vmem>>, %arg8: memref<1x128xf32, #tpu.memory_space<vmem>>, %arg9: memref<128x128xbf16, #tpu.memory_space<vmem>>, %arg10: memref<1x128xf32, #tpu.memory_space<vmem>>, %arg11: memref<1x128xf32, #tpu.memory_space<vmem>>, %arg12: memref<1x8x128xf32, #tpu.memory_space<vmem>>) attributes {dimension_semantics = [#tpu.dimension_semantics<parallel>], iteration_bounds = array<i64: 2>, scalar_prefetch = 0 : i64, scratch_operands = 0 : i64, tpu.core_type = #tpu.core_type<tc>, window_params = [{transform_indices = @transform_0, window_bounds = array<i64: 1, 4, 3, 5, 128>}, {pipeline_mode = #tpu.pipeline_mode<synchronous>, transform_indices = @transform_1, window_bounds = array<i64: 9, 128>}, {pipeline_mode = #tpu.pipeline_mode<synchronous>, transform_indices = @transform_2, window_bounds = array<i64: 1, 128>}, {pipeline_mode = #tpu.pipeline_mode<synchronous>, transform_indices = @transform_3, window_bounds = array<i64: 1, 128>}, {pipeline_mode = #tpu.pipeline_mode<synchronous>, transform_indices = @transform_4, window_bounds = array<i64: 128, 128>}, {pipeline_mode = #tpu.pipeline_mode<synchronous>, transform_indices = @transform_5, window_bounds = array<i64: 1, 128>}, {pipeline_mode = #tpu.pipeline_mode<synchronous>, transform_indices = @transform_6, window_bounds = array<i64: 128, 128>}, {pipeline_mode = #tpu.pipeline_mode<synchronous>, transform_indices = @transform_7, window_bounds = array<i64: 1, 128>}, {pipeline_mode = #tpu.pipeline_mode<synchronous>, transform_indices = @transform_8, window_bounds = array<i64: 128, 128>}, {pipeline_mode = #tpu.pipeline_mode<synchronous>, transform_indices = @transform_9, window_bounds = array<i64: 1, 128>}, {pipeline_mode = #tpu.pipeline_mode<synchronous>, transform_indices = @transform_10, window_bounds = array<i64: 1, 128>}, {transform_indices = @transform_11, window_bounds = array<i64: 1, 8, 128>}]} {
    %c0 = arith.constant 0 : index
    %c0_0 = arith.constant 0 : index
    %c0_1 = arith.constant 0 : index
    %c0_2 = arith.constant 0 : index
    %c0_3 = arith.constant 0 : index
    %0 = vector.load %arg1[%c0, %c0_0, %c0_1, %c0_2, %c0_3] : memref<1x4x3x5x128xbf16, #tpu.memory_space<vmem>>, vector<1x4x3x5x128xbf16>
    %1 = vector.shape_cast %0 : vector<1x4x3x5x128xbf16> to vector<4x3x5x128xbf16>
    %2 = arith.extf %1 : vector<4x3x5x128xbf16> to vector<4x3x5x128xf32>
    %c0_4 = arith.constant 0 : index
    %c0_5 = arith.constant 0 : index
    %3 = vector.load %arg2[%c0_4, %c0_5] : memref<9x128xf32, #tpu.memory_space<vmem>>, vector<9x128xf32>
    %4 = vector.extract_strided_slice %2 {offsets = [0, 0, 0, 0], sizes = [1, 2, 4, 128], strides = [1, 1, 1, 1]} : vector<4x3x5x128xf32> to vector<1x2x4x128xf32>
    %5 = vector.shape_cast %4 : vector<1x2x4x128xf32> to vector<2x4x128xf32>
    %6 = vector.extract_strided_slice %3 {offsets = [0, 0], sizes = [1, 128], strides = [1, 1]} : vector<9x128xf32> to vector<1x128xf32>
    %7 = vector.shape_cast %6 : vector<1x128xf32> to vector<1x1x128xf32>
    %8 = vector.broadcast %7 : vector<1x1x128xf32> to vector<2x4x128xf32>
    %9 = arith.mulf %5, %8 : vector<2x4x128xf32>
    %10 = vector.extract_strided_slice %2 {offsets = [1, 0, 0, 0], sizes = [1, 2, 4, 128], strides = [1, 1, 1, 1]} : vector<4x3x5x128xf32> to vector<1x2x4x128xf32>
    %11 = vector.shape_cast %10 : vector<1x2x4x128xf32> to vector<2x4x128xf32>
    %12 = vector.extract_strided_slice %3 {offsets = [1, 0], sizes = [1, 128], strides = [1, 1]} : vector<9x128xf32> to vector<1x128xf32>
    %13 = vector.shape_cast %12 : vector<1x128xf32> to vector<1x1x128xf32>
    %14 = vector.broadcast %13 : vector<1x1x128xf32> to vector<2x4x128xf32>
    %15 = arith.mulf %11, %14 : vector<2x4x128xf32>
    %16 = arith.addf %9, %15 : vector<2x4x128xf32>
    %17 = vector.extract_strided_slice %2 {offsets = [0, 0, 1, 0], sizes = [1, 2, 4, 128], strides = [1, 1, 1, 1]} : vector<4x3x5x128xf32> to vector<1x2x4x128xf32>
    %18 = vector.shape_cast %17 : vector<1x2x4x128xf32> to vector<2x4x128xf32>
    %19 = vector.extract_strided_slice %3 {offsets = [2, 0], sizes = [1, 128], strides = [1, 1]} : vector<9x128xf32> to vector<1x128xf32>
    %20 = vector.shape_cast %19 : vector<1x128xf32> to vector<1x1x128xf32>
    %21 = vector.broadcast %20 : vector<1x1x128xf32> to vector<2x4x128xf32>
    %22 = arith.mulf %18, %21 : vector<2x4x128xf32>
    %23 = arith.addf %16, %22 : vector<2x4x128xf32>
    %24 = vector.extract_strided_slice %2 {offsets = [2, 0, 0, 0], sizes = [1, 2, 4, 128], strides = [1, 1, 1, 1]} : vector<4x3x5x128xf32> to vector<1x2x4x128xf32>
    %25 = vector.shape_cast %24 : vector<1x2x4x128xf32> to vector<2x4x128xf32>
    %26 = vector.extract_strided_slice %3 {offsets = [3, 0], sizes = [1, 128], strides = [1, 1]} : vector<9x128xf32> to vector<1x128xf32>
    %27 = vector.shape_cast %26 : vector<1x128xf32> to vector<1x1x128xf32>
    %28 = vector.broadcast %27 : vector<1x1x128xf32> to vector<2x4x128xf32>
    %29 = arith.mulf %25, %28 : vector<2x4x128xf32>
    %30 = arith.addf %23, %29 : vector<2x4x128xf32>
    %31 = vector.extract_strided_slice %2 {offsets = [3, 0, 0, 0], sizes = [1, 2, 4, 128], strides = [1, 1, 1, 1]} : vector<4x3x5x128xf32> to vector<1x2x4x128xf32>
    %32 = vector.shape_cast %31 : vector<1x2x4x128xf32> to vector<2x4x128xf32>
    %33 = vector.extract_strided_slice %3 {offsets = [4, 0], sizes = [1, 128], strides = [1, 1]} : vector<9x128xf32> to vector<1x128xf32>
    %34 = vector.shape_cast %33 : vector<1x128xf32> to vector<1x1x128xf32>
    %35 = vector.broadcast %34 : vector<1x1x128xf32> to vector<2x4x128xf32>
    %36 = arith.mulf %32, %35 : vector<2x4x128xf32>
    %37 = arith.addf %30, %36 : vector<2x4x128xf32>
    %38 = vector.extract_strided_slice %2 {offsets = [2, 0, 1, 0], sizes = [1, 2, 4, 128], strides = [1, 1, 1, 1]} : vector<4x3x5x128xf32> to vector<1x2x4x128xf32>
    %39 = vector.shape_cast %38 : vector<1x2x4x128xf32> to vector<2x4x128xf32>
    %40 = vector.extract_strided_slice %3 {offsets = [5, 0], sizes = [1, 128], strides = [1, 1]} : vector<9x128xf32> to vector<1x128xf32>
    %41 = vector.shape_cast %40 : vector<1x128xf32> to vector<1x1x128xf32>
    %42 = vector.broadcast %41 : vector<1x1x128xf32> to vector<2x4x128xf32>
    %43 = arith.mulf %39, %42 : vector<2x4x128xf32>
    %44 = arith.addf %37, %43 : vector<2x4x128xf32>
    %45 = vector.extract_strided_slice %2 {offsets = [0, 1, 0, 0], sizes = [1, 2, 4, 128], strides = [1, 1, 1, 1]} : vector<4x3x5x128xf32> to vector<1x2x4x128xf32>
    %46 = vector.shape_cast %45 : vector<1x2x4x128xf32> to vector<2x4x128xf32>
    %47 = vector.extract_strided_slice %3 {offsets = [6, 0], sizes = [1, 128], strides = [1, 1]} : vector<9x128xf32> to vector<1x128xf32>
    %48 = vector.shape_cast %47 : vector<1x128xf32> to vector<1x1x128xf32>
    %49 = vector.broadcast %48 : vector<1x1x128xf32> to vector<2x4x128xf32>
    %50 = arith.mulf %46, %49 : vector<2x4x128xf32>
    %51 = arith.addf %44, %50 : vector<2x4x128xf32>
    %52 = vector.extract_strided_slice %2 {offsets = [1, 1, 0, 0], sizes = [1, 2, 4, 128], strides = [1, 1, 1, 1]} : vector<4x3x5x128xf32> to vector<1x2x4x128xf32>
    %53 = vector.shape_cast %52 : vector<1x2x4x128xf32> to vector<2x4x128xf32>
    %54 = vector.extract_strided_slice %3 {offsets = [7, 0], sizes = [1, 128], strides = [1, 1]} : vector<9x128xf32> to vector<1x128xf32>
    %55 = vector.shape_cast %54 : vector<1x128xf32> to vector<1x1x128xf32>
    %56 = vector.broadcast %55 : vector<1x1x128xf32> to vector<2x4x128xf32>
    %57 = arith.mulf %53, %56 : vector<2x4x128xf32>
    %58 = arith.addf %51, %57 : vector<2x4x128xf32>
    %59 = vector.extract_strided_slice %2 {offsets = [0, 1, 1, 0], sizes = [1, 2, 4, 128], strides = [1, 1, 1, 1]} : vector<4x3x5x128xf32> to vector<1x2x4x128xf32>
    %60 = vector.shape_cast %59 : vector<1x2x4x128xf32> to vector<2x4x128xf32>
    %61 = vector.extract_strided_slice %3 {offsets = [8, 0], sizes = [1, 128], strides = [1, 1]} : vector<9x128xf32> to vector<1x128xf32>
    %62 = vector.shape_cast %61 : vector<1x128xf32> to vector<1x1x128xf32>
    %63 = vector.broadcast %62 : vector<1x1x128xf32> to vector<2x4x128xf32>
    %64 = arith.mulf %60, %63 : vector<2x4x128xf32>
    %65 = arith.addf %58, %64 : vector<2x4x128xf32>
    %66 = vector.shape_cast %65 : vector<2x4x128xf32> to vector<8x128xf32>
    %c0_6 = arith.constant 0 : index
    %c0_7 = arith.constant 0 : index
    %67 = vector.load %arg3[%c0_6, %c0_7] : memref<1x128xf32, #tpu.memory_space<vmem>>, vector<1x128xf32>
    %68 = vector.broadcast %67 : vector<1x128xf32> to vector<8x128xf32>
    %69 = arith.mulf %66, %68 : vector<8x128xf32>
    %c0_8 = arith.constant 0 : index
    %c0_9 = arith.constant 0 : index
    %70 = vector.load %arg4[%c0_8, %c0_9] : memref<1x128xf32, #tpu.memory_space<vmem>>, vector<1x128xf32>
    %71 = vector.broadcast %70 : vector<1x128xf32> to vector<8x128xf32>
    %72 = arith.addf %69, %71 : vector<8x128xf32>
    %cst = arith.constant 0.000000e+00 : f32
    %73 = vector.broadcast %cst : f32 to vector<8x128xf32>
    %74 = arith.subf %73, %72 : vector<8x128xf32>
    %cst_10 = arith.constant 6.000000e+01 : f32
    %75 = vector.broadcast %cst_10 : f32 to vector<8x128xf32>
    %76 = arith.minimumf %74, %75 : vector<8x128xf32>
    %77 = math.exp %76 : vector<8x128xf32>
    %cst_11 = arith.constant 1.000000e+00 : f32
    %78 = vector.broadcast %cst_11 : f32 to vector<8x128xf32>
    %79 = arith.addf %78, %77 : vector<8x128xf32>
    %80 = tpu.reciprocal %79 {approx = true} : vector<8x128xf32> -> vector<8x128xf32>
    %81 = arith.mulf %72, %80 : vector<8x128xf32>
    %cst_12 = arith.constant dense<0.000000e+00> : vector<128xf32>
    %82 = vector.multi_reduction <add>, %81, %cst_12 [0] : vector<8x128xf32> to vector<128xf32>
    %83 = vector.shape_cast %82 : vector<128xf32> to vector<1x128xf32>
    %cst_13 = arith.constant 8.000000e+00 : f32
    %84 = vector.broadcast %cst_13 : f32 to vector<1x128xf32>
    %85 = arith.divf %83, %84 : vector<1x128xf32>
    %c0_14 = arith.constant 0 : index
    %c0_15 = arith.constant 0 : index
    %86 = vector.load %arg5[%c0_14, %c0_15] : memref<128x128xf32, #tpu.memory_space<vmem>>, vector<128x128xf32>
    %cst_16 = arith.constant dense<0.000000e+00> : vector<1x128xf32>
    %87 = tpu.matmul %85, %86, %cst_16 {dimension_numbers = #tpu.dot_dimension_numbers<[1], [0], [0], [1], [0, 0, 1, 1], [], []>} : vector<1x128xf32>, vector<128x128xf32>, vector<1x128xf32> -> vector<1x128xf32>
    %c0_17 = arith.constant 0 : index
    %c0_18 = arith.constant 0 : index
    %88 = vector.load %arg6[%c0_17, %c0_18] : memref<1x128xf32, #tpu.memory_space<vmem>>, vector<1x128xf32>
    %89 = arith.addf %87, %88 : vector<1x128xf32>
    %cst_19 = arith.constant 0.000000e+00 : f32
    %90 = vector.broadcast %cst_19 : f32 to vector<1x128xf32>
    %91 = arith.subf %90, %89 : vector<1x128xf32>
    %cst_20 = arith.constant 6.000000e+01 : f32
    %92 = vector.broadcast %cst_20 : f32 to vector<1x128xf32>
    %93 = arith.minimumf %91, %92 : vector<1x128xf32>
    %94 = math.exp %93 : vector<1x128xf32>
    %cst_21 = arith.constant 1.000000e+00 : f32
    %95 = vector.broadcast %cst_21 : f32 to vector<1x128xf32>
    %96 = arith.addf %95, %94 : vector<1x128xf32>
    %97 = tpu.reciprocal %96 {approx = true} : vector<1x128xf32> -> vector<1x128xf32>
    %98 = arith.mulf %89, %97 : vector<1x128xf32>
    %c0_22 = arith.constant 0 : index
    %c0_23 = arith.constant 0 : index
    %99 = vector.load %arg7[%c0_22, %c0_23] : memref<128x128xf32, #tpu.memory_space<vmem>>, vector<128x128xf32>
    %cst_24 = arith.constant dense<0.000000e+00> : vector<1x128xf32>
    %100 = tpu.matmul %98, %99, %cst_24 {dimension_numbers = #tpu.dot_dimension_numbers<[1], [0], [0], [1], [0, 0, 1, 1], [], []>} : vector<1x128xf32>, vector<128x128xf32>, vector<1x128xf32> -> vector<1x128xf32>
    %c0_25 = arith.constant 0 : index
    %c0_26 = arith.constant 0 : index
    %101 = vector.load %arg8[%c0_25, %c0_26] : memref<1x128xf32, #tpu.memory_space<vmem>>, vector<1x128xf32>
    %102 = arith.addf %100, %101 : vector<1x128xf32>
    %cst_27 = arith.constant 0.000000e+00 : f32
    %103 = vector.broadcast %cst_27 : f32 to vector<1x128xf32>
    %104 = arith.subf %103, %102 : vector<1x128xf32>
    %cst_28 = arith.constant 6.000000e+01 : f32
    %105 = vector.broadcast %cst_28 : f32 to vector<1x128xf32>
    %106 = arith.minimumf %104, %105 : vector<1x128xf32>
    %107 = math.exp %106 : vector<1x128xf32>
    %cst_29 = arith.constant 1.000000e+00 : f32
    %108 = vector.broadcast %cst_29 : f32 to vector<1x128xf32>
    %109 = arith.addf %108, %107 : vector<1x128xf32>
    %110 = tpu.reciprocal %109 {approx = true} : vector<1x128xf32> -> vector<1x128xf32>
    %111 = vector.broadcast %110 : vector<1x128xf32> to vector<8x128xf32>
    %112 = arith.mulf %81, %111 : vector<8x128xf32>
    %113 = arith.truncf %112 : vector<8x128xf32> to vector<8x128xbf16>
    %c0_30 = arith.constant 0 : index
    %c0_31 = arith.constant 0 : index
    %114 = vector.load %arg9[%c0_30, %c0_31] : memref<128x128xbf16, #tpu.memory_space<vmem>>, vector<128x128xbf16>
    %cst_32 = arith.constant dense<0.000000e+00> : vector<8x128xf32>
    %115 = tpu.matmul %113, %114, %cst_32 {dimension_numbers = #tpu.dot_dimension_numbers<[1], [0], [0], [1], [0, 0, 1, 1], [], []>} : vector<8x128xbf16>, vector<128x128xbf16>, vector<8x128xf32> -> vector<8x128xf32>
    %c0_33 = arith.constant 0 : index
    %c0_34 = arith.constant 0 : index
    %116 = vector.load %arg10[%c0_33, %c0_34] : memref<1x128xf32, #tpu.memory_space<vmem>>, vector<1x128xf32>
    %117 = vector.broadcast %116 : vector<1x128xf32> to vector<8x128xf32>
    %118 = arith.mulf %115, %117 : vector<8x128xf32>
    %c0_35 = arith.constant 0 : index
    %c0_36 = arith.constant 0 : index
    %119 = vector.load %arg11[%c0_35, %c0_36] : memref<1x128xf32, #tpu.memory_space<vmem>>, vector<1x128xf32>
    %120 = vector.broadcast %119 : vector<1x128xf32> to vector<8x128xf32>
    %121 = arith.addf %118, %120 : vector<8x128xf32>
    %c0_37 = arith.constant 0 : index
    %c0_38 = arith.constant 0 : index
    %c0_39 = arith.constant 0 : index
    %122 = vector.load %arg12[%c0_37, %c0_38, %c0_39] : memref<1x8x128xf32, #tpu.memory_space<vmem>>, vector<1x8x128xf32>
    %123 = vector.shape_cast %122 : vector<1x8x128xf32> to vector<8x128xf32>
    %124 = vector.shape_cast %121 : vector<8x128xf32> to vector<1x8x128xf32>
    tpu.vector_store %arg12[%c0_37, %c0_38, %c0_39], %124 {strides = array<i32>} : memref<1x8x128xf32, #tpu.memory_space<vmem>>, vector<1x8x128xf32>,
    return
  }
  func.func @transform_0(%arg0: i32) -> (i32, i32, i32, i32, i32) {
    %c0_i32 = arith.constant 0 : i32
    %c0_i32_0 = arith.constant 0 : i32
    %c0_i32_1 = arith.constant 0 : i32
    %c0_i32_2 = arith.constant 0 : i32
    %c0_i32_3 = arith.constant 0 : i32
    return %arg0, %c0_i32, %c0_i32_0, %c0_i32_1, %c0_i32_2 : i32, i32, i32, i32, i32
  }
  func.func @transform_1(%arg0: i32) -> (i32, i32) {
    %c0_i32 = arith.constant 0 : i32
    %c0_i32_0 = arith.constant 0 : i32
    %c0_i32_1 = arith.constant 0 : i32
    return %c0_i32, %c0_i32_0 : i32, i32
  }
  func.func @transform_2(%arg0: i32) -> (i32, i32) {
    %c0_i32 = arith.constant 0 : i32
    %c0_i32_0 = arith.constant 0 : i32
    %c0_i32_1 = arith.constant 0 : i32
    return %c0_i32, %c0_i32_0 : i32, i32
  }
  func.func @transform_3(%arg0: i32) -> (i32, i32) {
    %c0_i32 = arith.constant 0 : i32
    %c0_i32_0 = arith.constant 0 : i32
    %c0_i32_1 = arith.constant 0 : i32
    return %c0_i32, %c0_i32_0 : i32, i32
  }
  func.func @transform_4(%arg0: i32) -> (i32, i32) {
    %c0_i32 = arith.constant 0 : i32
    %c0_i32_0 = arith.constant 0 : i32
    %c0_i32_1 = arith.constant 0 : i32
    return %c0_i32, %c0_i32_0 : i32, i32
  }
  func.func @transform_5(%arg0: i32) -> (i32, i32) {
    %c0_i32 = arith.constant 0 : i32
    %c0_i32_0 = arith.constant 0 : i32
    %c0_i32_1 = arith.constant 0 : i32
    return %c0_i32, %c0_i32_0 : i32, i32
  }
  func.func @transform_6(%arg0: i32) -> (i32, i32) {
    %c0_i32 = arith.constant 0 : i32
    %c0_i32_0 = arith.constant 0 : i32
    %c0_i32_1 = arith.constant 0 : i32
    return %c0_i32, %c0_i32_0 : i32, i32
  }
  func.func @transform_7(%arg0: i32) -> (i32, i32) {
    %c0_i32 = arith.constant 0 : i32
    %c0_i32_0 = arith.constant 0 : i32
    %c0_i32_1 = arith.constant 0 : i32
    return %c0_i32, %c0_i32_0 : i32, i32
  }
  func.func @transform_8(%arg0: i32) -> (i32, i32) {
    %c0_i32 = arith.constant 0 : i32
    %c0_i32_0 = arith.constant 0 : i32
    %c0_i32_1 = arith.constant 0 : i32
    return %c0_i32, %c0_i32_0 : i32, i32
  }
  func.func @transform_9(%arg0: i32) -> (i32, i32) {
    %c0_i32 = arith.constant 0 : i32
    %c0_i32_0 = arith.constant 0 : i32
    %c0_i32_1 = arith.constant 0 : i32
    return %c0_i32, %c0_i32_0 : i32, i32
  }
  func.func @transform_10(%arg0: i32) -> (i32, i32) {
    %c0_i32 = arith.constant 0 : i32
    %c0_i32_0 = arith.constant 0 : i32
    %c0_i32_1 = arith.constant 0 : i32
    return %c0_i32, %c0_i32_0 : i32, i32
  }
  func.func @transform_11(%arg0: i32) -> (i32, i32, i32) {
    %c0_i32 = arith.constant 0 : i32
    %c0_i32_0 = arith.constant 0 : i32
    %c0_i32_1 = arith.constant 0 : i32
    return %arg0, %c0_i32, %c0_i32_0 : i32, i32, i32
  }
}

</mosaic_0001>

<llo_original>
// kernel: efficientnet_b3_forward.4
$region0: #{efficientnet_b3_forward.4}
  #allocation0 [shape = 'u32[]', space=smem, size = 0x4, offset = 0x4, fixed_abs, tag = 'smem constant byte address 0x4 - core index']
  #allocation1 [shape = 'u32[72,128]{1,0:T(1,128)}', space=vmem, size = 0x9000, scoped, tag = 'internal scratch']
  %s0 = inlined_call_operand.vmem [shape: bf16[1024,27], index: 0, kind: input, shape index: {}]
  %s1 = inlined_call_operand.vmem [shape: bf16[27,128], index: 1, kind: input, shape index: {}]
  %s2 = inlined_call_operand.vmem [shape: f32[1,128], index: 2, kind: input, shape index: {}]
  %s3 = inlined_call_operand.vmem [shape: f32[1,128], index: 3, kind: input, shape index: {}]
  %s4 = inlined_call_operand.vmem [shape: bf16[1024,128], index: 4, kind: output, shape index: {}]
  %s5 = sld [smem:[#allocation0]]
  $region49: #{efficientnet_b3_forward.4} parent=0
    _
  %s7 = ssub.s32 1, %s5
  %s8 = scalar_select 0, %s7, %s5
  loop: start=0, step=1, limit=4
  $region2: #{efficientnet_b3_forward.4} parent=0 // loop_pre_header
    _
  $region3: #{efficientnet_b3_forward.4} parent=0 // loop_header
    %s10 = sphi 0, %s14
    %p11 = scmp.ge.s32.totalorder %s10, 4
    %s20 = sphi 0, %s22
    %s23 = sphi 0, %s20
    %s24 = sphi 0, %s23
    %s40 = sphi 0, %s24
    %s44 = sphi 0, %s44
    %s46 = sphi 0, %s44
    %s47 = sphi 0, %s46
    %s61 = sphi 0, %s47
    %s65 = sphi 0, %s65
    %s67 = sphi 0, %s65
    %s68 = sphi 0, %s67
    %s82 = sphi 0, %s68
    %s86 = sphi 0, %s86
    %s88 = sphi 0, %s86
    %s89 = sphi 0, %s88
    %s103 = sphi 0, %s89
    %s109 = sphi 0, %s111
    %s112 = sphi 0, %s109
    %s113 = sphi 0, %s112
    %s129 = sphi 0, %s113
  $region4: #{efficientnet_b3_forward.4} parent=0 // loop_header_branch
    %13 = sbr.rel (%p11) target = $region8
  $region5: #{efficientnet_b3_forward.4} parent=0 // loop_body
    %s15 = ssub.s32 %s10, 1
    %s16 = ssub.s32 %s10, 2
    %s17 = sadd.s32 %s10, 1
    %s18 = ssub.s32 %s10, %s17
    %p19 = scmp.eq.s32.totalorder %s18, 0
    %s21 = sadd.s32 %s20, 1
    %s22 = scalar_select %p19, %s20, %s21
    %p25 = pneg %p19
    %p26 = scmp.eq.s32.totalorder %s10, 1
    %p27 = por %p25, %p26
    %p28 = scmp.ne.s32.totalorder %s20, %s23
    %p29 = scmp.eq.s32.totalorder %s10, 0
    %p30 = por %p28, %p29
    %p31 = scmp.ne.s32.totalorder %s20, %s23
    %p32 = scmp.eq.s32.totalorder %s15, 1
    %p33 = por %p31, %p32
    %p34 = scmp.ne.s32.totalorder %s23, %s24
    %p35 = scmp.eq.s32.totalorder %s15, 0
    %p36 = por %p34, %p35
    %p37 = scmp.ne.s32.totalorder %s23, %s24
    %p38 = scmp.eq.s32.totalorder %s16, 1
    %p39 = por %p37, %p38
    %p41 = scmp.ne.s32.totalorder %s24, %s40
    %p42 = scmp.eq.s32.totalorder %s16, 0
    %p43 = por %p41, %p42
    %s45 = sadd.s32 %s44, 1
    %p48 = scmp.eq.s32.totalorder %s10, 1
    %p49 = scmp.ne.s32.totalorder %s44, %s46
    %p50 = scmp.eq.s32.totalorder %s10, 0
    %p51 = por %p49, %p50
    %p52 = scmp.ne.s32.totalorder %s44, %s46
    %p53 = scmp.eq.s32.totalorder %s15, 1
    %p54 = por %p52, %p53
    %p55 = scmp.ne.s32.totalorder %s46, %s47
    %p56 = scmp.eq.s32.totalorder %s15, 0
    %p57 = por %p55, %p56
    %p58 = scmp.ne.s32.totalorder %s46, %s47
    %p59 = scmp.eq.s32.totalorder %s16, 1
    %p60 = por %p58, %p59
    %p62 = scmp.ne.s32.totalorder %s47, %s61
    %p63 = scmp.eq.s32.totalorder %s16, 0
    %p64 = por %p62, %p63
    %s66 = sadd.s32 %s65, 1
    %p69 = scmp.eq.s32.totalorder %s10, 1
    %p70 = scmp.ne.s32.totalorder %s65, %s67
    %p71 = scmp.eq.s32.totalorder %s10, 0
    %p72 = por %p70, %p71
    %p73 = scmp.ne.s32.totalorder %s65, %s67
    %p74 = scmp.eq.s32.totalorder %s15, 1
    %p75 = por %p73, %p74
    %p76 = scmp.ne.s32.totalorder %s67, %s68
    %p77 = scmp.eq.s32.totalorder %s15, 0
    %p78 = por %p76, %p77
    %p79 = scmp.ne.s32.totalorder %s67, %s68
    %p80 = scmp.eq.s32.totalorder %s16, 1
    %p81 = por %p79, %p80
    %p83 = scmp.ne.s32.totalorder %s68, %s82
    %p84 = scmp.eq.s32.totalorder %s16, 0
    %p85 = por %p83, %p84
    %s87 = sadd.s32 %s86, 1
    %p90 = scmp.eq.s32.totalorder %s10, 1
    %p91 = scmp.ne.s32.totalorder %s86, %s88
    %p92 = scmp.eq.s32.totalorder %s10, 0
    %p93 = por %p91, %p92
    %p94 = scmp.ne.s32.totalorder %s86, %s88
    %p95 = scmp.eq.s32.totalorder %s15, 1
    %p96 = por %p94, %p95
    %p97 = scmp.ne.s32.totalorder %s88, %s89
    %p98 = scmp.eq.s32.totalorder %s15, 0
    %p99 = por %p97, %p98
    %p100 = scmp.ne.s32.totalorder %s88, %s89
    %p101 = scmp.eq.s32.totalorder %s16, 1
    %p102 = por %p100, %p101
    %p104 = scmp.ne.s32.totalorder %s89, %s103
    %p105 = scmp.eq.s32.totalorder %s16, 0
    %p106 = por %p104, %p105
    %s107 = ssub.s32 %s10, %s17
    %p108 = scmp.eq.s32.totalorder %s107, 0
    %s110 = sadd.s32 %s109, 1
    %s111 = scalar_select %p108, %s109, %s110
    %p114 = pneg %p108
    %p115 = scmp.eq.s32.totalorder %s10, 1
    %p116 = por %p114, %p115
    %p117 = scmp.ne.s32.totalorder %s109, %s112
    %p118 = scmp.eq.s32.totalorder %s10, 0
    %p119 = por %p117, %p118
    %p120 = scmp.ne.s32.totalorder %s109, %s112
    %p121 = scmp.eq.s32.totalorder %s15, 1
    %p122 = por %p120, %p121
    %p123 = scmp.ne.s32.totalorder %s112, %s113
    %p124 = scmp.eq.s32.totalorder %s15, 0
    %p125 = por %p123, %p124
    %p126 = scmp.ne.s32.totalorder %s112, %s113
    %p127 = scmp.eq.s32.totalorder %s16, 1
    %p128 = por %p126, %p127
    %p130 = scmp.ne.s32.totalorder %s113, %s129
    %p131 = scmp.eq.s32.totalorder %s16, 0
    %p132 = por %p130, %p131
    %p133 = scmp.le.s32.totalorder 1, %s10
    %p134 = scmp.lt.s32.totalorder %s10, 3
    %p135 = pnand %p133, %p134
    %p136 = pneg %p135
    // Predicated region
    $region9: #{efficientnet_b3_forward.4} parent=5 // pred_check
      _
    $region10: #{efficientnet_b3_forward.4} parent=5 // pred_check_branch
      %138 = sbr.rel (%p135) target = $region12
    $region11: #{efficientnet_b3_forward.4} parent=5 // pred_region
      %s139 = ssub.s32 %s10, 1
      // Predicated region
      $region13: #{efficientnet_b3_forward.4} parent=11 // pred_check
        %p140 = pneg %p57
      $region14: #{efficientnet_b3_forward.4} parent=11 // pred_check_branch
        %142 = sbr.rel (%p140) target = $region16
      $region15: #{efficientnet_b3_forward.4} parent=11 // pred_region
        _
      $region16: #{efficientnet_b3_forward.4} parent=11 // pred_fallthru
        _
      // Predicated region
      $region17: #{efficientnet_b3_forward.4} parent=11 // pred_check
        %p143 = pneg %p78
      $region18: #{efficientnet_b3_forward.4} parent=11 // pred_check_branch
        %145 = sbr.rel (%p143) target = $region20
      $region19: #{efficientnet_b3_forward.4} parent=11 // pred_region
        _
      $region20: #{efficientnet_b3_forward.4} parent=11 // pred_fallthru
        _
      // Predicated region
      $region21: #{efficientnet_b3_forward.4} parent=11 // pred_check
        %p146 = pneg %p99
      $region22: #{efficientnet_b3_forward.4} parent=11 // pred_check_branch
        %148 = sbr.rel (%p146) target = $region24
      $region23: #{efficientnet_b3_forward.4} parent=11 // pred_region
        _
      $region24: #{efficientnet_b3_forward.4} parent=11 // pred_fallthru
        _
    $region12: #{efficientnet_b3_forward.4} parent=5 // pred_fallthru
      _
    %p149 = scmp.lt.s32.totalorder %s10, 2
    // Predicated region
    $region25: #{efficientnet_b3_forward.4} parent=5 // pred_check
      %p150 = pneg %p149
    $region26: #{efficientnet_b3_forward.4} parent=5 // pred_check_branch
      %152 = sbr.rel (%p150) target = $region28
    $region27: #{efficientnet_b3_forward.4} parent=5 // pred_region
      // Predicated region
      $region29: #{efficientnet_b3_forward.4} parent=27 // pred_check
        %p153 = pneg %p30
      $region30: #{efficientnet_b3_forward.4} parent=27 // pred_check_branch
        %155 = sbr.rel (%p153) target = $region32
      $region31: #{efficientnet_b3_forward.4} parent=27 // pred_region
        %s156 = smul.u32 64, %s10
        %p157 = scmp.lt.s32.totalorder %s156, 127
        %s158 = scalar_select %p157, %s156, 127
        %s159 = smul.addr %s158, 4
        %s160 = scalar_lea.vmem %s0, %s159
        %s161 = smul.u32 64, %s10
      $region32: #{efficientnet_b3_forward.4} parent=27 // pred_fallthru
        _
    $region28: #{efficientnet_b3_forward.4} parent=5 // pred_fallthru
      _
    %p162 = scmp.le.s32.totalorder 1, %s10
    %p163 = scmp.lt.s32.totalorder %s10, 3
    %p164 = pnand %p162, %p163
    %p165 = pneg %p164
    // Predicated region
    $region33: #{efficientnet_b3_forward.4} parent=5 // pred_check
      _
    $region34: #{efficientnet_b3_forward.4} parent=5 // pred_check_branch
      %167 = sbr.rel (%p164) target = $region36
    $region35: #{efficientnet_b3_forward.4} parent=5 // pred_region
      %s168 = ssub.s32 %s10, 1
      %s169 = smul.u32 64, %s15
      %p170 = scmp.lt.s32.totalorder %s169, 127
      %s171 = scalar_select %p170, %s169, 127
      %s172 = smul.addr %s171, 4
      %s173 = scalar_lea.vmem %s0, %s172
      %p174 = pneg %p36
      %p175 = pneg %p33
      %p176 = pneg %p57
      %p177 = pneg %p54
      %p178 = pneg %p78
      %p179 = pneg %p75
      %p180 = pneg %p99
      %p181 = pneg %p96
      %p182 = pneg %p125
      %p183 = pneg %p122
      %s184 = smul.u32 64, %s15
      %p185 = scmp.lt.s32.totalorder %s184, 127
      %s186 = scalar_select %p185, %s184, 127
      %s187 = smul.addr %s186, 4
      %s188 = scalar_lea.vmem %s4, %s187
      %s189 = smul.u32 64, %s15
      %p190 = scmp.lt.s32.totalorder %s189, 127
      %s191 = scalar_select %p190, %s189, 127
      %s192 = smul.addr %s191, 4
      %s193 = scalar_lea.vmem %s0, %s192
      %s194 = smul.u32 64, %s15
      %s195 = smul.u32 64, %s15
      %p196 = scmp.lt.s32.totalorder %s195, 127
      %s197 = scalar_select %p196, %s195, 127
      %s198 = smul.addr %s197, 4
      %s199 = scalar_lea.vmem %s4, %s198
      %s200 = smul.u32 64, %s15
      %v202 = vld [vmem:[%s193] sm:$0xf]
      %v203 = vld [vmem:[%s193 + $0x4] sm:$0xf]
      %v204 = vld [vmem:[%s193 + $0x8] sm:$0xf]
      %v205 = vld [vmem:[%s193 + $0xc] sm:$0xf]
      %v206 = vld [vmem:[%s193 + $0x10] sm:$0xf]
      %v207 = vld [vmem:[%s193 + $0x14] sm:$0xf]
      %v208 = vld [vmem:[%s193 + $0x18] sm:$0xf]
      %v209 = vld [vmem:[%s193 + $0x1c] sm:$0xf]
      %v210 = vld [vmem:[%s193 + $0x20] sm:$0xf]
      %v211 = vld [vmem:[%s193 + $0x24] sm:$0xf]
      %v212 = vld [vmem:[%s193 + $0x28] sm:$0xf]
      %v213 = vld [vmem:[%s193 + $0x2c] sm:$0xf]
      %v214 = vld [vmem:[%s193 + $0x30] sm:$0xf]
      %v215 = vld [vmem:[%s193 + $0x34] sm:$0xf]
      %v216 = vld [vmem:[%s193 + $0x38] sm:$0xf]
      %v217 = vld [vmem:[%s193 + $0x3c] sm:$0xf]
      %v218 = vld [vmem:[%s193 + $0x40] sm:$0xf]
      %v219 = vld [vmem:[%s193 + $0x44] sm:$0xf]
      %v220 = vld [vmem:[%s193 + $0x48] sm:$0xf]
      %v221 = vld [vmem:[%s193 + $0x4c] sm:$0xf]
      %v222 = vld [vmem:[%s193 + $0x50] sm:$0xf]
      %v223 = vld [vmem:[%s193 + $0x54] sm:$0xf]
      %v224 = vld [vmem:[%s193 + $0x58] sm:$0xf]
      %v225 = vld [vmem:[%s193 + $0x5c] sm:$0xf]
      %v226 = vld [vmem:[%s193 + $0x60] sm:$0xf]
      %v227 = vld [vmem:[%s193 + $0x64] sm:$0xf]
      %v228 = vld [vmem:[%s193 + $0x68] sm:$0xf]
      %v229 = vld [vmem:[%s193 + $0x6c] sm:$0xf]
      %v230 = vld [vmem:[%s193 + $0x70] sm:$0xf]
      %v231 = vld [vmem:[%s193 + $0x74] sm:$0xf]
      %v232 = vld [vmem:[%s193 + $0x78] sm:$0xf]
      %v233 = vld [vmem:[%s193 + $0x7c] sm:$0xf]
      %v234 = vld [vmem:[%s193 + $0x80] sm:$0xf]
      %v235 = vld [vmem:[%s193 + $0x84] sm:$0xf]
      %v236 = vld [vmem:[%s193 + $0x88] sm:$0xf]
      %v237 = vld [vmem:[%s193 + $0x8c] sm:$0xf]
      %v238 = vld [vmem:[%s193 + $0x90] sm:$0xf]
      %v239 = vld [vmem:[%s193 + $0x94] sm:$0xf]
      %v240 = vld [vmem:[%s193 + $0x98] sm:$0xf]
      %v241 = vld [vmem:[%s193 + $0x9c] sm:$0xf]
      %v242 = vld [vmem:[%s193 + $0xa0] sm:$0xf]
      %v243 = vld [vmem:[%s193 + $0xa4] sm:$0xf]
      %v244 = vld [vmem:[%s193 + $0xa8] sm:$0xf]
      %v245 = vld [vmem:[%s193 + $0xac] sm:$0xf]
      %v246 = vld [vmem:[%s193 + $0xb0] sm:$0xf]
      %v247 = vld [vmem:[%s193 + $0xb4] sm:$0xf]
      %v248 = vld [vmem:[%s193 + $0xb8] sm:$0xf]
      %v249 = vld [vmem:[%s193 + $0xbc] sm:$0xf]
      %v250 = vld [vmem:[%s193 + $0xc0] sm:$0xf]
      %v251 = vld [vmem:[%s193 + $0xc4] sm:$0xf]
      %v252 = vld [vmem:[%s193 + $0xc8] sm:$0xf]
      %v253 = vld [vmem:[%s193 + $0xcc] sm:$0xf]
      %v254 = vld [vmem:[%s193 + $0xd0] sm:$0xf]
      %v255 = vld [vmem:[%s193 + $0xd4] sm:$0xf]
      %v256 = vld [vmem:[%s193 + $0xd8] sm:$0xf]
      %v257 = vld [vmem:[%s193 + $0xdc] sm:$0xf]
      %v258 = vld [vmem:[%s193 + $0xe0] sm:$0xf]
      %v259 = vld [vmem:[%s193 + $0xe4] sm:$0xf]
      %v260 = vld [vmem:[%s193 + $0xe8] sm:$0xf]
      %v261 = vld [vmem:[%s193 + $0xec] sm:$0xf]
      %v262 = vld [vmem:[%s193 + $0xf0] sm:$0xf]
      %v263 = vld [vmem:[%s193 + $0xf4] sm:$0xf]
      %v264 = vld [vmem:[%s193 + $0xf8] sm:$0xf]
      %v265 = vld [vmem:[%s193 + $0xfc] sm:$0xf]
      %v266 = vld [vmem:[%s1] sm:$0xf]
      %v267 = vld [vmem:[%s1 + $0x4] sm:$0xf]
      %v268 = vld [vmem:[%s1 + $0x8] sm:$0xf]
      %v269 = vld [vmem:[%s1 + $0xc] sm:$0x3]
      %v334 = vunpack.c.l.b16 %v202
      %v335 = vunpack.c.l.b16 %v203
      %v336 = vunpack.c.l.b16 %v204
      %v337 = vunpack.c.l.b16 %v205
      %v338 = vunpack.c.l.b16 %v206
      %v339 = vunpack.c.l.b16 %v207
      %v340 = vunpack.c.l.b16 %v208
      %v341 = vunpack.c.l.b16 %v209
      %v342 = vunpack.c.l.b16 %v210
      %v343 = vunpack.c.l.b16 %v211
      %v344 = vunpack.c.l.b16 %v212
      %v345 = vunpack.c.l.b16 %v213
      %v346 = vunpack.c.l.b16 %v214
      %v347 = vunpack.c.l.b16 %v215
      %v348 = vunpack.c.l.b16 %v216
      %v349 = vunpack.c.l.b16 %v217
      %v350 = vunpack.c.l.b16 %v218
      %v351 = vunpack.c.l.b16 %v219
      %v352 = vunpack.c.l.b16 %v220
      %v353 = vunpack.c.l.b16 %v221
      %v354 = vunpack.c.l.b16 %v222
      %v355 = vunpack.c.l.b16 %v223
      %v356 = vunpack.c.l.b16 %v224
      %v357 = vunpack.c.l.b16 %v225
      %v358 = vunpack.c.l.b16 %v226
      %v359 = vunpack.c.l.b16 %v227
      %v360 = vunpack.c.l.b16 %v228
      %v361 = vunpack.c.l.b16 %v229
      %v362 = vunpack.c.l.b16 %v230
      %v363 = vunpack.c.l.b16 %v231
      %v364 = vunpack.c.l.b16 %v232
      %v365 = vunpack.c.l.b16 %v233
      %v366 = vunpack.c.l.b16 %v234
      %v367 = vunpack.c.l.b16 %v235
      %v368 = vunpack.c.l.b16 %v236
      %v369 = vunpack.c.l.b16 %v237
      %v370 = vunpack.c.l.b16 %v238
      %v371 = vunpack.c.l.b16 %v239
      %v372 = vunpack.c.l.b16 %v240
      %v373 = vunpack.c.l.b16 %v241
      %v374 = vunpack.c.l.b16 %v242
      %v375 = vunpack.c.l.b16 %v243
      %v376 = vunpack.c.l.b16 %v244
      %v377 = vunpack.c.l.b16 %v245
      %v378 = vunpack.c.l.b16 %v246
      %v379 = vunpack.c.l.b16 %v247
      %v380 = vunpack.c.l.b16 %v248
      %v381 = vunpack.c.l.b16 %v249
      %v382 = vunpack.c.l.b16 %v250
      %v383 = vunpack.c.l.b16 %v251
      %v384 = vunpack.c.l.b16 %v252
      %v385 = vunpack.c.l.b16 %v253
      %v386 = vunpack.c.l.b16 %v254
      %v387 = vunpack.c.l.b16 %v255
      %v388 = vunpack.c.l.b16 %v256
      %v389 = vunpack.c.l.b16 %v257
      %v390 = vunpack.c.l.b16 %v258
      %v391 = vunpack.c.l.b16 %v259
      %v392 = vunpack.c.l.b16 %v260
      %v393 = vunpack.c.l.b16 %v261
      %v394 = vunpack.c.l.b16 %v262
      %v395 = vunpack.c.l.b16 %v263
      %v396 = vunpack.c.l.b16 %v264
      %v397 = vunpack.c.l.b16 %v265
      %v398 = vpack.c.b16 %v335, %v334
      %v399 = vpack.c.b16 %v337, %v336
      %v400 = vpack.c.b16 %v339, %v338
      %v401 = vpack.c.b16 %v341, %v340
      %v402 = vpack.c.b16 %v343, %v342
      %v403 = vpack.c.b16 %v345, %v344
      %v404 = vpack.c.b16 %v347, %v346
      %v405 = vpack.c.b16 %v349, %v348
      %v406 = vpack.c.b16 %v351, %v350
      %v407 = vpack.c.b16 %v353, %v352
      %v408 = vpack.c.b16 %v355, %v354
      %v409 = vpack.c.b16 %v357, %v356
      %v410 = vpack.c.b16 %v359, %v358
      %v411 = vpack.c.b16 %v361, %v360
      %v412 = vpack.c.b16 %v363, %v362
      %v413 = vpack.c.b16 %v365, %v364
      %v414 = vpack.c.b16 %v367, %v366
      %v415 = vpack.c.b16 %v369, %v368
      %v416 = vpack.c.b16 %v371, %v370
      %v417 = vpack.c.b16 %v373, %v372
      %v418 = vpack.c.b16 %v375, %v374
      %v419 = vpack.c.b16 %v377, %v376
      %v420 = vpack.c.b16 %v379, %v378
      %v421 = vpack.c.b16 %v381, %v380
      %v422 = vpack.c.b16 %v383, %v382
      %v423 = vpack.c.b16 %v385, %v384
      %v424 = vpack.c.b16 %v387, %v386
      %v425 = vpack.c.b16 %v389, %v388
      %v426 = vpack.c.b16 %v391, %v390
      %v427 = vpack.c.b16 %v393, %v392
      %v428 = vpack.c.b16 %v395, %v394
      %v429 = vpack.c.b16 %v397, %v396
      %v434 = vunpack.c.l.b16 %v266
      %v435 = vunpack.c.l.b16 %v267
      %v436 = vunpack.c.l.b16 %v268
      %v437 = vunpack.c.l.b16 %v269
      %v438 = vpack.c.b16 %v435, %v434
      %v439 = vpack.c.b16 %v437, %v436
      %vm441 = vcmask 220160
      %v443 = vsel %vm441, %v398, 0
      %v446 = vsel %vm441, %v399, 0
      %v449 = vsel %vm441, %v400, 0
      %v452 = vsel %vm441, %v401, 0
      %v455 = vsel %vm441, %v402, 0
      %v458 = vsel %vm441, %v403, 0
      %v461 = vsel %vm441, %v404, 0
      %v464 = vsel %vm441, %v405, 0
      %v467 = vsel %vm441, %v406, 0
      %v470 = vsel %vm441, %v407, 0
      %v473 = vsel %vm441, %v408, 0
      %v476 = vsel %vm441, %v409, 0
      %v479 = vsel %vm441, %v410, 0
      %v482 = vsel %vm441, %v411, 0
      %v485 = vsel %vm441, %v412, 0
      %v488 = vsel %vm441, %v413, 0
      %v491 = vsel %vm441, %v414, 0
      %v494 = vsel %vm441, %v415, 0
      %v497 = vsel %vm441, %v416, 0
      %v500 = vsel %vm441, %v417, 0
      %v503 = vsel %vm441, %v418, 0
      %v506 = vsel %vm441, %v419, 0
      %v509 = vsel %vm441, %v420, 0
      %v512 = vsel %vm441, %v421, 0
      %v515 = vsel %vm441, %v422, 0
      %v518 = vsel %vm441, %v423, 0
      %v521 = vsel %vm441, %v424, 0
      %v524 = vsel %vm441, %v425, 0
      %v527 = vsel %vm441, %v426, 0
      %v530 = vsel %vm441, %v427, 0
      %v533 = vsel %vm441, %v428, 0
      %v536 = vsel %vm441, %v429, 0
      %vm538 = vcmask 1044480
      %vm539 = vcmask 1045504
      %v540 = vsel %vm538, 4294967295, 65535
      %v541 = vsel %vm539, %v540, 0
      %v543 = vand.u32 %v439, %v541
      %545 = vmatpush.bf16.msra.mxu0 0
      %546 = vmatpush.bf16.msra.mxu0 0
      %547 = vmatpush.bf16.msra.mxu0 0
      %548 = vmatpush.bf16.msra.mxu0 0
      %549 = vmatpush.bf16.msra.mxu0 0
      %550 = vmatpush.bf16.msra.mxu0 0
      %551 = vmatpush.bf16.msra.mxu0 %v543
      %552 = vmatpush.bf16.msra.mxu0 %v438
      %553 = vmatmul.bf16.gmra.mxu0 %v443
      %v554 = vpop.f32.mrf.mxu0
      %v555 = vadd.f32 0.0, %v554
      %v556 = vpop.f32.mrf.mxu0
      %v557 = vadd.f32 0.0, %v556
      %558 = vmatmul.bf16.gmra.mxu0 %v446
      %v559 = vpop.f32.mrf.mxu0
      %v560 = vadd.f32 0.0, %v559
      %v561 = vpop.f32.mrf.mxu0
      %v562 = vadd.f32 0.0, %v561
      %563 = vmatmul.bf16.gmra.mxu0 %v449
      %v564 = vpop.f32.mrf.mxu0
      %v565 = vadd.f32 0.0, %v564
      %v566 = vpop.f32.mrf.mxu0
      %v567 = vadd.f32 0.0, %v566
      %568 = vmatmul.bf16.gmra.mxu0 %v452
      %v569 = vpop.f32.mrf.mxu0
      %v570 = vadd.f32 0.0, %v569
      %v571 = vpop.f32.mrf.mxu0
      %v572 = vadd.f32 0.0, %v571
      %573 = vmatmul.bf16.gmra.mxu0 %v455
      %v574 = vpop.f32.mrf.mxu0
      %v575 = vadd.f32 0.0, %v574
      %v576 = vpop.f32.mrf.mxu0
      %v577 = vadd.f32 0.0, %v576
      %578 = vmatmul.bf16.gmra.mxu0 %v458
      %v579 = vpop.f32.mrf.mxu0
      %v580 = vadd.f32 0.0, %v579
      %v581 = vpop.f32.mrf.mxu0
      %v582 = vadd.f32 0.0, %v581
      %583 = vmatmul.bf16.gmra.mxu0 %v461
      %v584 = vpop.f32.mrf.mxu0
      %v585 = vadd.f32 0.0, %v584
      %v586 = vpop.f32.mrf.mxu0
      %v587 = vadd.f32 0.0, %v586
      %588 = vmatmul.bf16.gmra.mxu0 %v464
      %v589 = vpop.f32.mrf.mxu0
      %v590 = vadd.f32 0.0, %v589
      %v591 = vpop.f32.mrf.mxu0
      %v592 = vadd.f32 0.0, %v591
      %593 = vmatmul.bf16.gmra.mxu0 %v467
      %v594 = vpop.f32.mrf.mxu0
      %v595 = vadd.f32 0.0, %v594
      %v596 = vpop.f32.mrf.mxu0
      %v597 = vadd.f32 0.0, %v596
      %598 = vmatmul.bf16.gmra.mxu0 %v470
      %v599 = vpop.f32.mrf.mxu0
      %v600 = vadd.f32 0.0, %v599
      %v601 = vpop.f32.mrf.mxu0
      %v602 = vadd.f32 0.0, %v601
      %603 = vmatmul.bf16.gmra.mxu0 %v473
      %v604 = vpop.f32.mrf.mxu0
      %v605 = vadd.f32 0.0, %v604
      %v606 = vpop.f32.mrf.mxu0
      %v607 = vadd.f32 0.0, %v606
      %608 = vmatmul.bf16.gmra.mxu0 %v476
      %v609 = vpop.f32.mrf.mxu0
      %v610 = vadd.f32 0.0, %v609
      %v611 = vpop.f32.mrf.mxu0
      %v612 = vadd.f32 0.0, %v611
      %613 = vmatmul.bf16.gmra.mxu0 %v479
      %v614 = vpop.f32.mrf.mxu0
      %v615 = vadd.f32 0.0, %v614
      %v616 = vpop.f32.mrf.mxu0
      %v617 = vadd.f32 0.0, %v616
      %618 = vmatmul.bf16.gmra.mxu0 %v482
      %v619 = vpop.f32.mrf.mxu0
      %v620 = vadd.f32 0.0, %v619
      %v621 = vpop.f32.mrf.mxu0
      %v622 = vadd.f32 0.0, %v621
      %623 = vmatmul.bf16.gmra.mxu0 %v485
      %v624 = vpop.f32.mrf.mxu0
      %v625 = vadd.f32 0.0, %v624
      %v626 = vpop.f32.mrf.mxu0
      %v627 = vadd.f32 0.0, %v626
      %628 = vmatmul.bf16.gmra.mxu0 %v488
      %v629 = vpop.f32.mrf.mxu0
      %v630 = vadd.f32 0.0, %v629
      %v631 = vpop.f32.mrf.mxu0
      %v632 = vadd.f32 0.0, %v631
      %633 = vmatmul.bf16.gmra.mxu0 %v491
      %v634 = vpop.f32.mrf.mxu0
      %v635 = vadd.f32 0.0, %v634
      %v636 = vpop.f32.mrf.mxu0
      %v637 = vadd.f32 0.0, %v636
      %638 = vmatmul.bf16.gmra.mxu0 %v494
      %v639 = vpop.f32.mrf.mxu0
      %v640 = vadd.f32 0.0, %v639
      %v641 = vpop.f32.mrf.mxu0
      %v642 = vadd.f32 0.0, %v641
      %643 = vmatmul.bf16.gmra.mxu0 %v497
      %v644 = vpop.f32.mrf.mxu0
      %v645 = vadd.f32 0.0, %v644
      %v646 = vpop.f32.mrf.mxu0
      %v647 = vadd.f32 0.0, %v646
      %648 = vmatmul.bf16.gmra.mxu0 %v500
      %v649 = vpop.f32.mrf.mxu0
      %v650 = vadd.f32 0.0, %v649
      %v651 = vpop.f32.mrf.mxu0
      %v652 = vadd.f32 0.0, %v651
      %653 = vmatmul.bf16.gmra.mxu0 %v503
      %v654 = vpop.f32.mrf.mxu0
      %v655 = vadd.f32 0.0, %v654
      %v656 = vpop.f32.mrf.mxu0
      %v657 = vadd.f32 0.0, %v656
      %658 = vmatmul.bf16.gmra.mxu0 %v506
      %v659 = vpop.f32.mrf.mxu0
      %v660 = vadd.f32 0.0, %v659
      %v661 = vpop.f32.mrf.mxu0
      %v662 = vadd.f32 0.0, %v661
      %663 = vmatmul.bf16.gmra.mxu0 %v509
      %v664 = vpop.f32.mrf.mxu0
      %v665 = vadd.f32 0.0, %v664
      %v666 = vpop.f32.mrf.mxu0
      %v667 = vadd.f32 0.0, %v666
      %668 = vmatmul.bf16.gmra.mxu0 %v512
      %v669 = vpop.f32.mrf.mxu0
      %v670 = vadd.f32 0.0, %v669
      %v671 = vpop.f32.mrf.mxu0
      %v672 = vadd.f32 0.0, %v671
      %673 = vmatmul.bf16.gmra.mxu0 %v515
      %v674 = vpop.f32.mrf.mxu0
      %v675 = vadd.f32 0.0, %v674
      %v676 = vpop.f32.mrf.mxu0
      %v677 = vadd.f32 0.0, %v676
      %678 = vmatmul.bf16.gmra.mxu0 %v518
      %v679 = vpop.f32.mrf.mxu0
      %v680 = vadd.f32 0.0, %v679
      %v681 = vpop.f32.mrf.mxu0
      %v682 = vadd.f32 0.0, %v681
      %683 = vmatmul.bf16.gmra.mxu0 %v521
      %v684 = vpop.f32.mrf.mxu0
      %v685 = vadd.f32 0.0, %v684
      %v686 = vpop.f32.mrf.mxu0
      %v687 = vadd.f32 0.0, %v686
      %688 = vmatmul.bf16.gmra.mxu0 %v524
      %v689 = vpop.f32.mrf.mxu0
      %v690 = vadd.f32 0.0, %v689
      %v691 = vpop.f32.mrf.mxu0
      %v692 = vadd.f32 0.0, %v691
      %693 = vmatmul.bf16.gmra.mxu0 %v527
      %v694 = vpop.f32.mrf.mxu0
      %v695 = vadd.f32 0.0, %v694
      %v696 = vpop.f32.mrf.mxu0
      %v697 = vadd.f32 0.0, %v696
      %698 = vmatmul.bf16.gmra.mxu0 %v530
      %v699 = vpop.f32.mrf.mxu0
      %v700 = vadd.f32 0.0, %v699
      %v701 = vpop.f32.mrf.mxu0
      %v702 = vadd.f32 0.0, %v701
      %703 = vmatmul.bf16.gmra.mxu0 %v533
      %v704 = vpop.f32.mrf.mxu0
      %v705 = vadd.f32 0.0, %v704
      %v706 = vpop.f32.mrf.mxu0
      %v707 = vadd.f32 0.0, %v706
      %708 = vmatmul.bf16.gmra.mxu0 %v536
      %v709 = vpop.f32.mrf.mxu0
      %v710 = vadd.f32 0.0, %v709
      %v711 = vpop.f32.mrf.mxu0
      %v712 = vadd.f32 0.0, %v711
      %713 = vdwg.mxu0
      %v714 = vld [vmem:[%s2] sm:$0x1]
      %v716 = vperm.slane %v714, 0
      %v718 = vmul.f32 %v555, %v716
      %v719 = vmul.f32 %v557, %v716
      %v720 = vmul.f32 %v560, %v716
      %v721 = vmul.f32 %v562, %v716
      %v722 = vmul.f32 %v565, %v716
      %v723 = vmul.f32 %v567, %v716
      %v724 = vmul.f32 %v570, %v716
      %v725 = vmul.f32 %v572, %v716
      %v726 = vmul.f32 %v575, %v716
      %v727 = vmul.f32 %v577, %v716
      %v728 = vmul.f32 %v580, %v716
      %v729 = vmul.f32 %v582, %v716
      %v730 = vmul.f32 %v585, %v716
      %v731 = vmul.f32 %v587, %v716
      %v732 = vmul.f32 %v590, %v716
      %v733 = vmul.f32 %v592, %v716
      %v734 = vmul.f32 %v595, %v716
      %v735 = vmul.f32 %v597, %v716
      %v736 = vmul.f32 %v600, %v716
      %v737 = vmul.f32 %v602, %v716
      %v738 = vmul.f32 %v605, %v716
      %v739 = vmul.f32 %v607, %v716
      %v740 = vmul.f32 %v610, %v716
      %v741 = vmul.f32 %v612, %v716
      %v742 = vmul.f32 %v615, %v716
      %v743 = vmul.f32 %v617, %v716
      %v744 = vmul.f32 %v620, %v716
      %v745 = vmul.f32 %v622, %v716
      %v746 = vmul.f32 %v625, %v716
      %v747 = vmul.f32 %v627, %v716
      %v748 = vmul.f32 %v630, %v716
      %v749 = vmul.f32 %v632, %v716
      %v750 = vmul.f32 %v635, %v716
      %v751 = vmul.f32 %v637, %v716
      %v752 = vmul.f32 %v640, %v716
      %v753 = vmul.f32 %v642, %v716
      %v754 = vmul.f32 %v645, %v716
      %v755 = vmul.f32 %v647, %v716
      %v756 = vmul.f32 %v650, %v716
      %v757 = vmul.f32 %v652, %v716
      %v758 = vmul.f32 %v655, %v716
      %v759 = vmul.f32 %v657, %v716
      %v760 = vmul.f32 %v660, %v716
      %v761 = vmul.f32 %v662, %v716
      %v762 = vmul.f32 %v665, %v716
      %v763 = vmul.f32 %v667, %v716
      %v764 = vmul.f32 %v670, %v716
      %v765 = vmul.f32 %v672, %v716
      %v766 = vmul.f32 %v675, %v716
      %v767 = vmul.f32 %v677, %v716
      %v768 = vmul.f32 %v680, %v716
      %v769 = vmul.f32 %v682, %v716
      %v770 = vmul.f32 %v685, %v716
      %v771 = vmul.f32 %v687, %v716
      %v772 = vmul.f32 %v690, %v716
      %v773 = vmul.f32 %v692, %v716
      %v774 = vmul.f32 %v695, %v716
      %v775 = vmul.f32 %v697, %v716
      %v776 = vmul.f32 %v700, %v716
      %v777 = vmul.f32 %v702, %v716
      %v778 = vmul.f32 %v705, %v716
      %v779 = vmul.f32 %v707, %v716
      %v780 = vmul.f32 %v710, %v716
      %v781 = vmul.f32 %v712, %v716
      %v782 = vld [vmem:[%s3] sm:$0x1]
      %v784 = vperm.slane %v782, 0
      %v786 = vadd.f32 %v718, %v784
      %v787 = vadd.f32 %v719, %v784
      %v788 = vadd.f32 %v720, %v784
      %v789 = vadd.f32 %v721, %v784
      %v790 = vadd.f32 %v722, %v784
      %v791 = vadd.f32 %v723, %v784
      %v792 = vadd.f32 %v724, %v784
      %v793 = vadd.f32 %v725, %v784
      %v794 = vadd.f32 %v726, %v784
      %v795 = vadd.f32 %v727, %v784
      %v796 = vadd.f32 %v728, %v784
      %v797 = vadd.f32 %v729, %v784
      %v798 = vadd.f32 %v730, %v784
      %v799 = vadd.f32 %v731, %v784
      %v800 = vadd.f32 %v732, %v784
      %v801 = vadd.f32 %v733, %v784
      %v802 = vadd.f32 %v734, %v784
      %v803 = vadd.f32 %v735, %v784
      %v804 = vadd.f32 %v736, %v784
      %v805 = vadd.f32 %v737, %v784
      %v806 = vadd.f32 %v738, %v784
      %v807 = vadd.f32 %v739, %v784
      %v808 = vadd.f32 %v740, %v784
      %v809 = vadd.f32 %v741, %v784
      %v810 = vadd.f32 %v742, %v784
      %v811 = vadd.f32 %v743, %v784
      %v812 = vadd.f32 %v744, %v784
      %v813 = vadd.f32 %v745, %v784
      %v814 = vadd.f32 %v746, %v784
      %v815 = vadd.f32 %v747, %v784
      %v816 = vadd.f32 %v748, %v784
      %v817 = vadd.f32 %v749, %v784
      %v818 = vadd.f32 %v750, %v784
      %v819 = vadd.f32 %v751, %v784
      %v820 = vadd.f32 %v752, %v784
      %v821 = vadd.f32 %v753, %v784
      %v822 = vadd.f32 %v754, %v784
      %v823 = vadd.f32 %v755, %v784
      %v824 = vadd.f32 %v756, %v784
      %v825 = vadd.f32 %v757, %v784
      %v826 = vadd.f32 %v758, %v784
      %v827 = vadd.f32 %v759, %v784
      %v828 = vadd.f32 %v760, %v784
      %v829 = vadd.f32 %v761, %v784
      %v830 = vadd.f32 %v762, %v784
      %v831 = vadd.f32 %v763, %v784
      %v832 = vadd.f32 %v764, %v784
      %v833 = vadd.f32 %v765, %v784
      %v834 = vadd.f32 %v766, %v784
      %v835 = vadd.f32 %v767, %v784
      %v836 = vadd.f32 %v768, %v784
      %v837 = vadd.f32 %v769, %v784
      %v838 = vadd.f32 %v770, %v784
      %v839 = vadd.f32 %v771, %v784
      %v840 = vadd.f32 %v772, %v784
      %v841 = vadd.f32 %v773, %v784
      %v842 = vadd.f32 %v774, %v784
      %v843 = vadd.f32 %v775, %v784
      %v844 = vadd.f32 %v776, %v784
      %v845 = vadd.f32 %v777, %v784
      %v846 = vadd.f32 %v778, %v784
      %v847 = vadd.f32 %v779, %v784
      %v848 = vadd.f32 %v780, %v784
      %v849 = vadd.f32 %v781, %v784
      %v850 = vsub.f32 0.0, %v786
      %v851 = vsub.f32 0.0, %v787
      %v852 = vsub.f32 0.0, %v788
      %v853 = vsub.f32 0.0, %v789
      %v854 = vsub.f32 0.0, %v790
      %v855 = vsub.f32 0.0, %v791
      %v856 = vsub.f32 0.0, %v792
      %v857 = vsub.f32 0.0, %v793
      %v858 = vsub.f32 0.0, %v794
      %v859 = vsub.f32 0.0, %v795
      %v860 = vsub.f32 0.0, %v796
      %v861 = vsub.f32 0.0, %v797
      %v862 = vsub.f32 0.0, %v798
      %v863 = vsub.f32 0.0, %v799
      %v864 = vsub.f32 0.0, %v800
      %v865 = vsub.f32 0.0, %v801
      %v866 = vsub.f32 0.0, %v802
      %v867 = vsub.f32 0.0, %v803
      %v868 = vsub.f32 0.0, %v804
      %v869 = vsub.f32 0.0, %v805
      %v870 = vsub.f32 0.0, %v806
      %v871 = vsub.f32 0.0, %v807
      %v872 = vsub.f32 0.0, %v808
      %v873 = vsub.f32 0.0, %v809
      %v874 = vsub.f32 0.0, %v810
      %v875 = vsub.f32 0.0, %v811
      %v876 = vsub.f32 0.0, %v812
      %v877 = vsub.f32 0.0, %v813
      %v878 = vsub.f32 0.0, %v814
      %v879 = vsub.f32 0.0, %v815
      %v880 = vsub.f32 0.0, %v816
      %v881 = vsub.f32 0.0, %v817
      %v882 = vsub.f32 0.0, %v818
      %v883 = vsub.f32 0.0, %v819
      %v884 = vsub.f32 0.0, %v820
      %v885 = vsub.f32 0.0, %v821
      %v886 = vsub.f32 0.0, %v822
      %v887 = vsub.f32 0.0, %v823
      %v888 = vsub.f32 0.0, %v824
      %v889 = vsub.f32 0.0, %v825
      %v890 = vsub.f32 0.0, %v826
      %v891 = vsub.f32 0.0, %v827
      %v892 = vsub.f32 0.0, %v828
      %v893 = vsub.f32 0.0, %v829
      %v894 = vsub.f32 0.0, %v830
      %v895 = vsub.f32 0.0, %v831
      %v896 = vsub.f32 0.0, %v832
      %v897 = vsub.f32 0.0, %v833
      %v898 = vsub.f32 0.0, %v834
      %v899 = vsub.f32 0.0, %v835
      %v900 = vsub.f32 0.0, %v836
      %v901 = vsub.f32 0.0, %v837
      %v902 = vsub.f32 0.0, %v838
      %v903 = vsub.f32 0.0, %v839
      %v904 = vsub.f32 0.0, %v840
      %v905 = vsub.f32 0.0, %v841
      %v906 = vsub.f32 0.0, %v842
      %v907 = vsub.f32 0.0, %v843
      %v908 = vsub.f32 0.0, %v844
      %v909 = vsub.f32 0.0, %v845
      %v910 = vsub.f32 0.0, %v846
      %v911 = vsub.f32 0.0, %v847
      %v912 = vsub.f32 0.0, %v848
      %v913 = vsub.f32 0.0, %v849
      %v914 = vmin.f32 %v850, 60.0
      %v915 = vmin.f32 %v851, 60.0
      %v916 = vmin.f32 %v852, 60.0
      %v917 = vmin.f32 %v853, 60.0
      %v918 = vmin.f32 %v854, 60.0
      %v919 = vmin.f32 %v855, 60.0
      %v920 = vmin.f32 %v856, 60.0
      %v921 = vmin.f32 %v857, 60.0
      %v922 = vmin.f32 %v858, 60.0
      %v923 = vmin.f32 %v859, 60.0
      %v924 = vmin.f32 %v860, 60.0
      %v925 = vmin.f32 %v861, 60.0
      %v926 = vmin.f32 %v862, 60.0
      %v927 = vmin.f32 %v863, 60.0
      %v928 = vmin.f32 %v864, 60.0
      %v929 = vmin.f32 %v865, 60.0
      %v930 = vmin.f32 %v866, 60.0
      %v931 = vmin.f32 %v867, 60.0
      %v932 = vmin.f32 %v868, 60.0
      %v933 = vmin.f32 %v869, 60.0
      %v934 = vmin.f32 %v870, 60.0
      %v935 = vmin.f32 %v871, 60.0
      %v936 = vmin.f32 %v872, 60.0
      %v937 = vmin.f32 %v873, 60.0
      %v938 = vmin.f32 %v874, 60.0
      %v939 = vmin.f32 %v875, 60.0
      %v940 = vmin.f32 %v876, 60.0
      %v941 = vmin.f32 %v877, 60.0
      %v942 = vmin.f32 %v878, 60.0
      %v943 = vmin.f32 %v879, 60.0
      %v944 = vmin.f32 %v880, 60.0
      %v945 = vmin.f32 %v881, 60.0
      %v946 = vmin.f32 %v882, 60.0
      %v947 = vmin.f32 %v883, 60.0
      %v948 = vmin.f32 %v884, 60.0
      %v949 = vmin.f32 %v885, 60.0
      %v950 = vmin.f32 %v886, 60.0
      %v951 = vmin.f32 %v887, 60.0
      %v952 = vmin.f32 %v888, 60.0
      %v953 = vmin.f32 %v889, 60.0
      %v954 = vmin.f32 %v890, 60.0
      %v955 = vmin.f32 %v891, 60.0
      %v956 = vmin.f32 %v892, 60.0
      %v957 = vmin.f32 %v893, 60.0
      %v958 = vmin.f32 %v894, 60.0
      %v959 = vmin.f32 %v895, 60.0
      %v960 = vmin.f32 %v896, 60.0
      %v961 = vmin.f32 %v897, 60.0
      %v962 = vmin.f32 %v898, 60.0
      %v963 = vmin.f32 %v899, 60.0
      %v964 = vmin.f32 %v900, 60.0
      %v965 = vmin.f32 %v901, 60.0
      %v966 = vmin.f32 %v902, 60.0
      %v967 = vmin.f32 %v903, 60.0
      %v968 = vmin.f32 %v904, 60.0
      %v969 = vmin.f32 %v905, 60.0
      %v970 = vmin.f32 %v906, 60.0
      %v971 = vmin.f32 %v907, 60.0
      %v972 = vmin.f32 %v908, 60.0
      %v973 = vmin.f32 %v909, 60.0
      %v974 = vmin.f32 %v910, 60.0
      %v975 = vmin.f32 %v911, 60.0
      %v976 = vmin.f32 %v912, 60.0
      %v977 = vmin.f32 %v913, 60.0
      %v978 = vmul.f32 %v914, 1.442695
      %v979 = vpow.pop %v978
      %v980 = vmul.f32 %v915, 1.442695
      %v981 = vpow.pop %v980
      %v982 = vmul.f32 %v916, 1.442695
      %v983 = vpow.pop %v982
      %v984 = vmul.f32 %v917, 1.442695
      %v985 = vpow.pop %v984
      %v986 = vmul.f32 %v918, 1.442695
      %v987 = vpow.pop %v986
      %v988 = vmul.f32 %v919, 1.442695
      %v989 = vpow.pop %v988
      %v990 = vmul.f32 %v920, 1.442695
      %v991 = vpow.pop %v990
      %v992 = vmul.f32 %v921, 1.442695
      %v993 = vpow.pop %v992
      %v994 = vmul.f32 %v922, 1.442695
      %v995 = vpow.pop %v994
      %v996 = vmul.f32 %v923, 1.442695
      %v997 = vpow.pop %v996
      %v998 = vmul.f32 %v924, 1.442695
      %v999 = vpow.pop %v998
      %v1000 = vmul.f32 %v925, 1.442695
      %v1001 = vpow.pop %v1000
      %v1002 = vmul.f32 %v926, 1.442695
      %v1003 = vpow.pop %v1002
      %v1004 = vmul.f32 %v927, 1.442695
      %v1005 = vpow.pop %v1004
      %v1006 = vmul.f32 %v928, 1.442695
      %v1007 = vpow.pop %v1006
      %v1008 = vmul.f32 %v929, 1.442695
      %v1009 = vpow.pop %v1008
      %v1010 = vmul.f32 %v930, 1.442695
      %v1011 = vpow.pop %v1010
      %v1012 = vmul.f32 %v931, 1.442695
      %v1013 = vpow.pop %v1012
      %v1014 = vmul.f32 %v932, 1.442695
      %v1015 = vpow.pop %v1014
      %v1016 = vmul.f32 %v933, 1.442695
      %v1017 = vpow.pop %v1016
      %v1018 = vmul.f32 %v934, 1.442695
      %v1019 = vpow.pop %v1018
      %v1020 = vmul.f32 %v935, 1.442695
      %v1021 = vpow.pop %v1020
      %v1022 = vmul.f32 %v936, 1.442695
      %v1023 = vpow.pop %v1022
      %v1024 = vmul.f32 %v937, 1.442695
      %v1025 = vpow.pop %v1024
      %v1026 = vmul.f32 %v938, 1.442695
      %v1027 = vpow.pop %v1026
      %v1028 = vmul.f32 %v939, 1.442695
      %v1029 = vpow.pop %v1028
      %v1030 = vmul.f32 %v940, 1.442695
      %v1031 = vpow.pop %v1030
      %v1032 = vmul.f32 %v941, 1.442695
      %v1033 = vpow.pop %v1032
      %v1034 = vmul.f32 %v942, 1.442695
      %v1035 = vpow.pop %v1034
      %v1036 = vmul.f32 %v943, 1.442695
      %v1037 = vpow.pop %v1036
      %v1038 = vmul.f32 %v944, 1.442695
      %v1039 = vpow.pop %v1038
      %v1040 = vmul.f32 %v945, 1.442695
      %v1041 = vpow.pop %v1040
      %v1042 = vmul.f32 %v946, 1.442695
      %v1043 = vpow.pop %v1042
      %v1044 = vmul.f32 %v947, 1.442695
      %v1045 = vpow.pop %v1044
      %v1046 = vmul.f32 %v948, 1.442695
      %v1047 = vpow.pop %v1046
      %v1048 = vmul.f32 %v949, 1.442695
      %v1049 = vpow.pop %v1048
      %v1050 = vmul.f32 %v950, 1.442695
      %v1051 = vpow.pop %v1050
      %v1052 = vmul.f32 %v951, 1.442695
      %v1053 = vpow.pop %v1052
      %v1054 = vmul.f32 %v952, 1.442695
      %v1055 = vpow.pop %v1054
      %v1056 = vmul.f32 %v953, 1.442695
      %v1057 = vpow.pop %v1056
      %v1058 = vmul.f32 %v954, 1.442695
      %v1059 = vpow.pop %v1058
      %v1060 = vmul.f32 %v955, 1.442695
      %v1061 = vpow.pop %v1060
      %v1062 = vmul.f32 %v956, 1.442695
      %v1063 = vpow.pop %v1062
      %v1064 = vmul.f32 %v957, 1.442695
      %v1065 = vpow.pop %v1064
      %v1066 = vmul.f32 %v958, 1.442695
      %v1067 = vpow.pop %v1066
      %v1068 = vmul.f32 %v959, 1.442695
      %v1069 = vpow.pop %v1068
      %v1070 = vmul.f32 %v960, 1.442695
      %v1071 = vpow.pop %v1070
      %v1072 = vmul.f32 %v961, 1.442695
      %v1073 = vpow.pop %v1072
      %v1074 = vmul.f32 %v962, 1.442695
      %v1075 = vpow.pop %v1074
      %v1076 = vmul.f32 %v963, 1.442695
      %v1077 = vpow.pop %v1076
      %v1078 = vmul.f32 %v964, 1.442695
      %v1079 = vpow.pop %v1078
      %v1080 = vmul.f32 %v965, 1.442695
      %v1081 = vpow.pop %v1080
      %v1082 = vmul.f32 %v966, 1.442695
      %v1083 = vpow.pop %v1082
      %v1084 = vmul.f32 %v967, 1.442695
      %v1085 = vpow.pop %v1084
      %v1086 = vmul.f32 %v968, 1.442695
      %v1087 = vpow.pop %v1086
      %v1088 = vmul.f32 %v969, 1.442695
      %v1089 = vpow.pop %v1088
      %v1090 = vmul.f32 %v970, 1.442695
      %v1091 = vpow.pop %v1090
      %v1092 = vmul.f32 %v971, 1.442695
      %v1093 = vpow.pop %v1092
      %v1094 = vmul.f32 %v972, 1.442695
      %v1095 = vpow.pop %v1094
      %v1096 = vmul.f32 %v973, 1.442695
      %v1097 = vpow.pop %v1096
      %v1098 = vmul.f32 %v974, 1.442695
      %v1099 = vpow.pop %v1098
      %v1100 = vmul.f32 %v975, 1.442695
      %v1101 = vpow.pop %v1100
      %v1102 = vmul.f32 %v976, 1.442695
      %v1103 = vpow.pop %v1102
      %v1104 = vmul.f32 %v977, 1.442695
      %v1105 = vpow.pop %v1104
      %v1106 = vadd.f32 %v979, 1.0
      %v1107 = vadd.f32 %v981, 1.0
      %v1108 = vadd.f32 %v983, 1.0
      %v1109 = vadd.f32 %v985, 1.0
      %v1110 = vadd.f32 %v987, 1.0
      %v1111 = vadd.f32 %v989, 1.0
      %v1112 = vadd.f32 %v991, 1.0
      %v1113 = vadd.f32 %v993, 1.0
      %v1114 = vadd.f32 %v995, 1.0
      %v1115 = vadd.f32 %v997, 1.0
      %v1116 = vadd.f32 %v999, 1.0
      %v1117 = vadd.f32 %v1001, 1.0
      %v1118 = vadd.f32 %v1003, 1.0
      %v1119 = vadd.f32 %v1005, 1.0
      %v1120 = vadd.f32 %v1007, 1.0
      %v1121 = vadd.f32 %v1009, 1.0
      %v1122 = vadd.f32 %v1011, 1.0
      %v1123 = vadd.f32 %v1013, 1.0
      %v1124 = vadd.f32 %v1015, 1.0
      %v1125 = vadd.f32 %v1017, 1.0
      %v1126 = vadd.f32 %v1019, 1.0
      %v1127 = vadd.f32 %v1021, 1.0
      %v1128 = vadd.f32 %v1023, 1.0
      %v1129 = vadd.f32 %v1025, 1.0
      %v1130 = vadd.f32 %v1027, 1.0
      %v1131 = vadd.f32 %v1029, 1.0
      %v1132 = vadd.f32 %v1031, 1.0
      %v1133 = vadd.f32 %v1033, 1.0
      %v1134 = vadd.f32 %v1035, 1.0
      %v1135 = vadd.f32 %v1037, 1.0
      %v1136 = vadd.f32 %v1039, 1.0
      %v1137 = vadd.f32 %v1041, 1.0
      %v1138 = vadd.f32 %v1043, 1.0
      %v1139 = vadd.f32 %v1045, 1.0
      %v1140 = vadd.f32 %v1047, 1.0
      %v1141 = vadd.f32 %v1049, 1.0
      %v1142 = vadd.f32 %v1051, 1.0
      %v1143 = vadd.f32 %v1053, 1.0
      %v1144 = vadd.f32 %v1055, 1.0
      %v1145 = vadd.f32 %v1057, 1.0
      %v1146 = vadd.f32 %v1059, 1.0
      %v1147 = vadd.f32 %v1061, 1.0
      %v1148 = vadd.f32 %v1063, 1.0
      %v1149 = vadd.f32 %v1065, 1.0
      %v1150 = vadd.f32 %v1067, 1.0
      %v1151 = vadd.f32 %v1069, 1.0
      %v1152 = vadd.f32 %v1071, 1.0
      %v1153 = vadd.f32 %v1073, 1.0
      %v1154 = vadd.f32 %v1075, 1.0
      %v1155 = vadd.f32 %v1077, 1.0
      %v1156 = vadd.f32 %v1079, 1.0
      %v1157 = vadd.f32 %v1081, 1.0
      %v1158 = vadd.f32 %v1083, 1.0
      %v1159 = vadd.f32 %v1085, 1.0
      %v1160 = vadd.f32 %v1087, 1.0
      %v1161 = vadd.f32 %v1089, 1.0
      %v1162 = vadd.f32 %v1091, 1.0
      %v1163 = vadd.f32 %v1093, 1.0
      %v1164 = vadd.f32 %v1095, 1.0
      %v1165 = vadd.f32 %v1097, 1.0
      %v1166 = vadd.f32 %v1099, 1.0
      %v1167 = vadd.f32 %v1101, 1.0
      %v1168 = vadd.f32 %v1103, 1.0
      %v1169 = vadd.f32 %v1105, 1.0
      %v1170 = vrcp.pop %v1106
      %v1171 = vrcp.pop %v1107
      %v1172 = vrcp.pop %v1108
      %v1173 = vrcp.pop %v1109
      %v1174 = vrcp.pop %v1110
      %v1175 = vrcp.pop %v1111
      %v1176 = vrcp.pop %v1112
      %v1177 = vrcp.pop %v1113
      %v1178 = vrcp.pop %v1114
      %v1179 = vrcp.pop %v1115
      %v1180 = vrcp.pop %v1116
      %v1181 = vrcp.pop %v1117
      %v1182 = vrcp.pop %v1118
      %v1183 = vrcp.pop %v1119
      %v1184 = vrcp.pop %v1120
      %v1185 = vrcp.pop %v1121
      %v1186 = vrcp.pop %v1122
      %v1187 = vrcp.pop %v1123
      %v1188 = vrcp.pop %v1124
      %v1189 = vrcp.pop %v1125
      %v1190 = vrcp.pop %v1126
      %v1191 = vrcp.pop %v1127
      %v1192 = vrcp.pop %v1128
      %v1193 = vrcp.pop %v1129
      %v1194 = vrcp.pop %v1130
      %v1195 = vrcp.pop %v1131
      %v1196 = vrcp.pop %v1132
      %v1197 = vrcp.pop %v1133
      %v1198 = vrcp.pop %v1134
      %v1199 = vrcp.pop %v1135
      %v1200 = vrcp.pop %v1136
      %v1201 = vrcp.pop %v1137
      %v1202 = vrcp.pop %v1138
      %v1203 = vrcp.pop %v1139
      %v1204 = vrcp.pop %v1140
      %v1205 = vrcp.pop %v1141
      %v1206 = vrcp.pop %v1142
      %v1207 = vrcp.pop %v1143
      %v1208 = vrcp.pop %v1144
      %v1209 = vrcp.pop %v1145
      %v1210 = vrcp.pop %v1146
      %v1211 = vrcp.pop %v1147
      %v1212 = vrcp.pop %v1148
      %v1213 = vrcp.pop %v1149
      %v1214 = vrcp.pop %v1150
      %v1215 = vrcp.pop %v1151
      %v1216 = vrcp.pop %v1152
      %v1217 = vrcp.pop %v1153
      %v1218 = vrcp.pop %v1154
      %v1219 = vrcp.pop %v1155
      %v1220 = vrcp.pop %v1156
      %v1221 = vrcp.pop %v1157
      %v1222 = vrcp.pop %v1158
      %v1223 = vrcp.pop %v1159
      %v1224 = vrcp.pop %v1160
      %v1225 = vrcp.pop %v1161
      %v1226 = vrcp.pop %v1162
      %v1227 = vrcp.pop %v1163
      %v1228 = vrcp.pop %v1164
      %v1229 = vrcp.pop %v1165
      %v1230 = vrcp.pop %v1166
      %v1231 = vrcp.pop %v1167
      %v1232 = vrcp.pop %v1168
      %v1233 = vrcp.pop %v1169
      %v1234 = vmul.f32 %v786, %v1170
      %v1235 = vmul.f32 %v787, %v1171
      %v1236 = vmul.f32 %v788, %v1172
      %v1237 = vmul.f32 %v789, %v1173
      %v1238 = vmul.f32 %v790, %v1174
      %v1239 = vmul.f32 %v791, %v1175
      %v1240 = vmul.f32 %v792, %v1176
      %v1241 = vmul.f32 %v793, %v1177
      %v1242 = vmul.f32 %v794, %v1178
      %v1243 = vmul.f32 %v795, %v1179
      %v1244 = vmul.f32 %v796, %v1180
      %v1245 = vmul.f32 %v797, %v1181
      %v1246 = vmul.f32 %v798, %v1182
      %v1247 = vmul.f32 %v799, %v1183
      %v1248 = vmul.f32 %v800, %v1184
      %v1249 = vmul.f32 %v801, %v1185
      %v1250 = vmul.f32 %v802, %v1186
      %v1251 = vmul.f32 %v803, %v1187
      %v1252 = vmul.f32 %v804, %v1188
      %v1253 = vmul.f32 %v805, %v1189
      %v1254 = vmul.f32 %v806, %v1190
      %v1255 = vmul.f32 %v807, %v1191
      %v1256 = vmul.f32 %v808, %v1192
      %v1257 = vmul.f32 %v809, %v1193
      %v1258 = vmul.f32 %v810, %v1194
      %v1259 = vmul.f32 %v811, %v1195
      %v1260 = vmul.f32 %v812, %v1196
      %v1261 = vmul.f32 %v813, %v1197
      %v1262 = vmul.f32 %v814, %v1198
      %v1263 = vmul.f32 %v815, %v1199
      %v1264 = vmul.f32 %v816, %v1200
      %v1265 = vmul.f32 %v817, %v1201
      %v1266 = vmul.f32 %v818, %v1202
      %v1267 = vmul.f32 %v819, %v1203
      %v1268 = vmul.f32 %v820, %v1204
      %v1269 = vmul.f32 %v821, %v1205
      %v1270 = vmul.f32 %v822, %v1206
      %v1271 = vmul.f32 %v823, %v1207
      %v1272 = vmul.f32 %v824, %v1208
      %v1273 = vmul.f32 %v825, %v1209
      %v1274 = vmul.f32 %v826, %v1210
      %v1275 = vmul.f32 %v827, %v1211
      %v1276 = vmul.f32 %v828, %v1212
      %v1277 = vmul.f32 %v829, %v1213
      %v1278 = vmul.f32 %v830, %v1214
      %v1279 = vmul.f32 %v831, %v1215
      %v1280 = vmul.f32 %v832, %v1216
      %v1281 = vmul.f32 %v833, %v1217
      %v1282 = vmul.f32 %v834, %v1218
      %v1283 = vmul.f32 %v835, %v1219
      %v1284 = vmul.f32 %v836, %v1220
      %v1285 = vmul.f32 %v837, %v1221
      %v1286 = vmul.f32 %v838, %v1222
      %v1287 = vmul.f32 %v839, %v1223
      %v1288 = vmul.f32 %v840, %v1224
      %v1289 = vmul.f32 %v841, %v1225
      %v1290 = vmul.f32 %v842, %v1226
      %v1291 = vmul.f32 %v843, %v1227
      %v1292 = vmul.f32 %v844, %v1228
      %v1293 = vmul.f32 %v845, %v1229
      %v1294 = vmul.f32 %v846, %v1230
      %v1295 = vmul.f32 %v847, %v1231
      %v1296 = vmul.f32 %v848, %v1232
      %v1297 = vmul.f32 %v849, %v1233
      %v1298 = vpack.c.bf16 %v1234, %v1234
      %v1299 = vpack.c.bf16 %v1235, %v1235
      %v1300 = vpack.c.bf16 %v1236, %v1236
      %v1301 = vpack.c.bf16 %v1237, %v1237
      %v1302 = vpack.c.bf16 %v1238, %v1238
      %v1303 = vpack.c.bf16 %v1239, %v1239
      %v1304 = vpack.c.bf16 %v1240, %v1240
      %v1305 = vpack.c.bf16 %v1241, %v1241
      %v1306 = vpack.c.bf16 %v1242, %v1242
      %v1307 = vpack.c.bf16 %v1243, %v1243
      %v1308 = vpack.c.bf16 %v1244, %v1244
      %v1309 = vpack.c.bf16 %v1245, %v1245
      %v1310 = vpack.c.bf16 %v1246, %v1246
      %v1311 = vpack.c.bf16 %v1247, %v1247
      %v1312 = vpack.c.bf16 %v1248, %v1248
      %v1313 = vpack.c.bf16 %v1249, %v1249
      %v1314 = vpack.c.bf16 %v1250, %v1250
      %v1315 = vpack.c.bf16 %v1251, %v1251
      %v1316 = vpack.c.bf16 %v1252, %v1252
      %v1317 = vpack.c.bf16 %v1253, %v1253
      %v1318 = vpack.c.bf16 %v1254, %v1254
      %v1319 = vpack.c.bf16 %v1255, %v1255
      %v1320 = vpack.c.bf16 %v1256, %v1256
      %v1321 = vpack.c.bf16 %v1257, %v1257
      %v1322 = vpack.c.bf16 %v1258, %v1258
      %v1323 = vpack.c.bf16 %v1259, %v1259
      %v1324 = vpack.c.bf16 %v1260, %v1260
      %v1325 = vpack.c.bf16 %v1261, %v1261
      %v1326 = vpack.c.bf16 %v1262, %v1262
      %v1327 = vpack.c.bf16 %v1263, %v1263
      %v1328 = vpack.c.bf16 %v1264, %v1264
      %v1329 = vpack.c.bf16 %v1265, %v1265
      %v1330 = vpack.c.bf16 %v1266, %v1266
      %v1331 = vpack.c.bf16 %v1267, %v1267
      %v1332 = vpack.c.bf16 %v1268, %v1268
      %v1333 = vpack.c.bf16 %v1269, %v1269
      %v1334 = vpack.c.bf16 %v1270, %v1270
      %v1335 = vpack.c.bf16 %v1271, %v1271
      %v1336 = vpack.c.bf16 %v1272, %v1272
      %v1337 = vpack.c.bf16 %v1273, %v1273
      %v1338 = vpack.c.bf16 %v1274, %v1274
      %v1339 = vpack.c.bf16 %v1275, %v1275
      %v1340 = vpack.c.bf16 %v1276, %v1276
      %v1341 = vpack.c.bf16 %v1277, %v1277
      %v1342 = vpack.c.bf16 %v1278, %v1278
      %v1343 = vpack.c.bf16 %v1279, %v1279
      %v1344 = vpack.c.bf16 %v1280, %v1280
      %v1345 = vpack.c.bf16 %v1281, %v1281
      %v1346 = vpack.c.bf16 %v1282, %v1282
      %v1347 = vpack.c.bf16 %v1283, %v1283
      %v1348 = vpack.c.bf16 %v1284, %v1284
      %v1349 = vpack.c.bf16 %v1285, %v1285
      %v1350 = vpack.c.bf16 %v1286, %v1286
      %v1351 = vpack.c.bf16 %v1287, %v1287
      %v1352 = vpack.c.bf16 %v1288, %v1288
      %v1353 = vpack.c.bf16 %v1289, %v1289
      %v1354 = vpack.c.bf16 %v1290, %v1290
      %v1355 = vpack.c.bf16 %v1291, %v1291
      %v1356 = vpack.c.bf16 %v1292, %v1292
      %v1357 = vpack.c.bf16 %v1293, %v1293
      %v1358 = vpack.c.bf16 %v1294, %v1294
      %v1359 = vpack.c.bf16 %v1295, %v1295
      %v1360 = vpack.c.bf16 %v1296, %v1296
      %v1361 = vpack.c.bf16 %v1297, %v1297
      %1362 = vst [vmem:[%s199] sm:$0xf] %v1298
      %1363 = vst [vmem:[%s199 + $0x4] sm:$0xf] %v1299
      %1364 = vst [vmem:[%s199 + $0x8] sm:$0xf] %v1300
      %1365 = vst [vmem:[%s199 + $0xc] sm:$0xf] %v1301
      %1366 = vst [vmem:[%s199 + $0x10] sm:$0xf] %v1302
      %1367 = vst [vmem:[%s199 + $0x14] sm:$0xf] %v1303
      %1368 = vst [vmem:[%s199 + $0x18] sm:$0xf] %v1304
      %1369 = vst [vmem:[%s199 + $0x1c] sm:$0xf] %v1305
      %1370 = vst [vmem:[%s199 + $0x20] sm:$0xf] %v1306
      %1371 = vst [vmem:[%s199 + $0x24] sm:$0xf] %v1307
      %1372 = vst [vmem:[%s199 + $0x28] sm:$0xf] %v1308
      %1373 = vst [vmem:[%s199 + $0x2c] sm:$0xf] %v1309
      %1374 = vst [vmem:[%s199 + $0x30] sm:$0xf] %v1310
      %1375 = vst [vmem:[%s199 + $0x34] sm:$0xf] %v1311
      %1376 = vst [vmem:[%s199 + $0x38] sm:$0xf] %v1312
      %1377 = vst [vmem:[%s199 + $0x3c] sm:$0xf] %v1313
      %1378 = vst [vmem:[%s199 + $0x40] sm:$0xf] %v1314
      %1379 = vst [vmem:[%s199 + $0x44] sm:$0xf] %v1315
      %1380 = vst [vmem:[%s199 + $0x48] sm:$0xf] %v1316
      %1381 = vst [vmem:[%s199 + $0x4c] sm:$0xf] %v1317
      %1382 = vst [vmem:[%s199 + $0x50] sm:$0xf] %v1318
      %1383 = vst [vmem:[%s199 + $0x54] sm:$0xf] %v1319
      %1384 = vst [vmem:[%s199 + $0x58] sm:$0xf] %v1320
      %1385 = vst [vmem:[%s199 + $0x5c] sm:$0xf] %v1321
      %1386 = vst [vmem:[%s199 + $0x60] sm:$0xf] %v1322
      %1387 = vst [vmem:[%s199 + $0x64] sm:$0xf] %v1323
      %1388 = vst [vmem:[%s199 + $0x68] sm:$0xf] %v1324
      %1389 = vst [vmem:[%s199 + $0x6c] sm:$0xf] %v1325
      %1390 = vst [vmem:[%s199 + $0x70] sm:$0xf] %v1326
      %1391 = vst [vmem:[%s199 + $0x74] sm:$0xf] %v1327
      %1392 = vst [vmem:[%s199 + $0x78] sm:$0xf] %v1328
      %1393 = vst [vmem:[%s199 + $0x7c] sm:$0xf] %v1329
      %1394 = vst [vmem:[%s199 + $0x80] sm:$0xf] %v1330
      %1395 = vst [vmem:[%s199 + $0x84] sm:$0xf] %v1331
      %1396 = vst [vmem:[%s199 + $0x88] sm:$0xf] %v1332
      %1397 = vst [vmem:[%s199 + $0x8c] sm:$0xf] %v1333
      %1398 = vst [vmem:[%s199 + $0x90] sm:$0xf] %v1334
      %1399 = vst [vmem:[%s199 + $0x94] sm:$0xf] %v1335
      %1400 = vst [vmem:[%s199 + $0x98] sm:$0xf] %v1336
      %1401 = vst [vmem:[%s199 + $0x9c] sm:$0xf] %v1337
      %1402 = vst [vmem:[%s199 + $0xa0] sm:$0xf] %v1338
      %1403 = vst [vmem:[%s199 + $0xa4] sm:$0xf] %v1339
      %1404 = vst [vmem:[%s199 + $0xa8] sm:$0xf] %v1340
      %1405 = vst [vmem:[%s199 + $0xac] sm:$0xf] %v1341
      %1406 = vst [vmem:[%s199 + $0xb0] sm:$0xf] %v1342
      %1407 = vst [vmem:[%s199 + $0xb4] sm:$0xf] %v1343
      %1408 = vst [vmem:[%s199 + $0xb8] sm:$0xf] %v1344
      %1409 = vst [vmem:[%s199 + $0xbc] sm:$0xf] %v1345
      %1410 = vst [vmem:[%s199 + $0xc0] sm:$0xf] %v1346
      %1411 = vst [vmem:[%s199 + $0xc4] sm:$0xf] %v1347
      %1412 = vst [vmem:[%s199 + $0xc8] sm:$0xf] %v1348
      %1413 = vst [vmem:[%s199 + $0xcc] sm:$0xf] %v1349
      %1414 = vst [vmem:[%s199 + $0xd0] sm:$0xf] %v1350
      %1415 = vst [vmem:[%s199 + $0xd4] sm:$0xf] %v1351
      %1416 = vst [vmem:[%s199 + $0xd8] sm:$0xf] %v1352
      %1417 = vst [vmem:[%s199 + $0xdc] sm:$0xf] %v1353
      %1418 = vst [vmem:[%s199 + $0xe0] sm:$0xf] %v1354
      %1419 = vst [vmem:[%s199 + $0xe4] sm:$0xf] %v1355
      %1420 = vst [vmem:[%s199 + $0xe8] sm:$0xf] %v1356
      %1421 = vst [vmem:[%s199 + $0xec] sm:$0xf] %v1357
      %1422 = vst [vmem:[%s199 + $0xf0] sm:$0xf] %v1358
      %1423 = vst [vmem:[%s199 + $0xf4] sm:$0xf] %v1359
      %1424 = vst [vmem:[%s199 + $0xf8] sm:$0xf] %v1360
      %1425 = vst [vmem:[%s199 + $0xfc] sm:$0xf] %v1361
      %s1426 = smul.u32 64, %s15
      %p1427 = scmp.lt.s32.totalorder %s1426, 127
      %s1428 = scalar_select %p1427, %s1426, 127
      %s1429 = smul.addr %s1428, 4
      %s1430 = scalar_lea.vmem %s4, %s1429
      // Predicated region
      $region37: #{efficientnet_b3_forward.4} parent=35 // pred_check
        %p1431 = pneg %p122
      $region38: #{efficientnet_b3_forward.4} parent=35 // pred_check_branch
        %1433 = sbr.rel (%p1431) target = $region40
      $region39: #{efficientnet_b3_forward.4} parent=35 // pred_region
        %s1434 = smul.u32 64, %s15
      $region40: #{efficientnet_b3_forward.4} parent=35 // pred_fallthru
        _
    $region36: #{efficientnet_b3_forward.4} parent=5 // pred_fallthru
      _
    %p1435 = scmp.le.s32.totalorder 2, %s10
    // Predicated region
    $region41: #{efficientnet_b3_forward.4} parent=5 // pred_check
      %p1436 = pneg %p1435
    $region42: #{efficientnet_b3_forward.4} parent=5 // pred_check_branch
      %1438 = sbr.rel (%p1436) target = $region44
    $region43: #{efficientnet_b3_forward.4} parent=5 // pred_region
      %s1439 = ssub.s32 %s10, 2
      // Predicated region
      $region45: #{efficientnet_b3_forward.4} parent=43 // pred_check
        %p1440 = pneg %p128
      $region46: #{efficientnet_b3_forward.4} parent=43 // pred_check_branch
        %1442 = sbr.rel (%p1440) target = $region48
      $region47: #{efficientnet_b3_forward.4} parent=43 // pred_region
        %s1443 = smul.u32 64, %s16
        %p1444 = scmp.lt.s32.totalorder %s1443, 127
        %s1445 = scalar_select %p1444, %s1443, 127
        %s1446 = smul.addr %s1445, 4
        %s1447 = scalar_lea.vmem %s4, %s1446
      $region48: #{efficientnet_b3_forward.4} parent=43 // pred_fallthru
        _
    $region44: #{efficientnet_b3_forward.4} parent=5 // pred_fallthru
      _
  $region6: #{efficientnet_b3_forward.4} parent=0 // loop_footer
    %s14 = sadd.s32 1, %s10
  $region7: #{efficientnet_b3_forward.4} parent=0 // loop_footer_branch
    %9 = sbr.rel target = $region3
  $region8: #{efficientnet_b3_forward.4} parent=0 // loop_exit
    _

// kernel: efficientnet_b3_forward.5
$region0: #{efficientnet_b3_forward.5}
  #allocation0 [shape = 'u32[]', space=smem, size = 0x4, offset = 0x4, fixed_abs, tag = 'smem constant byte address 0x4 - core index']
  #allocation1 [shape = 'u32[72,128]{1,0:T(1,128)}', space=vmem, size = 0x9000, scoped, tag = 'internal scratch']
  %s0 = inlined_call_operand.vmem [shape: bf16[2,4,9,17,128], index: 0, kind: input, shape index: {}]
  %s1 = inlined_call_operand.vmem [shape: f32[9,128], index: 1, kind: input, shape index: {}]
  %s2 = inlined_call_operand.vmem [shape: f32[1,128], index: 2, kind: input, shape index: {}]
  %s3 = inlined_call_operand.vmem [shape: f32[1,128], index: 3, kind: input, shape index: {}]
  %s4 = inlined_call_operand.vmem [shape: f32[128,128], index: 4, kind: input, shape index: {}]
  %s5 = inlined_call_operand.vmem [shape: f32[1,128], index: 5, kind: input, shape index: {}]
  %s6 = inlined_call_operand.vmem [shape: f32[128,128], index: 6, kind: input, shape index: {}]
  %s7 = inlined_call_operand.vmem [shape: f32[1,128], index: 7, kind: input, shape index: {}]
  %s8 = inlined_call_operand.vmem [shape: bf16[128,128], index: 8, kind: input, shape index: {}]
  %s9 = inlined_call_operand.vmem [shape: f32[1,128], index: 9, kind: input, shape index: {}]
  %s10 = inlined_call_operand.vmem [shape: f32[1,128], index: 10, kind: input, shape index: {}]
  %s11 = inlined_call_operand.vmem [shape: bf16[2,128,128], index: 11, kind: output, shape index: {}]
  %s12 = sld [smem:[#allocation0]]
  $region77: #{efficientnet_b3_forward.5} parent=0
    _
  %s14 = ssub.s32 1, %s12
  %s15 = scalar_select 0, %s14, %s12
  loop: start=0, step=1, limit=4
  $region2: #{efficientnet_b3_forward.5} parent=0 // loop_pre_header
    _
  $region3: #{efficientnet_b3_forward.5} parent=0 // loop_header
    %s17 = sphi 0, %s21
    %p18 = scmp.ge.s32.totalorder %s17, 4
    %s27 = sphi 0, %s29
    %s30 = sphi 0, %s27
    %s31 = sphi 0, %s30
    %s47 = sphi 0, %s31
    %s51 = sphi 0, %s51
    %s53 = sphi 0, %s51
    %s54 = sphi 0, %s53
    %s68 = sphi 0, %s54
    %s72 = sphi 0, %s72
    %s74 = sphi 0, %s72
    %s75 = sphi 0, %s74
    %s89 = sphi 0, %s75
    %s93 = sphi 0, %s93
    %s95 = sphi 0, %s93
    %s96 = sphi 0, %s95
    %s110 = sphi 0, %s96
    %s114 = sphi 0, %s114
    %s116 = sphi 0, %s114
    %s117 = sphi 0, %s116
    %s131 = sphi 0, %s117
    %s135 = sphi 0, %s135
    %s137 = sphi 0, %s135
    %s138 = sphi 0, %s137
    %s152 = sphi 0, %s138
    %s156 = sphi 0, %s156
    %s158 = sphi 0, %s156
    %s159 = sphi 0, %s158
    %s173 = sphi 0, %s159
    %s177 = sphi 0, %s177
    %s179 = sphi 0, %s177
    %s180 = sphi 0, %s179
    %s194 = sphi 0, %s180
    %s198 = sphi 0, %s198
    %s200 = sphi 0, %s198
    %s201 = sphi 0, %s200
    %s215 = sphi 0, %s201
    %s219 = sphi 0, %s219
    %s221 = sphi 0, %s219
    %s222 = sphi 0, %s221
    %s236 = sphi 0, %s222
    %s240 = sphi 0, %s240
    %s242 = sphi 0, %s240
    %s243 = sphi 0, %s242
    %s257 = sphi 0, %s243
    %s263 = sphi 0, %s265
    %s266 = sphi 0, %s263
    %s267 = sphi 0, %s266
    %s283 = sphi 0, %s267
  $region4: #{efficientnet_b3_forward.5} parent=0 // loop_header_branch
    %20 = sbr.rel (%p18) target = $region8
  $region5: #{efficientnet_b3_forward.5} parent=0 // loop_body
    %s22 = ssub.s32 %s17, 1
    %s23 = ssub.s32 %s17, 2
    %s24 = sadd.s32 %s17, 1
    %s25 = ssub.s32 %s17, %s24
    %p26 = scmp.eq.s32.totalorder %s25, 0
    %s28 = sadd.s32 %s27, 1
    %s29 = scalar_select %p26, %s27, %s28
    %p32 = pneg %p26
    %p33 = scmp.eq.s32.totalorder %s17, 1
    %p34 = por %p32, %p33
    %p35 = scmp.ne.s32.totalorder %s27, %s30
    %p36 = scmp.eq.s32.totalorder %s17, 0
    %p37 = por %p35, %p36
    %p38 = scmp.ne.s32.totalorder %s27, %s30
    %p39 = scmp.eq.s32.totalorder %s22, 1
    %p40 = por %p38, %p39
    %p41 = scmp.ne.s32.totalorder %s30, %s31
    %p42 = scmp.eq.s32.totalorder %s22, 0
    %p43 = por %p41, %p42
    %p44 = scmp.ne.s32.totalorder %s30, %s31
    %p45 = scmp.eq.s32.totalorder %s23, 1
    %p46 = por %p44, %p45
    %p48 = scmp.ne.s32.totalorder %s31, %s47
    %p49 = scmp.eq.s32.totalorder %s23, 0
    %p50 = por %p48, %p49
    %s52 = sadd.s32 %s51, 1
    %p55 = scmp.eq.s32.totalorder %s17, 1
    %p56 = scmp.ne.s32.totalorder %s51, %s53
    %p57 = scmp.eq.s32.totalorder %s17, 0
    %p58 = por %p56, %p57
    %p59 = scmp.ne.s32.totalorder %s51, %s53
    %p60 = scmp.eq.s32.totalorder %s22, 1
    %p61 = por %p59, %p60
    %p62 = scmp.ne.s32.totalorder %s53, %s54
    %p63 = scmp.eq.s32.totalorder %s22, 0
    %p64 = por %p62, %p63
    %p65 = scmp.ne.s32.totalorder %s53, %s54
    %p66 = scmp.eq.s32.totalorder %s23, 1
    %p67 = por %p65, %p66
    %p69 = scmp.ne.s32.totalorder %s54, %s68
    %p70 = scmp.eq.s32.totalorder %s23, 0
    %p71 = por %p69, %p70
    %s73 = sadd.s32 %s72, 1
    %p76 = scmp.eq.s32.totalorder %s17, 1
    %p77 = scmp.ne.s32.totalorder %s72, %s74
    %p78 = scmp.eq.s32.totalorder %s17, 0
    %p79 = por %p77, %p78
    %p80 = scmp.ne.s32.totalorder %s72, %s74
    %p81 = scmp.eq.s32.totalorder %s22, 1
    %p82 = por %p80, %p81
    %p83 = scmp.ne.s32.totalorder %s74, %s75
    %p84 = scmp.eq.s32.totalorder %s22, 0
    %p85 = por %p83, %p84
    %p86 = scmp.ne.s32.totalorder %s74, %s75
    %p87 = scmp.eq.s32.totalorder %s23, 1
    %p88 = por %p86, %p87
    %p90 = scmp.ne.s32.totalorder %s75, %s89
    %p91 = scmp.eq.s32.totalorder %s23, 0
    %p92 = por %p90, %p91
    %s94 = sadd.s32 %s93, 1
    %p97 = scmp.eq.s32.totalorder %s17, 1
    %p98 = scmp.ne.s32.totalorder %s93, %s95
    %p99 = scmp.eq.s32.totalorder %s17, 0
    %p100 = por %p98, %p99
    %p101 = scmp.ne.s32.totalorder %s93, %s95
    %p102 = scmp.eq.s32.totalorder %s22, 1
    %p103 = por %p101, %p102
    %p104 = scmp.ne.s32.totalorder %s95, %s96
    %p105 = scmp.eq.s32.totalorder %s22, 0
    %p106 = por %p104, %p105
    %p107 = scmp.ne.s32.totalorder %s95, %s96
    %p108 = scmp.eq.s32.totalorder %s23, 1
    %p109 = por %p107, %p108
    %p111 = scmp.ne.s32.totalorder %s96, %s110
    %p112 = scmp.eq.s32.totalorder %s23, 0
    %p113 = por %p111, %p112
    %s115 = sadd.s32 %s114, 1
    %p118 = scmp.eq.s32.totalorder %s17, 1
    %p119 = scmp.ne.s32.totalorder %s114, %s116
    %p120 = scmp.eq.s32.totalorder %s17, 0
    %p121 = por %p119, %p120
    %p122 = scmp.ne.s32.totalorder %s114, %s116
    %p123 = scmp.eq.s32.totalorder %s22, 1
    %p124 = por %p122, %p123
    %p125 = scmp.ne.s32.totalorder %s116, %s117
    %p126 = scmp.eq.s32.totalorder %s22, 0
    %p127 = por %p125, %p126
    %p128 = scmp.ne.s32.totalorder %s116, %s117
    %p129 = scmp.eq.s32.totalorder %s23, 1
    %p130 = por %p128, %p129
    %p132 = scmp.ne.s32.totalorder %s117, %s131
    %p133 = scmp.eq.s32.totalorder %s23, 0
    %p134 = por %p132, %p133
    %s136 = sadd.s32 %s135, 1
    %p139 = scmp.eq.s32.totalorder %s17, 1
    %p140 = scmp.ne.s32.totalorder %s135, %s137
    %p141 = scmp.eq.s32.totalorder %s17, 0
    %p142 = por %p140, %p141
    %p143 = scmp.ne.s32.totalorder %s135, %s137
    %p144 = scmp.eq.s32.totalorder %s22, 1
    %p145 = por %p143, %p144
    %p146 = scmp.ne.s32.totalorder %s137, %s138
    %p147 = scmp.eq.s32.totalorder %s22, 0
    %p148 = por %p146, %p147
    %p149 = scmp.ne.s32.totalorder %s137, %s138
    %p150 = scmp.eq.s32.totalorder %s23, 1
    %p151 = por %p149, %p150
    %p153 = scmp.ne.s32.totalorder %s138, %s152
    %p154 = scmp.eq.s32.totalorder %s23, 0
    %p155 = por %p153, %p154
    %s157 = sadd.s32 %s156, 1
    %p160 = scmp.eq.s32.totalorder %s17, 1
    %p161 = scmp.ne.s32.totalorder %s156, %s158
    %p162 = scmp.eq.s32.totalorder %s17, 0
    %p163 = por %p161, %p162
    %p164 = scmp.ne.s32.totalorder %s156, %s158
    %p165 = scmp.eq.s32.totalorder %s22, 1
    %p166 = por %p164, %p165
    %p167 = scmp.ne.s32.totalorder %s158, %s159
    %p168 = scmp.eq.s32.totalorder %s22, 0
    %p169 = por %p167, %p168
    %p170 = scmp.ne.s32.totalorder %s158, %s159
    %p171 = scmp.eq.s32.totalorder %s23, 1
    %p172 = por %p170, %p171
    %p174 = scmp.ne.s32.totalorder %s159, %s173
    %p175 = scmp.eq.s32.totalorder %s23, 0
    %p176 = por %p174, %p175
    %s178 = sadd.s32 %s177, 1
    %p181 = scmp.eq.s32.totalorder %s17, 1
    %p182 = scmp.ne.s32.totalorder %s177, %s179
    %p183 = scmp.eq.s32.totalorder %s17, 0
    %p184 = por %p182, %p183
    %p185 = scmp.ne.s32.totalorder %s177, %s179
    %p186 = scmp.eq.s32.totalorder %s22, 1
    %p187 = por %p185, %p186
    %p188 = scmp.ne.s32.totalorder %s179, %s180
    %p189 = scmp.eq.s32.totalorder %s22, 0
    %p190 = por %p188, %p189
    %p191 = scmp.ne.s32.totalorder %s179, %s180
    %p192 = scmp.eq.s32.totalorder %s23, 1
    %p193 = por %p191, %p192
    %p195 = scmp.ne.s32.totalorder %s180, %s194
    %p196 = scmp.eq.s32.totalorder %s23, 0
    %p197 = por %p195, %p196
    %s199 = sadd.s32 %s198, 1
    %p202 = scmp.eq.s32.totalorder %s17, 1
    %p203 = scmp.ne.s32.totalorder %s198, %s200
    %p204 = scmp.eq.s32.totalorder %s17, 0
    %p205 = por %p203, %p204
    %p206 = scmp.ne.s32.totalorder %s198, %s200
    %p207 = scmp.eq.s32.totalorder %s22, 1
    %p208 = por %p206, %p207
    %p209 = scmp.ne.s32.totalorder %s200, %s201
    %p210 = scmp.eq.s32.totalorder %s22, 0
    %p211 = por %p209, %p210
    %p212 = scmp.ne.s32.totalorder %s200, %s201
    %p213 = scmp.eq.s32.totalorder %s23, 1
    %p214 = por %p212, %p213
    %p216 = scmp.ne.s32.totalorder %s201, %s215
    %p217 = scmp.eq.s32.totalorder %s23, 0
    %p218 = por %p216, %p217
    %s220 = sadd.s32 %s219, 1
    %p223 = scmp.eq.s32.totalorder %s17, 1
    %p224 = scmp.ne.s32.totalorder %s219, %s221
    %p225 = scmp.eq.s32.totalorder %s17, 0
    %p226 = por %p224, %p225
    %p227 = scmp.ne.s32.totalorder %s219, %s221
    %p228 = scmp.eq.s32.totalorder %s22, 1
    %p229 = por %p227, %p228
    %p230 = scmp.ne.s32.totalorder %s221, %s222
    %p231 = scmp.eq.s32.totalorder %s22, 0
    %p232 = por %p230, %p231
    %p233 = scmp.ne.s32.totalorder %s221, %s222
    %p234 = scmp.eq.s32.totalorder %s23, 1
    %p235 = por %p233, %p234
    %p237 = scmp.ne.s32.totalorder %s222, %s236
    %p238 = scmp.eq.s32.totalorder %s23, 0
    %p239 = por %p237, %p238
    %s241 = sadd.s32 %s240, 1
    %p244 = scmp.eq.s32.totalorder %s17, 1
    %p245 = scmp.ne.s32.totalorder %s240, %s242
    %p246 = scmp.eq.s32.totalorder %s17, 0
    %p247 = por %p245, %p246
    %p248 = scmp.ne.s32.totalorder %s240, %s242
    %p249 = scmp.eq.s32.totalorder %s22, 1
    %p250 = por %p248, %p249
    %p251 = scmp.ne.s32.totalorder %s242, %s243
    %p252 = scmp.eq.s32.totalorder %s22, 0
    %p253 = por %p251, %p252
    %p254 = scmp.ne.s32.totalorder %s242, %s243
    %p255 = scmp.eq.s32.totalorder %s23, 1
    %p256 = por %p254, %p255
    %p258 = scmp.ne.s32.totalorder %s243, %s257
    %p259 = scmp.eq.s32.totalorder %s23, 0
    %p260 = por %p258, %p259
    %s261 = ssub.s32 %s17, %s24
    %p262 = scmp.eq.s32.totalorder %s261, 0
    %s264 = sadd.s32 %s263, 1
    %s265 = scalar_select %p262, %s263, %s264
    %p268 = pneg %p262
    %p269 = scmp.eq.s32.totalorder %s17, 1
    %p270 = por %p268, %p269
    %p271 = scmp.ne.s32.totalorder %s263, %s266
    %p272 = scmp.eq.s32.totalorder %s17, 0
    %p273 = por %p271, %p272
    %p274 = scmp.ne.s32.totalorder %s263, %s266
    %p275 = scmp.eq.s32.totalorder %s22, 1
    %p276 = por %p274, %p275
    %p277 = scmp.ne.s32.totalorder %s266, %s267
    %p278 = scmp.eq.s32.totalorder %s22, 0
    %p279 = por %p277, %p278
    %p280 = scmp.ne.s32.totalorder %s266, %s267
    %p281 = scmp.eq.s32.totalorder %s23, 1
    %p282 = por %p280, %p281
    %p284 = scmp.ne.s32.totalorder %s267, %s283
    %p285 = scmp.eq.s32.totalorder %s23, 0
    %p286 = por %p284, %p285
    %p287 = scmp.le.s32.totalorder 1, %s17
    %p288 = scmp.lt.s32.totalorder %s17, 3
    %p289 = pnand %p287, %p288
    %p290 = pneg %p289
    // Predicated region
    $region9: #{efficientnet_b3_forward.5} parent=5 // pred_check
      _
    $region10: #{efficientnet_b3_forward.5} parent=5 // pred_check_branch
      %292 = sbr.rel (%p289) target = $region12
    $region11: #{efficientnet_b3_forward.5} parent=5 // pred_region
      %s293 = ssub.s32 %s17, 1
      // Predicated region
      $region13: #{efficientnet_b3_forward.5} parent=11 // pred_check
        %p294 = pneg %p64
      $region14: #{efficientnet_b3_forward.5} parent=11 // pred_check_branch
        %296 = sbr.rel (%p294) target = $region16
      $region15: #{efficientnet_b3_forward.5} parent=11 // pred_region
        _
      $region16: #{efficientnet_b3_forward.5} parent=11 // pred_fallthru
        _
      // Predicated region
      $region17: #{efficientnet_b3_forward.5} parent=11 // pred_check
        %p297 = pneg %p85
      $region18: #{efficientnet_b3_forward.5} parent=11 // pred_check_branch
        %299 = sbr.rel (%p297) target = $region20
      $region19: #{efficientnet_b3_forward.5} parent=11 // pred_region
        _
      $region20: #{efficientnet_b3_forward.5} parent=11 // pred_fallthru
        _
      // Predicated region
      $region21: #{efficientnet_b3_forward.5} parent=11 // pred_check
        %p300 = pneg %p106
      $region22: #{efficientnet_b3_forward.5} parent=11 // pred_check_branch
        %302 = sbr.rel (%p300) target = $region24
      $region23: #{efficientnet_b3_forward.5} parent=11 // pred_region
        _
      $region24: #{efficientnet_b3_forward.5} parent=11 // pred_fallthru
        _
      // Predicated region
      $region25: #{efficientnet_b3_forward.5} parent=11 // pred_check
        %p303 = pneg %p127
      $region26: #{efficientnet_b3_forward.5} parent=11 // pred_check_branch
        %305 = sbr.rel (%p303) target = $region28
      $region27: #{efficientnet_b3_forward.5} parent=11 // pred_region
        _
      $region28: #{efficientnet_b3_forward.5} parent=11 // pred_fallthru
        _
      // Predicated region
      $region29: #{efficientnet_b3_forward.5} parent=11 // pred_check
        %p306 = pneg %p148
      $region30: #{efficientnet_b3_forward.5} parent=11 // pred_check_branch
        %308 = sbr.rel (%p306) target = $region32
      $region31: #{efficientnet_b3_forward.5} parent=11 // pred_region
        _
      $region32: #{efficientnet_b3_forward.5} parent=11 // pred_fallthru
        _
      // Predicated region
      $region33: #{efficientnet_b3_forward.5} parent=11 // pred_check
        %p309 = pneg %p169
      $region34: #{efficientnet_b3_forward.5} parent=11 // pred_check_branch
        %311 = sbr.rel (%p309) target = $region36
      $region35: #{efficientnet_b3_forward.5} parent=11 // pred_region
        _
      $region36: #{efficientnet_b3_forward.5} parent=11 // pred_fallthru
        _
      // Predicated region
      $region37: #{efficientnet_b3_forward.5} parent=11 // pred_check
        %p312 = pneg %p190
      $region38: #{efficientnet_b3_forward.5} parent=11 // pred_check_branch
        %314 = sbr.rel (%p312) target = $region40
      $region39: #{efficientnet_b3_forward.5} parent=11 // pred_region
        _
      $region40: #{efficientnet_b3_forward.5} parent=11 // pred_fallthru
        _
      // Predicated region
      $region41: #{efficientnet_b3_forward.5} parent=11 // pred_check
        %p315 = pneg %p211
      $region42: #{efficientnet_b3_forward.5} parent=11 // pred_check_branch
        %317 = sbr.rel (%p315) target = $region44
      $region43: #{efficientnet_b3_forward.5} parent=11 // pred_region
        _
      $region44: #{efficientnet_b3_forward.5} parent=11 // pred_fallthru
        _
      // Predicated region
      $region45: #{efficientnet_b3_forward.5} parent=11 // pred_check
        %p318 = pneg %p232
      $region46: #{efficientnet_b3_forward.5} parent=11 // pred_check_branch
        %320 = sbr.rel (%p318) target = $region48
      $region47: #{efficientnet_b3_forward.5} parent=11 // pred_region
        _
      $region48: #{efficientnet_b3_forward.5} parent=11 // pred_fallthru
        _
      // Predicated region
      $region49: #{efficientnet_b3_forward.5} parent=11 // pred_check
        %p321 = pneg %p253
      $region50: #{efficientnet_b3_forward.5} parent=11 // pred_check_branch
        %323 = sbr.rel (%p321) target = $region52
      $region51: #{efficientnet_b3_forward.5} parent=11 // pred_region
        _
      $region52: #{efficientnet_b3_forward.5} parent=11 // pred_fallthru
        _
    $region12: #{efficientnet_b3_forward.5} parent=5 // pred_fallthru
      _
    %p324 = scmp.lt.s32.totalorder %s17, 2
    // Predicated region
    $region53: #{efficientnet_b3_forward.5} parent=5 // pred_check
      %p325 = pneg %p324
    $region54: #{efficientnet_b3_forward.5} parent=5 // pred_check_branch
      %327 = sbr.rel (%p325) target = $region56
    $region55: #{efficientnet_b3_forward.5} parent=5 // pred_region
      // Predicated region
      $region57: #{efficientnet_b3_forward.5} parent=55 // pred_check
        %p328 = pneg %p37
      $region58: #{efficientnet_b3_forward.5} parent=55 // pred_check_branch
        %330 = sbr.rel (%p328) target = $region60
      $region59: #{efficientnet_b3_forward.5} parent=55 // pred_region
        %p331 = scmp.lt.s32.totalorder %s17, 1
        %s332 = scalar_select %p331, %s17, 1
        %s333 = smul.addr %s332, 108
        %s334 = smul.addr %s333, 4
        %s335 = scalar_lea.vmem %s0, %s334
      $region60: #{efficientnet_b3_forward.5} parent=55 // pred_fallthru
        _
    $region56: #{efficientnet_b3_forward.5} parent=5 // pred_fallthru
      _
    %p336 = scmp.le.s32.totalorder 1, %s17
    %p337 = scmp.lt.s32.totalorder %s17, 3
    %p338 = pnand %p336, %p337
    %p339 = pneg %p338
    // Predicated region
    $region61: #{efficientnet_b3_forward.5} parent=5 // pred_check
      _
    $region62: #{efficientnet_b3_forward.5} parent=5 // pred_check_branch
      %341 = sbr.rel (%p338) target = $region64
    $region63: #{efficientnet_b3_forward.5} parent=5 // pred_region
      %s342 = ssub.s32 %s17, 1
      %p343 = scmp.lt.s32.totalorder %s22, 1
      %s344 = scalar_select %p343, %s22, 1
      %s345 = smul.addr %s344, 108
      %s346 = smul.addr %s345, 4
      %s347 = scalar_lea.vmem %s0, %s346
      %p348 = pneg %p43
      %p349 = pneg %p40
      %p350 = pneg %p64
      %p351 = pneg %p61
      %p352 = pneg %p85
      %p353 = pneg %p82
      %p354 = pneg %p106
      %p355 = pneg %p103
      %p356 = pneg %p127
      %p357 = pneg %p124
      %p358 = pneg %p148
      %p359 = pneg %p145
      %p360 = pneg %p169
      %p361 = pneg %p166
      %p362 = pneg %p190
      %p363 = pneg %p187
      %p364 = pneg %p211
      %p365 = pneg %p208
      %p366 = pneg %p232
      %p367 = pneg %p229
      %p368 = pneg %p253
      %p369 = pneg %p250
      %p370 = pneg %p279
      %p371 = pneg %p276
      %p372 = scmp.lt.s32.totalorder %s22, 1
      %s373 = scalar_select %p372, %s22, 1
      %s374 = smul.addr %s373, 16
      %s375 = smul.addr %s374, 4
      %s376 = scalar_lea.vmem %s11, %s375
      %p377 = scmp.lt.s32.totalorder %s22, 1
      %s378 = scalar_select %p377, %s22, 1
      %s379 = smul.addr %s378, 108
      %s380 = smul.addr %s379, 4
      %s381 = scalar_lea.vmem %s0, %s380
      %p382 = scmp.lt.s32.totalorder %s22, 1
      %s383 = scalar_select %p382, %s22, 1
      %s384 = smul.addr %s383, 16
      %s385 = smul.addr %s384, 4
      %s386 = scalar_lea.vmem %s11, %s385
      %v387 = vld [vmem:[%s381] sm:$0xf]
      %v388 = vld [vmem:[%s381 + $0x4] sm:$0xf]
      %v389 = vld [vmem:[%s381 + $0x8] sm:$0x1]
      %v390 = vld [vmem:[%s381 + $0xc] sm:$0xf]
      %v391 = vld [vmem:[%s381 + $0x10] sm:$0xf]
      %v392 = vld [vmem:[%s381 + $0x14] sm:$0x1]
      %v393 = vld [vmem:[%s381 + $0x18] sm:$0xf]
      %v394 = vld [vmem:[%s381 + $0x1c] sm:$0xf]
      %v395 = vld [vmem:[%s381 + $0x20] sm:$0x1]
      %v396 = vld [vmem:[%s381 + $0x24] sm:$0xf]
      %v397 = vld [vmem:[%s381 + $0x28] sm:$0xf]
      %v398 = vld [vmem:[%s381 + $0x2c] sm:$0x1]
      %v399 = vld [vmem:[%s381 + $0x30] sm:$0xf]
      %v400 = vld [vmem:[%s381 + $0x34] sm:$0xf]
      %v401 = vld [vmem:[%s381 + $0x38] sm:$0x1]
      %v402 = vld [vmem:[%s381 + $0x3c] sm:$0xf]
      %v403 = vld [vmem:[%s381 + $0x40] sm:$0xf]
      %v404 = vld [vmem:[%s381 + $0x44] sm:$0x1]
      %v405 = vld [vmem:[%s381 + $0x48] sm:$0xf]
      %v406 = vld [vmem:[%s381 + $0x4c] sm:$0xf]
      %v407 = vld [vmem:[%s381 + $0x50] sm:$0x1]
      %v408 = vld [vmem:[%s381 + $0x54] sm:$0xf]
      %v409 = vld [vmem:[%s381 + $0x58] sm:$0xf]
      %v410 = vld [vmem:[%s381 + $0x5c] sm:$0x1]
      %v411 = vld [vmem:[%s381 + $0x60] sm:$0xf]
      %v412 = vld [vmem:[%s381 + $0x64] sm:$0xf]
      %v413 = vld [vmem:[%s381 + $0x68] sm:$0x1]
      %v414 = vld [vmem:[%s381 + $0x6c] sm:$0xf]
      %v415 = vld [vmem:[%s381 + $0x70] sm:$0xf]
      %v416 = vld [vmem:[%s381 + $0x78] sm:$0xf]
      %v417 = vld [vmem:[%s381 + $0x7c] sm:$0xf]
      %v418 = vld [vmem:[%s381 + $0x84] sm:$0xf]
      %v419 = vld [vmem:[%s381 + $0x88] sm:$0xf]
      %v420 = vld [vmem:[%s381 + $0x90] sm:$0xf]
      %v421 = vld [vmem:[%s381 + $0x94] sm:$0xf]
      %v422 = vld [vmem:[%s381 + $0x9c] sm:$0xf]
      %v423 = vld [vmem:[%s381 + $0xa0] sm:$0xf]
      %v424 = vld [vmem:[%s381 + $0xa8] sm:$0xf]
      %v425 = vld [vmem:[%s381 + $0xac] sm:$0xf]
      %v426 = vld [vmem:[%s381 + $0xb4] sm:$0xf]
      %v427 = vld [vmem:[%s381 + $0xb8] sm:$0xf]
      %v428 = vld [vmem:[%s381 + $0xc0] sm:$0xf]
      %v429 = vld [vmem:[%s381 + $0xc4] sm:$0xf]
      %v430 = vld [vmem:[%s381 + $0xcc] sm:$0xf]
      %v431 = vld [vmem:[%s381 + $0xd0] sm:$0xf]
      %v432 = vld [vmem:[%s381 + $0xd8] sm:$0xf]
      %v433 = vld [vmem:[%s381 + $0xdc] sm:$0xf]
      %v434 = vld [vmem:[%s381 + $0xe0] sm:$0x1]
      %v435 = vld [vmem:[%s381 + $0xe4] sm:$0xf]
      %v436 = vld [vmem:[%s381 + $0xe8] sm:$0xf]
      %v437 = vld [vmem:[%s381 + $0xec] sm:$0x1]
      %v438 = vld [vmem:[%s381 + $0xf0] sm:$0xf]
      %v439 = vld [vmem:[%s381 + $0xf4] sm:$0xf]
      %v440 = vld [vmem:[%s381 + $0xf8] sm:$0x1]
      %v441 = vld [vmem:[%s381 + $0xfc] sm:$0xf]
      %v442 = vld [vmem:[%s381 + $0x100] sm:$0xf]
      %v443 = vld [vmem:[%s381 + $0x104] sm:$0x1]
      %v444 = vld [vmem:[%s381 + $0x108] sm:$0xf]
      %v445 = vld [vmem:[%s381 + $0x10c] sm:$0xf]
      %v446 = vld [vmem:[%s381 + $0x110] sm:$0x1]
      %v447 = vld [vmem:[%s381 + $0x114] sm:$0xf]
      %v448 = vld [vmem:[%s381 + $0x118] sm:$0xf]
      %v449 = vld [vmem:[%s381 + $0x11c] sm:$0x1]
      %v450 = vld [vmem:[%s381 + $0x120] sm:$0xf]
      %v451 = vld [vmem:[%s381 + $0x124] sm:$0xf]
      %v452 = vld [vmem:[%s381 + $0x128] sm:$0x1]
      %v453 = vld [vmem:[%s381 + $0x12c] sm:$0xf]
      %v454 = vld [vmem:[%s381 + $0x130] sm:$0xf]
      %v455 = vld [vmem:[%s381 + $0x134] sm:$0x1]
      %v456 = vld [vmem:[%s381 + $0x144] sm:$0xf]
      %v457 = vld [vmem:[%s381 + $0x148] sm:$0xf]
      %v458 = vld [vmem:[%s381 + $0x150] sm:$0xf]
      %v459 = vld [vmem:[%s381 + $0x154] sm:$0xf]
      %v460 = vld [vmem:[%s381 + $0x15c] sm:$0xf]
      %v461 = vld [vmem:[%s381 + $0x160] sm:$0xf]
      %v462 = vld [vmem:[%s381 + $0x168] sm:$0xf]
      %v463 = vld [vmem:[%s381 + $0x16c] sm:$0xf]
      %v464 = vld [vmem:[%s381 + $0x174] sm:$0xf]
      %v465 = vld [vmem:[%s381 + $0x178] sm:$0xf]
      %v466 = vld [vmem:[%s381 + $0x180] sm:$0xf]
      %v467 = vld [vmem:[%s381 + $0x184] sm:$0xf]
      %v468 = vld [vmem:[%s381 + $0x18c] sm:$0xf]
      %v469 = vld [vmem:[%s381 + $0x190] sm:$0xf]
      %v470 = vld [vmem:[%s381 + $0x198] sm:$0xf]
      %v471 = vld [vmem:[%s381 + $0x19c] sm:$0xf]
      %v472 = vunpack.c.l.bf16 %v387
      %v473 = vunpack.c.l.bf16 %v388
      %v474 = vunpack.c.l.bf16 %v389
      %v475 = vunpack.c.l.bf16 %v390
      %v476 = vunpack.c.l.bf16 %v391
      %v477 = vunpack.c.l.bf16 %v392
      %v478 = vunpack.c.l.bf16 %v393
      %v479 = vunpack.c.l.bf16 %v394
      %v480 = vunpack.c.l.bf16 %v395
      %v481 = vunpack.c.l.bf16 %v396
      %v482 = vunpack.c.l.bf16 %v397
      %v483 = vunpack.c.l.bf16 %v398
      %v484 = vunpack.c.l.bf16 %v399
      %v485 = vunpack.c.l.bf16 %v400
      %v486 = vunpack.c.l.bf16 %v401
      %v487 = vunpack.c.l.bf16 %v402
      %v488 = vunpack.c.l.bf16 %v403
      %v489 = vunpack.c.l.bf16 %v404
      %v490 = vunpack.c.l.bf16 %v405
      %v491 = vunpack.c.l.bf16 %v406
      %v492 = vunpack.c.l.bf16 %v407
      %v493 = vunpack.c.l.bf16 %v408
      %v494 = vunpack.c.l.bf16 %v409
      %v495 = vunpack.c.l.bf16 %v410
      %v496 = vunpack.c.l.bf16 %v411
      %v497 = vunpack.c.l.bf16 %v412
      %v498 = vunpack.c.l.bf16 %v413
      %v499 = vunpack.c.l.bf16 %v414
      %v500 = vunpack.c.l.bf16 %v415
      %v501 = vunpack.c.l.bf16 %v416
      %v502 = vunpack.c.l.bf16 %v417
      %v503 = vunpack.c.l.bf16 %v418
      %v504 = vunpack.c.l.bf16 %v419
      %v505 = vunpack.c.l.bf16 %v420
      %v506 = vunpack.c.l.bf16 %v421
      %v507 = vunpack.c.l.bf16 %v422
      %v508 = vunpack.c.l.bf16 %v423
      %v509 = vunpack.c.l.bf16 %v424
      %v510 = vunpack.c.l.bf16 %v425
      %v511 = vunpack.c.l.bf16 %v426
      %v512 = vunpack.c.l.bf16 %v427
      %v513 = vunpack.c.l.bf16 %v428
      %v514 = vunpack.c.l.bf16 %v429
      %v515 = vunpack.c.l.bf16 %v430
      %v516 = vunpack.c.l.bf16 %v431
      %v517 = vunpack.c.l.bf16 %v432
      %v518 = vunpack.c.l.bf16 %v433
      %v519 = vunpack.c.l.bf16 %v434
      %v520 = vunpack.c.l.bf16 %v435
      %v521 = vunpack.c.l.bf16 %v436
      %v522 = vunpack.c.l.bf16 %v437
      %v523 = vunpack.c.l.bf16 %v438
      %v524 = vunpack.c.l.bf16 %v439
      %v525 = vunpack.c.l.bf16 %v440
      %v526 = vunpack.c.l.bf16 %v441
      %v527 = vunpack.c.l.bf16 %v442
      %v528 = vunpack.c.l.bf16 %v443
      %v529 = vunpack.c.l.bf16 %v444
      %v530 = vunpack.c.l.bf16 %v445
      %v531 = vunpack.c.l.bf16 %v446
      %v532 = vunpack.c.l.bf16 %v447
      %v533 = vunpack.c.l.bf16 %v448
      %v534 = vunpack.c.l.bf16 %v449
      %v535 = vunpack.c.l.bf16 %v450
      %v536 = vunpack.c.l.bf16 %v451
      %v537 = vunpack.c.l.bf16 %v452
      %v538 = vunpack.c.l.bf16 %v453
      %v539 = vunpack.c.l.bf16 %v454
      %v540 = vunpack.c.l.bf16 %v455
      %v541 = vunpack.c.l.bf16 %v456
      %v542 = vunpack.c.l.bf16 %v457
      %v543 = vunpack.c.l.bf16 %v458
      %v544 = vunpack.c.l.bf16 %v459
      %v545 = vunpack.c.l.bf16 %v460
      %v546 = vunpack.c.l.bf16 %v461
      %v547 = vunpack.c.l.bf16 %v462
      %v548 = vunpack.c.l.bf16 %v463
      %v549 = vunpack.c.l.bf16 %v464
      %v550 = vunpack.c.l.bf16 %v465
      %v551 = vunpack.c.l.bf16 %v466
      %v552 = vunpack.c.l.bf16 %v467
      %v553 = vunpack.c.l.bf16 %v468
      %v554 = vunpack.c.l.bf16 %v469
      %v555 = vunpack.c.l.bf16 %v470
      %v556 = vunpack.c.l.bf16 %v471
      %v557 = vld [vmem:[%s1] sm:$0xff]
      %v558 = vld [vmem:[%s1 + $0x8] sm:$0x1]
      %v559 = vperm.slane %v557, 0
      %v560 = vmul.f32 %v472, %v559
      %v561 = vmul.f32 %v473, %v559
      %v562 = vmul.f32 %v475, %v559
      %v563 = vmul.f32 %v476, %v559
      %v564 = vmul.f32 %v478, %v559
      %v565 = vmul.f32 %v479, %v559
      %v566 = vmul.f32 %v481, %v559
      %v567 = vmul.f32 %v482, %v559
      %v568 = vmul.f32 %v484, %v559
      %v569 = vmul.f32 %v485, %v559
      %v570 = vmul.f32 %v487, %v559
      %v571 = vmul.f32 %v488, %v559
      %v572 = vmul.f32 %v490, %v559
      %v573 = vmul.f32 %v491, %v559
      %v574 = vmul.f32 %v493, %v559
      %v575 = vmul.f32 %v494, %v559
      %v576 = vperm.slane %v557, 1
      %v577 = vmul.f32 %v499, %v576
      %v578 = vmul.f32 %v500, %v576
      %v579 = vmul.f32 %v501, %v576
      %v580 = vmul.f32 %v502, %v576
      %v581 = vmul.f32 %v503, %v576
      %v582 = vmul.f32 %v504, %v576
      %v583 = vmul.f32 %v505, %v576
      %v584 = vmul.f32 %v506, %v576
      %v585 = vmul.f32 %v507, %v576
      %v586 = vmul.f32 %v508, %v576
      %v587 = vmul.f32 %v509, %v576
      %v588 = vmul.f32 %v510, %v576
      %v589 = vmul.f32 %v511, %v576
      %v590 = vmul.f32 %v512, %v576
      %v591 = vmul.f32 %v513, %v576
      %v592 = vmul.f32 %v514, %v576
      %v593 = vadd.f32 %v560, %v577
      %v594 = vadd.f32 %v561, %v578
      %v595 = vadd.f32 %v562, %v579
      %v596 = vadd.f32 %v563, %v580
      %v597 = vadd.f32 %v564, %v581
      %v598 = vadd.f32 %v565, %v582
      %v599 = vadd.f32 %v566, %v583
      %v600 = vadd.f32 %v567, %v584
      %v601 = vadd.f32 %v568, %v585
      %v602 = vadd.f32 %v569, %v586
      %v603 = vadd.f32 %v570, %v587
      %v604 = vadd.f32 %v571, %v588
      %v605 = vadd.f32 %v572, %v589
      %v606 = vadd.f32 %v573, %v590
      %v607 = vadd.f32 %v574, %v591
      %v608 = vadd.f32 %v575, %v592
      %v609 = vperm.slane %v557, 2
      %v610 = vmul.f32 %v472, %v609
      %v611 = vmul.f32 %v473, %v609
      %v612 = vmul.f32 %v474, %v609
      %v613 = vmul.f32 %v475, %v609
      %v614 = vmul.f32 %v476, %v609
      %v615 = vmul.f32 %v477, %v609
      %v616 = vmul.f32 %v478, %v609
      %v617 = vmul.f32 %v479, %v609
      %v618 = vmul.f32 %v480, %v609
      %v619 = vmul.f32 %v481, %v609
      %v620 = vmul.f32 %v482, %v609
      %v621 = vmul.f32 %v483, %v609
      %v622 = vmul.f32 %v484, %v609
      %v623 = vmul.f32 %v485, %v609
      %v624 = vmul.f32 %v486, %v609
      %v625 = vmul.f32 %v487, %v609
      %v626 = vmul.f32 %v488, %v609
      %v627 = vmul.f32 %v489, %v609
      %v628 = vmul.f32 %v490, %v609
      %v629 = vmul.f32 %v491, %v609
      %v630 = vmul.f32 %v492, %v609
      %v631 = vmul.f32 %v493, %v609
      %v632 = vmul.f32 %v494, %v609
      %v633 = vmul.f32 %v495, %v609
      %vm658 = vcmask 1046528
      %v659 = vrot.slane %v610, 1
      %v660 = vrot.slane %v611, 1
      %v661 = vsel %vm658, %v659, %v660
      %v662 = vrot.slane %v612, 1
      %v663 = vsel %vm658, %v660, %v662
      %v664 = vrot.slane %v613, 1
      %v665 = vrot.slane %v614, 1
      %v666 = vsel %vm658, %v664, %v665
      %v667 = vrot.slane %v615, 1
      %v668 = vsel %vm658, %v665, %v667
      %v669 = vrot.slane %v616, 1
      %v670 = vrot.slane %v617, 1
      %v671 = vsel %vm658, %v669, %v670
      %v672 = vrot.slane %v618, 1
      %v673 = vsel %vm658, %v670, %v672
      %v674 = vrot.slane %v619, 1
      %v675 = vrot.slane %v620, 1
      %v676 = vsel %vm658, %v674, %v675
      %v677 = vrot.slane %v621, 1
      %v678 = vsel %vm658, %v675, %v677
      %v679 = vrot.slane %v622, 1
      %v680 = vrot.slane %v623, 1
      %v681 = vsel %vm658, %v679, %v680
      %v682 = vrot.slane %v624, 1
      %v683 = vsel %vm658, %v680, %v682
      %v684 = vrot.slane %v625, 1
      %v685 = vrot.slane %v626, 1
      %v686 = vsel %vm658, %v684, %v685
      %v687 = vrot.slane %v627, 1
      %v688 = vsel %vm658, %v685, %v687
      %v689 = vrot.slane %v628, 1
      %v690 = vrot.slane %v629, 1
      %v691 = vsel %vm658, %v689, %v690
      %v692 = vrot.slane %v630, 1
      %v693 = vsel %vm658, %v690, %v692
      %v694 = vrot.slane %v631, 1
      %v695 = vrot.slane %v632, 1
      %v696 = vsel %vm658, %v694, %v695
      %v697 = vrot.slane %v633, 1
      %v698 = vsel %vm658, %v695, %v697
      %v715 = vadd.f32 %v593, %v661
      %v716 = vadd.f32 %v594, %v663
      %v717 = vadd.f32 %v595, %v666
      %v718 = vadd.f32 %v596, %v668
      %v719 = vadd.f32 %v597, %v671
      %v720 = vadd.f32 %v598, %v673
      %v721 = vadd.f32 %v599, %v676
      %v722 = vadd.f32 %v600, %v678
      %v723 = vadd.f32 %v601, %v681
      %v724 = vadd.f32 %v602, %v683
      %v725 = vadd.f32 %v603, %v686
      %v726 = vadd.f32 %v604, %v688
      %v727 = vadd.f32 %v605, %v691
      %v728 = vadd.f32 %v606, %v693
      %v729 = vadd.f32 %v607, %v696
      %v730 = vadd.f32 %v608, %v698
      %v731 = vperm.slane %v557, 3
      %v732 = vmul.f32 %v517, %v731
      %v733 = vmul.f32 %v518, %v731
      %v734 = vmul.f32 %v520, %v731
      %v735 = vmul.f32 %v521, %v731
      %v736 = vmul.f32 %v523, %v731
      %v737 = vmul.f32 %v524, %v731
      %v738 = vmul.f32 %v526, %v731
      %v739 = vmul.f32 %v527, %v731
      %v740 = vmul.f32 %v529, %v731
      %v741 = vmul.f32 %v530, %v731
      %v742 = vmul.f32 %v532, %v731
      %v743 = vmul.f32 %v533, %v731
      %v744 = vmul.f32 %v535, %v731
      %v745 = vmul.f32 %v536, %v731
      %v746 = vmul.f32 %v538, %v731
      %v747 = vmul.f32 %v539, %v731
      %v748 = vadd.f32 %v715, %v732
      %v749 = vadd.f32 %v716, %v733
      %v750 = vadd.f32 %v717, %v734
      %v751 = vadd.f32 %v718, %v735
      %v752 = vadd.f32 %v719, %v736
      %v753 = vadd.f32 %v720, %v737
      %v754 = vadd.f32 %v721, %v738
      %v755 = vadd.f32 %v722, %v739
      %v756 = vadd.f32 %v723, %v740
      %v757 = vadd.f32 %v724, %v741
      %v758 = vadd.f32 %v725, %v742
      %v759 = vadd.f32 %v726, %v743
      %v760 = vadd.f32 %v727, %v744
      %v761 = vadd.f32 %v728, %v745
      %v762 = vadd.f32 %v729, %v746
      %v763 = vadd.f32 %v730, %v747
      %v764 = vperm.slane %v557, 4
      %v765 = vmul.f32 %v541, %v764
      %v766 = vmul.f32 %v542, %v764
      %v767 = vmul.f32 %v543, %v764
      %v768 = vmul.f32 %v544, %v764
      %v769 = vmul.f32 %v545, %v764
      %v770 = vmul.f32 %v546, %v764
      %v771 = vmul.f32 %v547, %v764
      %v772 = vmul.f32 %v548, %v764
      %v773 = vmul.f32 %v549, %v764
      %v774 = vmul.f32 %v550, %v764
      %v775 = vmul.f32 %v551, %v764
      %v776 = vmul.f32 %v552, %v764
      %v777 = vmul.f32 %v553, %v764
      %v778 = vmul.f32 %v554, %v764
      %v779 = vmul.f32 %v555, %v764
      %v780 = vmul.f32 %v556, %v764
      %v781 = vadd.f32 %v748, %v765
      %v782 = vadd.f32 %v749, %v766
      %v783 = vadd.f32 %v750, %v767
      %v784 = vadd.f32 %v751, %v768
      %v785 = vadd.f32 %v752, %v769
      %v786 = vadd.f32 %v753, %v770
      %v787 = vadd.f32 %v754, %v771
      %v788 = vadd.f32 %v755, %v772
      %v789 = vadd.f32 %v756, %v773
      %v790 = vadd.f32 %v757, %v774
      %v791 = vadd.f32 %v758, %v775
      %v792 = vadd.f32 %v759, %v776
      %v793 = vadd.f32 %v760, %v777
      %v794 = vadd.f32 %v761, %v778
      %v795 = vadd.f32 %v762, %v779
      %v796 = vadd.f32 %v763, %v780
      %v797 = vperm.slane %v557, 5
      %v798 = vmul.f32 %v517, %v797
      %v799 = vmul.f32 %v518, %v797
      %v800 = vmul.f32 %v519, %v797
      %v801 = vmul.f32 %v520, %v797
      %v802 = vmul.f32 %v521, %v797
      %v803 = vmul.f32 %v522, %v797
      %v804 = vmul.f32 %v523, %v797
      %v805 = vmul.f32 %v524, %v797
      %v806 = vmul.f32 %v525, %v797
      %v807 = vmul.f32 %v526, %v797
      %v808 = vmul.f32 %v527, %v797
      %v809 = vmul.f32 %v528, %v797
      %v810 = vmul.f32 %v529, %v797
      %v811 = vmul.f32 %v530, %v797
      %v812 = vmul.f32 %v531, %v797
      %v813 = vmul.f32 %v532, %v797
      %v814 = vmul.f32 %v533, %v797
      %v815 = vmul.f32 %v534, %v797
      %v816 = vmul.f32 %v535, %v797
      %v817 = vmul.f32 %v536, %v797
      %v818 = vmul.f32 %v537, %v797
      %v819 = vmul.f32 %v538, %v797
      %v820 = vmul.f32 %v539, %v797
      %v821 = vmul.f32 %v540, %v797
      %v846 = vrot.slane %v798, 1
      %v847 = vrot.slane %v799, 1
      %v848 = vsel %vm658, %v846, %v847
      %v849 = vrot.slane %v800, 1
      %v850 = vsel %vm658, %v847, %v849
      %v851 = vrot.slane %v801, 1
      %v852 = vrot.slane %v802, 1
      %v853 = vsel %vm658, %v851, %v852
      %v854 = vrot.slane %v803, 1
      %v855 = vsel %vm658, %v852, %v854
      %v856 = vrot.slane %v804, 1
      %v857 = vrot.slane %v805, 1
      %v858 = vsel %vm658, %v856, %v857
      %v859 = vrot.slane %v806, 1
      %v860 = vsel %vm658, %v857, %v859
      %v861 = vrot.slane %v807, 1
      %v862 = vrot.slane %v808, 1
      %v863 = vsel %vm658, %v861, %v862
      %v864 = vrot.slane %v809, 1
      %v865 = vsel %vm658, %v862, %v864
      %v866 = vrot.slane %v810, 1
      %v867 = vrot.slane %v811, 1
      %v868 = vsel %vm658, %v866, %v867
      %v869 = vrot.slane %v812, 1
      %v870 = vsel %vm658, %v867, %v869
      %v871 = vrot.slane %v813, 1
      %v872 = vrot.slane %v814, 1
      %v873 = vsel %vm658, %v871, %v872
      %v874 = vrot.slane %v815, 1
      %v875 = vsel %vm658, %v872, %v874
      %v876 = vrot.slane %v816, 1
      %v877 = vrot.slane %v817, 1
      %v878 = vsel %vm658, %v876, %v877
      %v879 = vrot.slane %v818, 1
      %v880 = vsel %vm658, %v877, %v879
      %v881 = vrot.slane %v819, 1
      %v882 = vrot.slane %v820, 1
      %v883 = vsel %vm658, %v881, %v882
      %v884 = vrot.slane %v821, 1
      %v885 = vsel %vm658, %v882, %v884
      %v902 = vadd.f32 %v781, %v848
      %v903 = vadd.f32 %v782, %v850
      %v904 = vadd.f32 %v783, %v853
      %v905 = vadd.f32 %v784, %v855
      %v906 = vadd.f32 %v785, %v858
      %v907 = vadd.f32 %v786, %v860
      %v908 = vadd.f32 %v787, %v863
      %v909 = vadd.f32 %v788, %v865
      %v910 = vadd.f32 %v789, %v868
      %v911 = vadd.f32 %v790, %v870
      %v912 = vadd.f32 %v791, %v873
      %v913 = vadd.f32 %v792, %v875
      %v914 = vadd.f32 %v793, %v878
      %v915 = vadd.f32 %v794, %v880
      %v916 = vadd.f32 %v795, %v883
      %v917 = vadd.f32 %v796, %v885
      %v918 = vperm.slane %v557, 6
      %v919 = vmul.f32 %v475, %v918
      %v920 = vmul.f32 %v476, %v918
      %v921 = vmul.f32 %v478, %v918
      %v922 = vmul.f32 %v479, %v918
      %v923 = vmul.f32 %v481, %v918
      %v924 = vmul.f32 %v482, %v918
      %v925 = vmul.f32 %v484, %v918
      %v926 = vmul.f32 %v485, %v918
      %v927 = vmul.f32 %v487, %v918
      %v928 = vmul.f32 %v488, %v918
      %v929 = vmul.f32 %v490, %v918
      %v930 = vmul.f32 %v491, %v918
      %v931 = vmul.f32 %v493, %v918
      %v932 = vmul.f32 %v494, %v918
      %v933 = vmul.f32 %v496, %v918
      %v934 = vmul.f32 %v497, %v918
      %v935 = vadd.f32 %v902, %v919
      %v936 = vadd.f32 %v903, %v920
      %v937 = vadd.f32 %v904, %v921
      %v938 = vadd.f32 %v905, %v922
      %v939 = vadd.f32 %v906, %v923
      %v940 = vadd.f32 %v907, %v924
      %v941 = vadd.f32 %v908, %v925
      %v942 = vadd.f32 %v909, %v926
      %v943 = vadd.f32 %v910, %v927
      %v944 = vadd.f32 %v911, %v928
      %v945 = vadd.f32 %v912, %v929
      %v946 = vadd.f32 %v913, %v930
      %v947 = vadd.f32 %v914, %v931
      %v948 = vadd.f32 %v915, %v932
      %v949 = vadd.f32 %v916, %v933
      %v950 = vadd.f32 %v917, %v934
      %v951 = vperm.slane %v557, 7
      %v952 = vmul.f32 %v501, %v951
      %v953 = vmul.f32 %v502, %v951
      %v954 = vmul.f32 %v503, %v951
      %v955 = vmul.f32 %v504, %v951
      %v956 = vmul.f32 %v505, %v951
      %v957 = vmul.f32 %v506, %v951
      %v958 = vmul.f32 %v507, %v951
      %v959 = vmul.f32 %v508, %v951
      %v960 = vmul.f32 %v509, %v951
      %v961 = vmul.f32 %v510, %v951
      %v962 = vmul.f32 %v511, %v951
      %v963 = vmul.f32 %v512, %v951
      %v964 = vmul.f32 %v513, %v951
      %v965 = vmul.f32 %v514, %v951
      %v966 = vmul.f32 %v515, %v951
      %v967 = vmul.f32 %v516, %v951
      %v968 = vadd.f32 %v935, %v952
      %v969 = vadd.f32 %v936, %v953
      %v970 = vadd.f32 %v937, %v954
      %v971 = vadd.f32 %v938, %v955
      %v972 = vadd.f32 %v939, %v956
      %v973 = vadd.f32 %v940, %v957
      %v974 = vadd.f32 %v941, %v958
      %v975 = vadd.f32 %v942, %v959
      %v976 = vadd.f32 %v943, %v960
      %v977 = vadd.f32 %v944, %v961
      %v978 = vadd.f32 %v945, %v962
      %v979 = vadd.f32 %v946, %v963
      %v980 = vadd.f32 %v947, %v964
      %v981 = vadd.f32 %v948, %v965
      %v982 = vadd.f32 %v949, %v966
      %v983 = vadd.f32 %v950, %v967
      %v984 = vperm.slane %v558, 0
      %v985 = vmul.f32 %v475, %v984
      %v986 = vmul.f32 %v476, %v984
      %v987 = vmul.f32 %v477, %v984
      %v988 = vmul.f32 %v478, %v984
      %v989 = vmul.f32 %v479, %v984
      %v990 = vmul.f32 %v480, %v984
      %v991 = vmul.f32 %v481, %v984
      %v992 = vmul.f32 %v482, %v984
      %v993 = vmul.f32 %v483, %v984
      %v994 = vmul.f32 %v484, %v984
      %v995 = vmul.f32 %v485, %v984
      %v996 = vmul.f32 %v486, %v984
      %v997 = vmul.f32 %v487, %v984
      %v998 = vmul.f32 %v488, %v984
      %v999 = vmul.f32 %v489, %v984
      %v1000 = vmul.f32 %v490, %v984
      %v1001 = vmul.f32 %v491, %v984
      %v1002 = vmul.f32 %v492, %v984
      %v1003 = vmul.f32 %v493, %v984
      %v1004 = vmul.f32 %v494, %v984
      %v1005 = vmul.f32 %v495, %v984
      %v1006 = vmul.f32 %v496, %v984
      %v1007 = vmul.f32 %v497, %v984
      %v1008 = vmul.f32 %v498, %v984
      %v1033 = vrot.slane %v985, 1
      %v1034 = vrot.slane %v986, 1
      %v1035 = vsel %vm658, %v1033, %v1034
      %v1036 = vrot.slane %v987, 1
      %v1037 = vsel %vm658, %v1034, %v1036
      %v1038 = vrot.slane %v988, 1
      %v1039 = vrot.slane %v989, 1
      %v1040 = vsel %vm658, %v1038, %v1039
      %v1041 = vrot.slane %v990, 1
      %v1042 = vsel %vm658, %v1039, %v1041
      %v1043 = vrot.slane %v991, 1
      %v1044 = vrot.slane %v992, 1
      %v1045 = vsel %vm658, %v1043, %v1044
      %v1046 = vrot.slane %v993, 1
      %v1047 = vsel %vm658, %v1044, %v1046
      %v1048 = vrot.slane %v994, 1
      %v1049 = vrot.slane %v995, 1
      %v1050 = vsel %vm658, %v1048, %v1049
      %v1051 = vrot.slane %v996, 1
      %v1052 = vsel %vm658, %v1049, %v1051
      %v1053 = vrot.slane %v997, 1
      %v1054 = vrot.slane %v998, 1
      %v1055 = vsel %vm658, %v1053, %v1054
      %v1056 = vrot.slane %v999, 1
      %v1057 = vsel %vm658, %v1054, %v1056
      %v1058 = vrot.slane %v1000, 1
      %v1059 = vrot.slane %v1001, 1
      %v1060 = vsel %vm658, %v1058, %v1059
      %v1061 = vrot.slane %v1002, 1
      %v1062 = vsel %vm658, %v1059, %v1061
      %v1063 = vrot.slane %v1003, 1
      %v1064 = vrot.slane %v1004, 1
      %v1065 = vsel %vm658, %v1063, %v1064
      %v1066 = vrot.slane %v1005, 1
      %v1067 = vsel %vm658, %v1064, %v1066
      %v1068 = vrot.slane %v1006, 1
      %v1069 = vrot.slane %v1007, 1
      %v1070 = vsel %vm658, %v1068, %v1069
      %v1071 = vrot.slane %v1008, 1
      %v1072 = vsel %vm658, %v1069, %v1071
      %v1089 = vadd.f32 %v968, %v1035
      %v1090 = vadd.f32 %v969, %v1037
      %v1091 = vadd.f32 %v970, %v1040
      %v1092 = vadd.f32 %v971, %v1042
      %v1093 = vadd.f32 %v972, %v1045
      %v1094 = vadd.f32 %v973, %v1047
      %v1095 = vadd.f32 %v974, %v1050
      %v1096 = vadd.f32 %v975, %v1052
      %v1097 = vadd.f32 %v976, %v1055
      %v1098 = vadd.f32 %v977, %v1057
      %v1099 = vadd.f32 %v978, %v1060
      %v1100 = vadd.f32 %v979, %v1062
      %v1101 = vadd.f32 %v980, %v1065
      %v1102 = vadd.f32 %v981, %v1067
      %v1103 = vadd.f32 %v982, %v1070
      %v1104 = vadd.f32 %v983, %v1072
      %v1105 = vld [vmem:[%s2] sm:$0x1]
      %v1107 = vperm.slane %v1105, 0
      %v1109 = vmul.f32 %v1089, %v1107
      %v1110 = vmul.f32 %v1090, %v1107
      %v1111 = vmul.f32 %v1091, %v1107
      %v1112 = vmul.f32 %v1092, %v1107
      %v1113 = vmul.f32 %v1093, %v1107
      %v1114 = vmul.f32 %v1094, %v1107
      %v1115 = vmul.f32 %v1095, %v1107
      %v1116 = vmul.f32 %v1096, %v1107
      %v1117 = vmul.f32 %v1097, %v1107
      %v1118 = vmul.f32 %v1098, %v1107
      %v1119 = vmul.f32 %v1099, %v1107
      %v1120 = vmul.f32 %v1100, %v1107
      %v1121 = vmul.f32 %v1101, %v1107
      %v1122 = vmul.f32 %v1102, %v1107
      %v1123 = vmul.f32 %v1103, %v1107
      %v1124 = vmul.f32 %v1104, %v1107
      %v1125 = vld [vmem:[%s3] sm:$0x1]
      %v1127 = vperm.slane %v1125, 0
      %v1129 = vadd.f32 %v1109, %v1127
      %v1130 = vadd.f32 %v1110, %v1127
      %v1131 = vadd.f32 %v1111, %v1127
      %v1132 = vadd.f32 %v1112, %v1127
      %v1133 = vadd.f32 %v1113, %v1127
      %v1134 = vadd.f32 %v1114, %v1127
      %v1135 = vadd.f32 %v1115, %v1127
      %v1136 = vadd.f32 %v1116, %v1127
      %v1137 = vadd.f32 %v1117, %v1127
      %v1138 = vadd.f32 %v1118, %v1127
      %v1139 = vadd.f32 %v1119, %v1127
      %v1140 = vadd.f32 %v1120, %v1127
      %v1141 = vadd.f32 %v1121, %v1127
      %v1142 = vadd.f32 %v1122, %v1127
      %v1143 = vadd.f32 %v1123, %v1127
      %v1144 = vadd.f32 %v1124, %v1127
      %v1145 = vsub.f32 0.0, %v1129
      %v1146 = vsub.f32 0.0, %v1130
      %v1147 = vsub.f32 0.0, %v1131
      %v1148 = vsub.f32 0.0, %v1132
      %v1149 = vsub.f32 0.0, %v1133
      %v1150 = vsub.f32 0.0, %v1134
      %v1151 = vsub.f32 0.0, %v1135
      %v1152 = vsub.f32 0.0, %v1136
      %v1153 = vsub.f32 0.0, %v1137
      %v1154 = vsub.f32 0.0, %v1138
      %v1155 = vsub.f32 0.0, %v1139
      %v1156 = vsub.f32 0.0, %v1140
      %v1157 = vsub.f32 0.0, %v1141
      %v1158 = vsub.f32 0.0, %v1142
      %v1159 = vsub.f32 0.0, %v1143
      %v1160 = vsub.f32 0.0, %v1144
      %v1161 = vmin.f32 %v1145, 60.0
      %v1162 = vmin.f32 %v1146, 60.0
      %v1163 = vmin.f32 %v1147, 60.0
      %v1164 = vmin.f32 %v1148, 60.0
      %v1165 = vmin.f32 %v1149, 60.0
      %v1166 = vmin.f32 %v1150, 60.0
      %v1167 = vmin.f32 %v1151, 60.0
      %v1168 = vmin.f32 %v1152, 60.0
      %v1169 = vmin.f32 %v1153, 60.0
      %v1170 = vmin.f32 %v1154, 60.0
      %v1171 = vmin.f32 %v1155, 60.0
      %v1172 = vmin.f32 %v1156, 60.0
      %v1173 = vmin.f32 %v1157, 60.0
      %v1174 = vmin.f32 %v1158, 60.0
      %v1175 = vmin.f32 %v1159, 60.0
      %v1176 = vmin.f32 %v1160, 60.0
      %v1177 = vmul.f32 %v1161, 1.442695
      %v1178 = vpow.pop %v1177
      %v1179 = vmul.f32 %v1162, 1.442695
      %v1180 = vpow.pop %v1179
      %v1181 = vmul.f32 %v1163, 1.442695
      %v1182 = vpow.pop %v1181
      %v1183 = vmul.f32 %v1164, 1.442695
      %v1184 = vpow.pop %v1183
      %v1185 = vmul.f32 %v1165, 1.442695
      %v1186 = vpow.pop %v1185
      %v1187 = vmul.f32 %v1166, 1.442695
      %v1188 = vpow.pop %v1187
      %v1189 = vmul.f32 %v1167, 1.442695
      %v1190 = vpow.pop %v1189
      %v1191 = vmul.f32 %v1168, 1.442695
      %v1192 = vpow.pop %v1191
      %v1193 = vmul.f32 %v1169, 1.442695
      %v1194 = vpow.pop %v1193
      %v1195 = vmul.f32 %v1170, 1.442695
      %v1196 = vpow.pop %v1195
      %v1197 = vmul.f32 %v1171, 1.442695
      %v1198 = vpow.pop %v1197
      %v1199 = vmul.f32 %v1172, 1.442695
      %v1200 = vpow.pop %v1199
      %v1201 = vmul.f32 %v1173, 1.442695
      %v1202 = vpow.pop %v1201
      %v1203 = vmul.f32 %v1174, 1.442695
      %v1204 = vpow.pop %v1203
      %v1205 = vmul.f32 %v1175, 1.442695
      %v1206 = vpow.pop %v1205
      %v1207 = vmul.f32 %v1176, 1.442695
      %v1208 = vpow.pop %v1207
      %v1209 = vadd.f32 %v1178, 1.0
      %v1210 = vadd.f32 %v1180, 1.0
      %v1211 = vadd.f32 %v1182, 1.0
      %v1212 = vadd.f32 %v1184, 1.0
      %v1213 = vadd.f32 %v1186, 1.0
      %v1214 = vadd.f32 %v1188, 1.0
      %v1215 = vadd.f32 %v1190, 1.0
      %v1216 = vadd.f32 %v1192, 1.0
      %v1217 = vadd.f32 %v1194, 1.0
      %v1218 = vadd.f32 %v1196, 1.0
      %v1219 = vadd.f32 %v1198, 1.0
      %v1220 = vadd.f32 %v1200, 1.0
      %v1221 = vadd.f32 %v1202, 1.0
      %v1222 = vadd.f32 %v1204, 1.0
      %v1223 = vadd.f32 %v1206, 1.0
      %v1224 = vadd.f32 %v1208, 1.0
      %v1225 = vrcp.pop %v1209
      %v1226 = vrcp.pop %v1210
      %v1227 = vrcp.pop %v1211
      %v1228 = vrcp.pop %v1212
      %v1229 = vrcp.pop %v1213
      %v1230 = vrcp.pop %v1214
      %v1231 = vrcp.pop %v1215
      %v1232 = vrcp.pop %v1216
      %v1233 = vrcp.pop %v1217
      %v1234 = vrcp.pop %v1218
      %v1235 = vrcp.pop %v1219
      %v1236 = vrcp.pop %v1220
      %v1237 = vrcp.pop %v1221
      %v1238 = vrcp.pop %v1222
      %v1239 = vrcp.pop %v1223
      %v1240 = vrcp.pop %v1224
      %v1241 = vmul.f32 %v1129, %v1225
      %v1242 = vmul.f32 %v1130, %v1226
      %v1243 = vmul.f32 %v1131, %v1227
      %v1244 = vmul.f32 %v1132, %v1228
      %v1245 = vmul.f32 %v1133, %v1229
      %v1246 = vmul.f32 %v1134, %v1230
      %v1247 = vmul.f32 %v1135, %v1231
      %v1248 = vmul.f32 %v1136, %v1232
      %v1249 = vmul.f32 %v1137, %v1233
      %v1250 = vmul.f32 %v1138, %v1234
      %v1251 = vmul.f32 %v1139, %v1235
      %v1252 = vmul.f32 %v1140, %v1236
      %v1253 = vmul.f32 %v1141, %v1237
      %v1254 = vmul.f32 %v1142, %v1238
      %v1255 = vmul.f32 %v1143, %v1239
      %v1256 = vmul.f32 %v1144, %v1240
      %v1257 = vadd.f32 %v1241, %v1242
      %v1258 = vadd.f32 %v1257, %v1243
      %v1259 = vadd.f32 %v1258, %v1244
      %v1260 = vadd.f32 %v1259, %v1245
      %v1261 = vadd.f32 %v1260, %v1246
      %v1262 = vadd.f32 %v1261, %v1247
      %v1263 = vadd.f32 %v1262, %v1248
      %v1264 = vadd.f32 %v1263, %v1249
      %v1265 = vadd.f32 %v1264, %v1250
      %v1266 = vadd.f32 %v1265, %v1251
      %v1267 = vadd.f32 %v1266, %v1252
      %v1268 = vadd.f32 %v1267, %v1253
      %v1269 = vadd.f32 %v1268, %v1254
      %v1270 = vadd.f32 %v1269, %v1255
      %v1271 = vadd.f32 %v1270, %v1256
      %v1272 = vrot.slane %v1271, 4
      %v1273 = vadd.f32 %v1271, %v1272
      %v1274 = vrot.slane %v1273, 2
      %v1275 = vadd.f32 %v1273, %v1274
      %v1276 = vrot.slane %v1275, 1
      %v1277 = vadd.f32 %v1275, %v1276
      %v1278 = vrcp.pop 128.0
      %v1279 = vmul.f32 128.0, %v1278
      %v1280 = vsub.f32 1.0, %v1279
      %v1281 = vmul.f32 %v1278, %v1280
      %v1282 = vadd.f32 %v1278, %v1281
      %vm1283 = vweird.f32 %v1278
      %v1284 = vsel %vm1283, %v1278, %v1282
      %v1285 = vmul.f32 %v1277, %v1284
      %v1286 = vld [vmem:[%s4] sm:$0xff]
      %v1287 = vld [vmem:[%s4 + $0x8] sm:$0xff]
      %v1288 = vld [vmem:[%s4 + $0x10] sm:$0xff]
      %v1289 = vld [vmem:[%s4 + $0x18] sm:$0xff]
      %v1290 = vld [vmem:[%s4 + $0x20] sm:$0xff]
      %v1291 = vld [vmem:[%s4 + $0x28] sm:$0xff]
      %v1292 = vld [vmem:[%s4 + $0x30] sm:$0xff]
      %v1293 = vld [vmem:[%s4 + $0x38] sm:$0xff]
      %v1294 = vld [vmem:[%s4 + $0x40] sm:$0xff]
      %v1295 = vld [vmem:[%s4 + $0x48] sm:$0xff]
      %v1296 = vld [vmem:[%s4 + $0x50] sm:$0xff]
      %v1297 = vld [vmem:[%s4 + $0x58] sm:$0xff]
      %v1298 = vld [vmem:[%s4 + $0x60] sm:$0xff]
      %v1299 = vld [vmem:[%s4 + $0x68] sm:$0xff]
      %v1300 = vld [vmem:[%s4 + $0x70] sm:$0xff]
      %v1301 = vld [vmem:[%s4 + $0x78] sm:$0xff]
      %v1302 = vld [vmem:[%s5] sm:$0x1]
      %1303 = vmatpush.msra.mxu0 %v1301
      %1304 = vmatpush.msra.mxu0 %v1300
      %1305 = vmatpush.msra.mxu0 %v1299
      %1306 = vmatpush.msra.mxu0 %v1298
      %1307 = vmatpush.msra.mxu0 %v1297
      %1308 = vmatpush.msra.mxu0 %v1296
      %1309 = vmatpush.msra.mxu0 %v1295
      %1310 = vmatpush.msra.mxu0 %v1294
      %1311 = vmatpush.msra.mxu0 %v1293
      %1312 = vmatpush.msra.mxu0 %v1292
      %1313 = vmatpush.msra.mxu0 %v1291
      %1314 = vmatpush.msra.mxu0 %v1290
      %1315 = vmatpush.msra.mxu0 %v1289
      %1316 = vmatpush.msra.mxu0 %v1288
      %1317 = vmatpush.msra.mxu0 %v1287
      %1318 = vmatpush.msra.mxu0 %v1286
      %1319 = vmatmul.f32.gmra.mxu0 %v1285
      %v1320 = vpop.f32.mrf.mxu0
      %v1321 = vadd.f32 %v1302, %v1320
      %1322 = vdwg.mxu0
      %v1323 = vsub.f32 0.0, %v1321
      %v1324 = vmin.f32 %v1323, 60.0
      %v1325 = vmul.f32 %v1324, 1.442695
      %v1326 = vpow.pop %v1325
      %v1327 = vadd.f32 %v1326, 1.0
      %v1328 = vrcp.pop %v1327
      %v1329 = vmul.f32 %v1321, %v1328
      %v1330 = vld [vmem:[%s6] sm:$0xff]
      %v1331 = vld [vmem:[%s6 + $0x8] sm:$0xff]
      %v1332 = vld [vmem:[%s6 + $0x10] sm:$0xff]
      %v1333 = vld [vmem:[%s6 + $0x18] sm:$0xff]
      %v1334 = vld [vmem:[%s6 + $0x20] sm:$0xff]
      %v1335 = vld [vmem:[%s6 + $0x28] sm:$0xff]
      %v1336 = vld [vmem:[%s6 + $0x30] sm:$0xff]
      %v1337 = vld [vmem:[%s6 + $0x38] sm:$0xff]
      %v1338 = vld [vmem:[%s6 + $0x40] sm:$0xff]
      %v1339 = vld [vmem:[%s6 + $0x48] sm:$0xff]
      %v1340 = vld [vmem:[%s6 + $0x50] sm:$0xff]
      %v1341 = vld [vmem:[%s6 + $0x58] sm:$0xff]
      %v1342 = vld [vmem:[%s6 + $0x60] sm:$0xff]
      %v1343 = vld [vmem:[%s6 + $0x68] sm:$0xff]
      %v1344 = vld [vmem:[%s6 + $0x70] sm:$0xff]
      %v1345 = vld [vmem:[%s6 + $0x78] sm:$0xff]
      %v1346 = vld [vmem:[%s7] sm:$0x1]
      %1347 = vmatpush.msra.mxu0 %v1345
      %1348 = vmatpush.msra.mxu0 %v1344
      %1349 = vmatpush.msra.mxu0 %v1343
      %1350 = vmatpush.msra.mxu0 %v1342
      %1351 = vmatpush.msra.mxu0 %v1341
      %1352 = vmatpush.msra.mxu0 %v1340
      %1353 = vmatpush.msra.mxu0 %v1339
      %1354 = vmatpush.msra.mxu0 %v1338
      %1355 = vmatpush.msra.mxu0 %v1337
      %1356 = vmatpush.msra.mxu0 %v1336
      %1357 = vmatpush.msra.mxu0 %v1335
      %1358 = vmatpush.msra.mxu0 %v1334
      %1359 = vmatpush.msra.mxu0 %v1333
      %1360 = vmatpush.msra.mxu0 %v1332
      %1361 = vmatpush.msra.mxu0 %v1331
      %1362 = vmatpush.msra.mxu0 %v1330
      %1363 = vmatmul.f32.gmra.mxu0 %v1329
      %v1364 = vpop.f32.mrf.mxu0
      %v1365 = vadd.f32 %v1346, %v1364
      %1366 = vdwg.mxu0
      %v1367 = vsub.f32 0.0, %v1365
      %v1368 = vmin.f32 %v1367, 60.0
      %v1369 = vmul.f32 %v1368, 1.442695
      %v1370 = vpow.pop %v1369
      %v1371 = vadd.f32 %v1370, 1.0
      %v1372 = vrcp.pop %v1371
      %v1373 = vperm.slane %v1372, 0
      %v1374 = vmul.f32 %v1241, %v1373
      %v1375 = vmul.f32 %v1242, %v1373
      %v1376 = vmul.f32 %v1243, %v1373
      %v1377 = vmul.f32 %v1244, %v1373
      %v1378 = vmul.f32 %v1245, %v1373
      %v1379 = vmul.f32 %v1246, %v1373
      %v1380 = vmul.f32 %v1247, %v1373
      %v1381 = vmul.f32 %v1248, %v1373
      %v1382 = vmul.f32 %v1249, %v1373
      %v1383 = vmul.f32 %v1250, %v1373
      %v1384 = vmul.f32 %v1251, %v1373
      %v1385 = vmul.f32 %v1252, %v1373
      %v1386 = vmul.f32 %v1253, %v1373
      %v1387 = vmul.f32 %v1254, %v1373
      %v1388 = vmul.f32 %v1255, %v1373
      %v1389 = vmul.f32 %v1256, %v1373
      %v1390 = vpack.c.bf16 %v1375, %v1374
      %v1391 = vpack.c.bf16 %v1377, %v1376
      %v1392 = vpack.c.bf16 %v1379, %v1378
      %v1393 = vpack.c.bf16 %v1381, %v1380
      %v1394 = vpack.c.bf16 %v1383, %v1382
      %v1395 = vpack.c.bf16 %v1385, %v1384
      %v1396 = vpack.c.bf16 %v1387, %v1386
      %v1397 = vpack.c.bf16 %v1389, %v1388
      %v1398 = vld [vmem:[%s8] sm:$0xf]
      %v1399 = vld [vmem:[%s8 + $0x4] sm:$0xf]
      %v1400 = vld [vmem:[%s8 + $0x8] sm:$0xf]
      %v1401 = vld [vmem:[%s8 + $0xc] sm:$0xf]
      %v1402 = vld [vmem:[%s8 + $0x10] sm:$0xf]
      %v1403 = vld [vmem:[%s8 + $0x14] sm:$0xf]
      %v1404 = vld [vmem:[%s8 + $0x18] sm:$0xf]
      %v1405 = vld [vmem:[%s8 + $0x1c] sm:$0xf]
      %v1406 = vld [vmem:[%s8 + $0x20] sm:$0xf]
      %v1407 = vld [vmem:[%s8 + $0x24] sm:$0xf]
      %v1408 = vld [vmem:[%s8 + $0x28] sm:$0xf]
      %v1409 = vld [vmem:[%s8 + $0x2c] sm:$0xf]
      %v1410 = vld [vmem:[%s8 + $0x30] sm:$0xf]
      %v1411 = vld [vmem:[%s8 + $0x34] sm:$0xf]
      %v1412 = vld [vmem:[%s8 + $0x38] sm:$0xf]
      %v1413 = vld [vmem:[%s8 + $0x3c] sm:$0xf]
      %v1430 = vunpack.c.l.b16 %v1398
      %v1431 = vunpack.c.l.b16 %v1399
      %v1432 = vunpack.c.l.b16 %v1400
      %v1433 = vunpack.c.l.b16 %v1401
      %v1434 = vunpack.c.l.b16 %v1402
      %v1435 = vunpack.c.l.b16 %v1403
      %v1436 = vunpack.c.l.b16 %v1404
      %v1437 = vunpack.c.l.b16 %v1405
      %v1438 = vunpack.c.l.b16 %v1406
      %v1439 = vunpack.c.l.b16 %v1407
      %v1440 = vunpack.c.l.b16 %v1408
      %v1441 = vunpack.c.l.b16 %v1409
      %v1442 = vunpack.c.l.b16 %v1410
      %v1443 = vunpack.c.l.b16 %v1411
      %v1444 = vunpack.c.l.b16 %v1412
      %v1445 = vunpack.c.l.b16 %v1413
      %v1446 = vpack.c.b16 %v1431, %v1430
      %v1447 = vpack.c.b16 %v1433, %v1432
      %v1448 = vpack.c.b16 %v1435, %v1434
      %v1449 = vpack.c.b16 %v1437, %v1436
      %v1450 = vpack.c.b16 %v1439, %v1438
      %v1451 = vpack.c.b16 %v1441, %v1440
      %v1452 = vpack.c.b16 %v1443, %v1442
      %v1453 = vpack.c.b16 %v1445, %v1444
      %1462 = vmatpush.bf16.msra.mxu0 %v1453
      %1463 = vmatpush.bf16.msra.mxu0 %v1452
      %1464 = vmatpush.bf16.msra.mxu0 %v1451
      %1465 = vmatpush.bf16.msra.mxu0 %v1450
      %1466 = vmatpush.bf16.msra.mxu0 %v1449
      %1467 = vmatpush.bf16.msra.mxu0 %v1448
      %1468 = vmatpush.bf16.msra.mxu0 %v1447
      %1469 = vmatpush.bf16.msra.mxu0 %v1446
      %1470 = vmatmul.bf16.gmra.mxu0 %v1390
      %v1471 = vpop.f32.mrf.mxu0
      %v1472 = vadd.f32 0.0, %v1471
      %v1473 = vpop.f32.mrf.mxu0
      %v1474 = vadd.f32 0.0, %v1473
      %1475 = vmatmul.bf16.gmra.mxu0 %v1391
      %v1476 = vpop.f32.mrf.mxu0
      %v1477 = vadd.f32 0.0, %v1476
      %v1478 = vpop.f32.mrf.mxu0
      %v1479 = vadd.f32 0.0, %v1478
      %1480 = vmatmul.bf16.gmra.mxu0 %v1392
      %v1481 = vpop.f32.mrf.mxu0
      %v1482 = vadd.f32 0.0, %v1481
      %v1483 = vpop.f32.mrf.mxu0
      %v1484 = vadd.f32 0.0, %v1483
      %1485 = vmatmul.bf16.gmra.mxu0 %v1393
      %v1486 = vpop.f32.mrf.mxu0
      %v1487 = vadd.f32 0.0, %v1486
      %v1488 = vpop.f32.mrf.mxu0
      %v1489 = vadd.f32 0.0, %v1488
      %1490 = vmatmul.bf16.gmra.mxu0 %v1394
      %v1491 = vpop.f32.mrf.mxu0
      %v1492 = vadd.f32 0.0, %v1491
      %v1493 = vpop.f32.mrf.mxu0
      %v1494 = vadd.f32 0.0, %v1493
      %1495 = vmatmul.bf16.gmra.mxu0 %v1395
      %v1496 = vpop.f32.mrf.mxu0
      %v1497 = vadd.f32 0.0, %v1496
      %v1498 = vpop.f32.mrf.mxu0
      %v1499 = vadd.f32 0.0, %v1498
      %1500 = vmatmul.bf16.gmra.mxu0 %v1396
      %v1501 = vpop.f32.mrf.mxu0
      %v1502 = vadd.f32 0.0, %v1501
      %v1503 = vpop.f32.mrf.mxu0
      %v1504 = vadd.f32 0.0, %v1503
      %1505 = vmatmul.bf16.gmra.mxu0 %v1397
      %v1506 = vpop.f32.mrf.mxu0
      %v1507 = vadd.f32 0.0, %v1506
      %v1508 = vpop.f32.mrf.mxu0
      %v1509 = vadd.f32 0.0, %v1508
      %1510 = vdwg.mxu0
      %v1511 = vld [vmem:[%s9] sm:$0x1]
      %v1513 = vperm.slane %v1511, 0
      %v1515 = vmul.f32 %v1472, %v1513
      %v1516 = vmul.f32 %v1474, %v1513
      %v1517 = vmul.f32 %v1477, %v1513
      %v1518 = vmul.f32 %v1479, %v1513
      %v1519 = vmul.f32 %v1482, %v1513
      %v1520 = vmul.f32 %v1484, %v1513
      %v1521 = vmul.f32 %v1487, %v1513
      %v1522 = vmul.f32 %v1489, %v1513
      %v1523 = vmul.f32 %v1492, %v1513
      %v1524 = vmul.f32 %v1494, %v1513
      %v1525 = vmul.f32 %v1497, %v1513
      %v1526 = vmul.f32 %v1499, %v1513
      %v1527 = vmul.f32 %v1502, %v1513
      %v1528 = vmul.f32 %v1504, %v1513
      %v1529 = vmul.f32 %v1507, %v1513
      %v1530 = vmul.f32 %v1509, %v1513
      %v1531 = vld [vmem:[%s10] sm:$0x1]
      %v1533 = vperm.slane %v1531, 0
      %v1535 = vadd.f32 %v1515, %v1533
      %v1536 = vadd.f32 %v1516, %v1533
      %v1537 = vadd.f32 %v1517, %v1533
      %v1538 = vadd.f32 %v1518, %v1533
      %v1539 = vadd.f32 %v1519, %v1533
      %v1540 = vadd.f32 %v1520, %v1533
      %v1541 = vadd.f32 %v1521, %v1533
      %v1542 = vadd.f32 %v1522, %v1533
      %v1543 = vadd.f32 %v1523, %v1533
      %v1544 = vadd.f32 %v1524, %v1533
      %v1545 = vadd.f32 %v1525, %v1533
      %v1546 = vadd.f32 %v1526, %v1533
      %v1547 = vadd.f32 %v1527, %v1533
      %v1548 = vadd.f32 %v1528, %v1533
      %v1549 = vadd.f32 %v1529, %v1533
      %v1550 = vadd.f32 %v1530, %v1533
      %v1551 = vpack.c.bf16 %v1535, %v1535
      %v1552 = vpack.c.bf16 %v1536, %v1536
      %v1553 = vpack.c.bf16 %v1537, %v1537
      %v1554 = vpack.c.bf16 %v1538, %v1538
      %v1555 = vpack.c.bf16 %v1539, %v1539
      %v1556 = vpack.c.bf16 %v1540, %v1540
      %v1557 = vpack.c.bf16 %v1541, %v1541
      %v1558 = vpack.c.bf16 %v1542, %v1542
      %v1559 = vpack.c.bf16 %v1543, %v1543
      %v1560 = vpack.c.bf16 %v1544, %v1544
      %v1561 = vpack.c.bf16 %v1545, %v1545
      %v1562 = vpack.c.bf16 %v1546, %v1546
      %v1563 = vpack.c.bf16 %v1547, %v1547
      %v1564 = vpack.c.bf16 %v1548, %v1548
      %v1565 = vpack.c.bf16 %v1549, %v1549
      %v1566 = vpack.c.bf16 %v1550, %v1550
      %1567 = vst [vmem:[%s386] sm:$0xf] %v1551
      %1568 = vst [vmem:[%s386 + $0x4] sm:$0xf] %v1552
      %1569 = vst [vmem:[%s386 + $0x8] sm:$0xf] %v1553
      %1570 = vst [vmem:[%s386 + $0xc] sm:$0xf] %v1554
      %1571 = vst [vmem:[%s386 + $0x10] sm:$0xf] %v1555
      %1572 = vst [vmem:[%s386 + $0x14] sm:$0xf] %v1556
      %1573 = vst [vmem:[%s386 + $0x18] sm:$0xf] %v1557
      %1574 = vst [vmem:[%s386 + $0x1c] sm:$0xf] %v1558
      %1575 = vst [vmem:[%s386 + $0x20] sm:$0xf] %v1559
      %1576 = vst [vmem:[%s386 + $0x24] sm:$0xf] %v1560
      %1577 = vst [vmem:[%s386 + $0x28] sm:$0xf] %v1561
      %1578 = vst [vmem:[%s386 + $0x2c] sm:$0xf] %v1562
      %1579 = vst [vmem:[%s386 + $0x30] sm:$0xf] %v1563
      %1580 = vst [vmem:[%s386 + $0x34] sm:$0xf] %v1564
      %1581 = vst [vmem:[%s386 + $0x38] sm:$0xf] %v1565
      %1582 = vst [vmem:[%s386 + $0x3c] sm:$0xf] %v1566
      %p1583 = scmp.lt.s32.totalorder %s22, 1
      %s1584 = scalar_select %p1583, %s22, 1
      %s1585 = smul.addr %s1584, 16
      %s1586 = smul.addr %s1585, 4
      %s1587 = scalar_lea.vmem %s11, %s1586
      // Predicated region
      $region65: #{efficientnet_b3_forward.5} parent=63 // pred_check
        %p1588 = pneg %p276
      $region66: #{efficientnet_b3_forward.5} parent=63 // pred_check_branch
        %1590 = sbr.rel (%p1588) target = $region68
      $region67: #{efficientnet_b3_forward.5} parent=63 // pred_region
        _
      $region68: #{efficientnet_b3_forward.5} parent=63 // pred_fallthru
        _
    $region64: #{efficientnet_b3_forward.5} parent=5 // pred_fallthru
      _
    %p1591 = scmp.le.s32.totalorder 2, %s17
    // Predicated region
    $region69: #{efficientnet_b3_forward.5} parent=5 // pred_check
      %p1592 = pneg %p1591
    $region70: #{efficientnet_b3_forward.5} parent=5 // pred_check_branch
      %1594 = sbr.rel (%p1592) target = $region72
    $region71: #{efficientnet_b3_forward.5} parent=5 // pred_region
      %s1595 = ssub.s32 %s17, 2
      // Predicated region
      $region73: #{efficientnet_b3_forward.5} parent=71 // pred_check
        %p1596 = pneg %p282
      $region74: #{efficientnet_b3_forward.5} parent=71 // pred_check_branch
        %1598 = sbr.rel (%p1596) target = $region76
      $region75: #{efficientnet_b3_forward.5} parent=71 // pred_region
        %p1599 = scmp.lt.s32.totalorder %s23, 1
        %s1600 = scalar_select %p1599, %s23, 1
        %s1601 = smul.addr %s1600, 16
        %s1602 = smul.addr %s1601, 4
        %s1603 = scalar_lea.vmem %s11, %s1602
      $region76: #{efficientnet_b3_forward.5} parent=71 // pred_fallthru
        _
    $region72: #{efficientnet_b3_forward.5} parent=5 // pred_fallthru
      _
  $region6: #{efficientnet_b3_forward.5} parent=0 // loop_footer
    %s21 = sadd.s32 1, %s17
  $region7: #{efficientnet_b3_forward.5} parent=0 // loop_footer_branch
    %16 = sbr.rel target = $region3
  $region8: #{efficientnet_b3_forward.5} parent=0 // loop_exit
    _

// kernel: efficientnet_b3_forward.6
$region0: #{efficientnet_b3_forward.6}
  #allocation0 [shape = 'u32[]', space=smem, size = 0x4, offset = 0x4, fixed_abs, tag = 'smem constant byte address 0x4 - core index']
  #allocation1 [shape = 'u32[72,128]{1,0:T(1,128)}', space=vmem, size = 0x9000, scoped, tag = 'internal scratch']
  %s0 = inlined_call_operand.vmem [shape: bf16[2,4,5,9,128], index: 0, kind: input, shape index: {}]
  %s1 = inlined_call_operand.vmem [shape: f32[9,128], index: 1, kind: input, shape index: {}]
  %s2 = inlined_call_operand.vmem [shape: f32[1,128], index: 2, kind: input, shape index: {}]
  %s3 = inlined_call_operand.vmem [shape: f32[1,128], index: 3, kind: input, shape index: {}]
  %s4 = inlined_call_operand.vmem [shape: f32[128,128], index: 4, kind: input, shape index: {}]
  %s5 = inlined_call_operand.vmem [shape: f32[1,128], index: 5, kind: input, shape index: {}]
  %s6 = inlined_call_operand.vmem [shape: f32[128,128], index: 6, kind: input, shape index: {}]
  %s7 = inlined_call_operand.vmem [shape: f32[1,128], index: 7, kind: input, shape index: {}]
  %s8 = inlined_call_operand.vmem [shape: bf16[128,128], index: 8, kind: input, shape index: {}]
  %s9 = inlined_call_operand.vmem [shape: f32[1,128], index: 9, kind: input, shape index: {}]
  %s10 = inlined_call_operand.vmem [shape: f32[1,128], index: 10, kind: input, shape index: {}]
  %s11 = inlined_call_operand.vmem [shape: bf16[2,32,128], index: 11, kind: output, shape index: {}]
  %s12 = sld [smem:[#allocation0]]
  $region77: #{efficientnet_b3_forward.6} parent=0
    _
  %s14 = ssub.s32 1, %s12
  %s15 = scalar_select 0, %s14, %s12
  loop: start=0, step=1, limit=4
  $region2: #{efficientnet_b3_forward.6} parent=0 // loop_pre_header
    _
  $region3: #{efficientnet_b3_forward.6} parent=0 // loop_header
    %s17 = sphi 0, %s21
    %p18 = scmp.ge.s32.totalorder %s17, 4
    %s27 = sphi 0, %s29
    %s30 = sphi 0, %s27
    %s31 = sphi 0, %s30
    %s47 = sphi 0, %s31
    %s51 = sphi 0, %s51
    %s53 = sphi 0, %s51
    %s54 = sphi 0, %s53
    %s68 = sphi 0, %s54
    %s72 = sphi 0, %s72
    %s74 = sphi 0, %s72
    %s75 = sphi 0, %s74
    %s89 = sphi 0, %s75
    %s93 = sphi 0, %s93
    %s95 = sphi 0, %s93
    %s96 = sphi 0, %s95
    %s110 = sphi 0, %s96
    %s114 = sphi 0, %s114
    %s116 = sphi 0, %s114
    %s117 = sphi 0, %s116
    %s131 = sphi 0, %s117
    %s135 = sphi 0, %s135
    %s137 = sphi 0, %s135
    %s138 = sphi 0, %s137
    %s152 = sphi 0, %s138
    %s156 = sphi 0, %s156
    %s158 = sphi 0, %s156
    %s159 = sphi 0, %s158
    %s173 = sphi 0, %s159
    %s177 = sphi 0, %s177
    %s179 = sphi 0, %s177
    %s180 = sphi 0, %s179
    %s194 = sphi 0, %s180
    %s198 = sphi 0, %s198
    %s200 = sphi 0, %s198
    %s201 = sphi 0, %s200
    %s215 = sphi 0, %s201
    %s219 = sphi 0, %s219
    %s221 = sphi 0, %s219
    %s222 = sphi 0, %s221
    %s236 = sphi 0, %s222
    %s240 = sphi 0, %s240
    %s242 = sphi 0, %s240
    %s243 = sphi 0, %s242
    %s257 = sphi 0, %s243
    %s263 = sphi 0, %s265
    %s266 = sphi 0, %s263
    %s267 = sphi 0, %s266
    %s283 = sphi 0, %s267
  $region4: #{efficientnet_b3_forward.6} parent=0 // loop_header_branch
    %20 = sbr.rel (%p18) target = $region8
  $region5: #{efficientnet_b3_forward.6} parent=0 // loop_body
    %s22 = ssub.s32 %s17, 1
    %s23 = ssub.s32 %s17, 2
    %s24 = sadd.s32 %s17, 1
    %s25 = ssub.s32 %s17, %s24
    %p26 = scmp.eq.s32.totalorder %s25, 0
    %s28 = sadd.s32 %s27, 1
    %s29 = scalar_select %p26, %s27, %s28
    %p32 = pneg %p26
    %p33 = scmp.eq.s32.totalorder %s17, 1
    %p34 = por %p32, %p33
    %p35 = scmp.ne.s32.totalorder %s27, %s30
    %p36 = scmp.eq.s32.totalorder %s17, 0
    %p37 = por %p35, %p36
    %p38 = scmp.ne.s32.totalorder %s27, %s30
    %p39 = scmp.eq.s32.totalorder %s22, 1
    %p40 = por %p38, %p39
    %p41 = scmp.ne.s32.totalorder %s30, %s31
    %p42 = scmp.eq.s32.totalorder %s22, 0
    %p43 = por %p41, %p42
    %p44 = scmp.ne.s32.totalorder %s30, %s31
    %p45 = scmp.eq.s32.totalorder %s23, 1
    %p46 = por %p44, %p45
    %p48 = scmp.ne.s32.totalorder %s31, %s47
    %p49 = scmp.eq.s32.totalorder %s23, 0
    %p50 = por %p48, %p49
    %s52 = sadd.s32 %s51, 1
    %p55 = scmp.eq.s32.totalorder %s17, 1
    %p56 = scmp.ne.s32.totalorder %s51, %s53
    %p57 = scmp.eq.s32.totalorder %s17, 0
    %p58 = por %p56, %p57
    %p59 = scmp.ne.s32.totalorder %s51, %s53
    %p60 = scmp.eq.s32.totalorder %s22, 1
    %p61 = por %p59, %p60
    %p62 = scmp.ne.s32.totalorder %s53, %s54
    %p63 = scmp.eq.s32.totalorder %s22, 0
    %p64 = por %p62, %p63
    %p65 = scmp.ne.s32.totalorder %s53, %s54
    %p66 = scmp.eq.s32.totalorder %s23, 1
    %p67 = por %p65, %p66
    %p69 = scmp.ne.s32.totalorder %s54, %s68
    %p70 = scmp.eq.s32.totalorder %s23, 0
    %p71 = por %p69, %p70
    %s73 = sadd.s32 %s72, 1
    %p76 = scmp.eq.s32.totalorder %s17, 1
    %p77 = scmp.ne.s32.totalorder %s72, %s74
    %p78 = scmp.eq.s32.totalorder %s17, 0
    %p79 = por %p77, %p78
    %p80 = scmp.ne.s32.totalorder %s72, %s74
    %p81 = scmp.eq.s32.totalorder %s22, 1
    %p82 = por %p80, %p81
    %p83 = scmp.ne.s32.totalorder %s74, %s75
    %p84 = scmp.eq.s32.totalorder %s22, 0
    %p85 = por %p83, %p84
    %p86 = scmp.ne.s32.totalorder %s74, %s75
    %p87 = scmp.eq.s32.totalorder %s23, 1
    %p88 = por %p86, %p87
    %p90 = scmp.ne.s32.totalorder %s75, %s89
    %p91 = scmp.eq.s32.totalorder %s23, 0
    %p92 = por %p90, %p91
    %s94 = sadd.s32 %s93, 1
    %p97 = scmp.eq.s32.totalorder %s17, 1
    %p98 = scmp.ne.s32.totalorder %s93, %s95
    %p99 = scmp.eq.s32.totalorder %s17, 0
    %p100 = por %p98, %p99
    %p101 = scmp.ne.s32.totalorder %s93, %s95
    %p102 = scmp.eq.s32.totalorder %s22, 1
    %p103 = por %p101, %p102
    %p104 = scmp.ne.s32.totalorder %s95, %s96
    %p105 = scmp.eq.s32.totalorder %s22, 0
    %p106 = por %p104, %p105
    %p107 = scmp.ne.s32.totalorder %s95, %s96
    %p108 = scmp.eq.s32.totalorder %s23, 1
    %p109 = por %p107, %p108
    %p111 = scmp.ne.s32.totalorder %s96, %s110
    %p112 = scmp.eq.s32.totalorder %s23, 0
    %p113 = por %p111, %p112
    %s115 = sadd.s32 %s114, 1
    %p118 = scmp.eq.s32.totalorder %s17, 1
    %p119 = scmp.ne.s32.totalorder %s114, %s116
    %p120 = scmp.eq.s32.totalorder %s17, 0
    %p121 = por %p119, %p120
    %p122 = scmp.ne.s32.totalorder %s114, %s116
    %p123 = scmp.eq.s32.totalorder %s22, 1
    %p124 = por %p122, %p123
    %p125 = scmp.ne.s32.totalorder %s116, %s117
    %p126 = scmp.eq.s32.totalorder %s22, 0
    %p127 = por %p125, %p126
    %p128 = scmp.ne.s32.totalorder %s116, %s117
    %p129 = scmp.eq.s32.totalorder %s23, 1
    %p130 = por %p128, %p129
    %p132 = scmp.ne.s32.totalorder %s117, %s131
    %p133 = scmp.eq.s32.totalorder %s23, 0
    %p134 = por %p132, %p133
    %s136 = sadd.s32 %s135, 1
    %p139 = scmp.eq.s32.totalorder %s17, 1
    %p140 = scmp.ne.s32.totalorder %s135, %s137
    %p141 = scmp.eq.s32.totalorder %s17, 0
    %p142 = por %p140, %p141
    %p143 = scmp.ne.s32.totalorder %s135, %s137
    %p144 = scmp.eq.s32.totalorder %s22, 1
    %p145 = por %p143, %p144
    %p146 = scmp.ne.s32.totalorder %s137, %s138
    %p147 = scmp.eq.s32.totalorder %s22, 0
    %p148 = por %p146, %p147
    %p149 = scmp.ne.s32.totalorder %s137, %s138
    %p150 = scmp.eq.s32.totalorder %s23, 1
    %p151 = por %p149, %p150
    %p153 = scmp.ne.s32.totalorder %s138, %s152
    %p154 = scmp.eq.s32.totalorder %s23, 0
    %p155 = por %p153, %p154
    %s157 = sadd.s32 %s156, 1
    %p160 = scmp.eq.s32.totalorder %s17, 1
    %p161 = scmp.ne.s32.totalorder %s156, %s158
    %p162 = scmp.eq.s32.totalorder %s17, 0
    %p163 = por %p161, %p162
    %p164 = scmp.ne.s32.totalorder %s156, %s158
    %p165 = scmp.eq.s32.totalorder %s22, 1
    %p166 = por %p164, %p165
    %p167 = scmp.ne.s32.totalorder %s158, %s159
    %p168 = scmp.eq.s32.totalorder %s22, 0
    %p169 = por %p167, %p168
    %p170 = scmp.ne.s32.totalorder %s158, %s159
    %p171 = scmp.eq.s32.totalorder %s23, 1
    %p172 = por %p170, %p171
    %p174 = scmp.ne.s32.totalorder %s159, %s173
    %p175 = scmp.eq.s32.totalorder %s23, 0
    %p176 = por %p174, %p175
    %s178 = sadd.s32 %s177, 1
    %p181 = scmp.eq.s32.totalorder %s17, 1
    %p182 = scmp.ne.s32.totalorder %s177, %s179
    %p183 = scmp.eq.s32.totalorder %s17, 0
    %p184 = por %p182, %p183
    %p185 = scmp.ne.s32.totalorder %s177, %s179
    %p186 = scmp.eq.s32.totalorder %s22, 1
    %p187 = por %p185, %p186
    %p188 = scmp.ne.s32.totalorder %s179, %s180
    %p189 = scmp.eq.s32.totalorder %s22, 0
    %p190 = por %p188, %p189
    %p191 = scmp.ne.s32.totalorder %s179, %s180
    %p192 = scmp.eq.s32.totalorder %s23, 1
    %p193 = por %p191, %p192
    %p195 = scmp.ne.s32.totalorder %s180, %s194
    %p196 = scmp.eq.s32.totalorder %s23, 0
    %p197 = por %p195, %p196
    %s199 = sadd.s32 %s198, 1
    %p202 = scmp.eq.s32.totalorder %s17, 1
    %p203 = scmp.ne.s32.totalorder %s198, %s200
    %p204 = scmp.eq.s32.totalorder %s17, 0
    %p205 = por %p203, %p204
    %p206 = scmp.ne.s32.totalorder %s198, %s200
    %p207 = scmp.eq.s32.totalorder %s22, 1
    %p208 = por %p206, %p207
    %p209 = scmp.ne.s32.totalorder %s200, %s201
    %p210 = scmp.eq.s32.totalorder %s22, 0
    %p211 = por %p209, %p210
    %p212 = scmp.ne.s32.totalorder %s200, %s201
    %p213 = scmp.eq.s32.totalorder %s23, 1
    %p214 = por %p212, %p213
    %p216 = scmp.ne.s32.totalorder %s201, %s215
    %p217 = scmp.eq.s32.totalorder %s23, 0
    %p218 = por %p216, %p217
    %s220 = sadd.s32 %s219, 1
    %p223 = scmp.eq.s32.totalorder %s17, 1
    %p224 = scmp.ne.s32.totalorder %s219, %s221
    %p225 = scmp.eq.s32.totalorder %s17, 0
    %p226 = por %p224, %p225
    %p227 = scmp.ne.s32.totalorder %s219, %s221
    %p228 = scmp.eq.s32.totalorder %s22, 1
    %p229 = por %p227, %p228
    %p230 = scmp.ne.s32.totalorder %s221, %s222
    %p231 = scmp.eq.s32.totalorder %s22, 0
    %p232 = por %p230, %p231
    %p233 = scmp.ne.s32.totalorder %s221, %s222
    %p234 = scmp.eq.s32.totalorder %s23, 1
    %p235 = por %p233, %p234
    %p237 = scmp.ne.s32.totalorder %s222, %s236
    %p238 = scmp.eq.s32.totalorder %s23, 0
    %p239 = por %p237, %p238
    %s241 = sadd.s32 %s240, 1
    %p244 = scmp.eq.s32.totalorder %s17, 1
    %p245 = scmp.ne.s32.totalorder %s240, %s242
    %p246 = scmp.eq.s32.totalorder %s17, 0
    %p247 = por %p245, %p246
    %p248 = scmp.ne.s32.totalorder %s240, %s242
    %p249 = scmp.eq.s32.totalorder %s22, 1
    %p250 = por %p248, %p249
    %p251 = scmp.ne.s32.totalorder %s242, %s243
    %p252 = scmp.eq.s32.totalorder %s22, 0
    %p253 = por %p251, %p252
    %p254 = scmp.ne.s32.totalorder %s242, %s243
    %p255 = scmp.eq.s32.totalorder %s23, 1
    %p256 = por %p254, %p255
    %p258 = scmp.ne.s32.totalorder %s243, %s257
    %p259 = scmp.eq.s32.totalorder %s23, 0
    %p260 = por %p258, %p259
    %s261 = ssub.s32 %s17, %s24
    %p262 = scmp.eq.s32.totalorder %s261, 0
    %s264 = sadd.s32 %s263, 1
    %s265 = scalar_select %p262, %s263, %s264
    %p268 = pneg %p262
    %p269 = scmp.eq.s32.totalorder %s17, 1
    %p270 = por %p268, %p269
    %p271 = scmp.ne.s32.totalorder %s263, %s266
    %p272 = scmp.eq.s32.totalorder %s17, 0
    %p273 = por %p271, %p272
    %p274 = scmp.ne.s32.totalorder %s263, %s266
    %p275 = scmp.eq.s32.totalorder %s22, 1
    %p276 = por %p274, %p275
    %p277 = scmp.ne.s32.totalorder %s266, %s267
    %p278 = scmp.eq.s32.totalorder %s22, 0
    %p279 = por %p277, %p278
    %p280 = scmp.ne.s32.totalorder %s266, %s267
    %p281 = scmp.eq.s32.totalorder %s23, 1
    %p282 = por %p280, %p281
    %p284 = scmp.ne.s32.totalorder %s267, %s283
    %p285 = scmp.eq.s32.totalorder %s23, 0
    %p286 = por %p284, %p285
    %p287 = scmp.le.s32.totalorder 1, %s17
    %p288 = scmp.lt.s32.totalorder %s17, 3
    %p289 = pnand %p287, %p288
    %p290 = pneg %p289
    // Predicated region
    $region9: #{efficientnet_b3_forward.6} parent=5 // pred_check
      _
    $region10: #{efficientnet_b3_forward.6} parent=5 // pred_check_branch
      %292 = sbr.rel (%p289) target = $region12
    $region11: #{efficientnet_b3_forward.6} parent=5 // pred_region
      %s293 = ssub.s32 %s17, 1
      // Predicated region
      $region13: #{efficientnet_b3_forward.6} parent=11 // pred_check
        %p294 = pneg %p64
      $region14: #{efficientnet_b3_forward.6} parent=11 // pred_check_branch
        %296 = sbr.rel (%p294) target = $region16
      $region15: #{efficientnet_b3_forward.6} parent=11 // pred_region
        _
      $region16: #{efficientnet_b3_forward.6} parent=11 // pred_fallthru
        _
      // Predicated region
      $region17: #{efficientnet_b3_forward.6} parent=11 // pred_check
        %p297 = pneg %p85
      $region18: #{efficientnet_b3_forward.6} parent=11 // pred_check_branch
        %299 = sbr.rel (%p297) target = $region20
      $region19: #{efficientnet_b3_forward.6} parent=11 // pred_region
        _
      $region20: #{efficientnet_b3_forward.6} parent=11 // pred_fallthru
        _
      // Predicated region
      $region21: #{efficientnet_b3_forward.6} parent=11 // pred_check
        %p300 = pneg %p106
      $region22: #{efficientnet_b3_forward.6} parent=11 // pred_check_branch
        %302 = sbr.rel (%p300) target = $region24
      $region23: #{efficientnet_b3_forward.6} parent=11 // pred_region
        _
      $region24: #{efficientnet_b3_forward.6} parent=11 // pred_fallthru
        _
      // Predicated region
      $region25: #{efficientnet_b3_forward.6} parent=11 // pred_check
        %p303 = pneg %p127
      $region26: #{efficientnet_b3_forward.6} parent=11 // pred_check_branch
        %305 = sbr.rel (%p303) target = $region28
      $region27: #{efficientnet_b3_forward.6} parent=11 // pred_region
        _
      $region28: #{efficientnet_b3_forward.6} parent=11 // pred_fallthru
        _
      // Predicated region
      $region29: #{efficientnet_b3_forward.6} parent=11 // pred_check
        %p306 = pneg %p148
      $region30: #{efficientnet_b3_forward.6} parent=11 // pred_check_branch
        %308 = sbr.rel (%p306) target = $region32
      $region31: #{efficientnet_b3_forward.6} parent=11 // pred_region
        _
      $region32: #{efficientnet_b3_forward.6} parent=11 // pred_fallthru
        _
      // Predicated region
      $region33: #{efficientnet_b3_forward.6} parent=11 // pred_check
        %p309 = pneg %p169
      $region34: #{efficientnet_b3_forward.6} parent=11 // pred_check_branch
        %311 = sbr.rel (%p309) target = $region36
      $region35: #{efficientnet_b3_forward.6} parent=11 // pred_region
        _
      $region36: #{efficientnet_b3_forward.6} parent=11 // pred_fallthru
        _
      // Predicated region
      $region37: #{efficientnet_b3_forward.6} parent=11 // pred_check
        %p312 = pneg %p190
      $region38: #{efficientnet_b3_forward.6} parent=11 // pred_check_branch
        %314 = sbr.rel (%p312) target = $region40
      $region39: #{efficientnet_b3_forward.6} parent=11 // pred_region
        _
      $region40: #{efficientnet_b3_forward.6} parent=11 // pred_fallthru
        _
      // Predicated region
      $region41: #{efficientnet_b3_forward.6} parent=11 // pred_check
        %p315 = pneg %p211
      $region42: #{efficientnet_b3_forward.6} parent=11 // pred_check_branch
        %317 = sbr.rel (%p315) target = $region44
      $region43: #{efficientnet_b3_forward.6} parent=11 // pred_region
        _
      $region44: #{efficientnet_b3_forward.6} parent=11 // pred_fallthru
        _
      // Predicated region
      $region45: #{efficientnet_b3_forward.6} parent=11 // pred_check
        %p318 = pneg %p232
      $region46: #{efficientnet_b3_forward.6} parent=11 // pred_check_branch
        %320 = sbr.rel (%p318) target = $region48
      $region47: #{efficientnet_b3_forward.6} parent=11 // pred_region
        _
      $region48: #{efficientnet_b3_forward.6} parent=11 // pred_fallthru
        _
      // Predicated region
      $region49: #{efficientnet_b3_forward.6} parent=11 // pred_check
        %p321 = pneg %p253
      $region50: #{efficientnet_b3_forward.6} parent=11 // pred_check_branch
        %323 = sbr.rel (%p321) target = $region52
      $region51: #{efficientnet_b3_forward.6} parent=11 // pred_region
        _
      $region52: #{efficientnet_b3_forward.6} parent=11 // pred_fallthru
        _
    $region12: #{efficientnet_b3_forward.6} parent=5 // pred_fallthru
      _
    %p324 = scmp.lt.s32.totalorder %s17, 2
    // Predicated region
    $region53: #{efficientnet_b3_forward.6} parent=5 // pred_check
      %p325 = pneg %p324
    $region54: #{efficientnet_b3_forward.6} parent=5 // pred_check_branch
      %327 = sbr.rel (%p325) target = $region56
    $region55: #{efficientnet_b3_forward.6} parent=5 // pred_region
      // Predicated region
      $region57: #{efficientnet_b3_forward.6} parent=55 // pred_check
        %p328 = pneg %p37
      $region58: #{efficientnet_b3_forward.6} parent=55 // pred_check_branch
        %330 = sbr.rel (%p328) target = $region60
      $region59: #{efficientnet_b3_forward.6} parent=55 // pred_region
        %p331 = scmp.lt.s32.totalorder %s17, 1
        %s332 = scalar_select %p331, %s17, 1
        %s333 = smul.addr %s332, 40
        %s334 = smul.addr %s333, 4
        %s335 = scalar_lea.vmem %s0, %s334
      $region60: #{efficientnet_b3_forward.6} parent=55 // pred_fallthru
        _
    $region56: #{efficientnet_b3_forward.6} parent=5 // pred_fallthru
      _
    %p336 = scmp.le.s32.totalorder 1, %s17
    %p337 = scmp.lt.s32.totalorder %s17, 3
    %p338 = pnand %p336, %p337
    %p339 = pneg %p338
    // Predicated region
    $region61: #{efficientnet_b3_forward.6} parent=5 // pred_check
      _
    $region62: #{efficientnet_b3_forward.6} parent=5 // pred_check_branch
      %341 = sbr.rel (%p338) target = $region64
    $region63: #{efficientnet_b3_forward.6} parent=5 // pred_region
      %s342 = ssub.s32 %s17, 1
      %p343 = scmp.lt.s32.totalorder %s22, 1
      %s344 = scalar_select %p343, %s22, 1
      %s345 = smul.addr %s344, 40
      %s346 = smul.addr %s345, 4
      %s347 = scalar_lea.vmem %s0, %s346
      %p348 = pneg %p43
      %p349 = pneg %p40
      %p350 = pneg %p64
      %p351 = pneg %p61
      %p352 = pneg %p85
      %p353 = pneg %p82
      %p354 = pneg %p106
      %p355 = pneg %p103
      %p356 = pneg %p127
      %p357 = pneg %p124
      %p358 = pneg %p148
      %p359 = pneg %p145
      %p360 = pneg %p169
      %p361 = pneg %p166
      %p362 = pneg %p190
      %p363 = pneg %p187
      %p364 = pneg %p211
      %p365 = pneg %p208
      %p366 = pneg %p232
      %p367 = pneg %p229
      %p368 = pneg %p253
      %p369 = pneg %p250
      %p370 = pneg %p279
      %p371 = pneg %p276
      %p372 = scmp.lt.s32.totalorder %s22, 1
      %s373 = scalar_select %p372, %s22, 1
      %s374 = smul.addr %s373, 4
      %s375 = smul.addr %s374, 4
      %s376 = scalar_lea.vmem %s11, %s375
      %p377 = scmp.lt.s32.totalorder %s22, 1
      %s378 = scalar_select %p377, %s22, 1
      %s379 = smul.addr %s378, 40
      %s380 = smul.addr %s379, 4
      %s381 = scalar_lea.vmem %s0, %s380
      %p382 = scmp.lt.s32.totalorder %s22, 1
      %s383 = scalar_select %p382, %s22, 1
      %s384 = smul.addr %s383, 4
      %s385 = smul.addr %s384, 4
      %s386 = scalar_lea.vmem %s11, %s385
      %v387 = vld [vmem:[%s381] sm:$0xf]
      %v388 = vld [vmem:[%s381 + $0x4] sm:$0x1]
      %v389 = vld [vmem:[%s381 + $0x8] sm:$0xf]
      %v390 = vld [vmem:[%s381 + $0xc] sm:$0x1]
      %v391 = vld [vmem:[%s381 + $0x10] sm:$0xf]
      %v392 = vld [vmem:[%s381 + $0x14] sm:$0x1]
      %v393 = vld [vmem:[%s381 + $0x18] sm:$0xf]
      %v394 = vld [vmem:[%s381 + $0x1c] sm:$0x1]
      %v395 = vld [vmem:[%s381 + $0x20] sm:$0xf]
      %v396 = vld [vmem:[%s381 + $0x24] sm:$0x1]
      %v397 = vld [vmem:[%s381 + $0x28] sm:$0xf]
      %v398 = vld [vmem:[%s381 + $0x30] sm:$0xf]
      %v399 = vld [vmem:[%s381 + $0x38] sm:$0xf]
      %v400 = vld [vmem:[%s381 + $0x40] sm:$0xf]
      %v401 = vld [vmem:[%s381 + $0x48] sm:$0xf]
      %v402 = vld [vmem:[%s381 + $0x50] sm:$0xf]
      %v403 = vld [vmem:[%s381 + $0x54] sm:$0x1]
      %v404 = vld [vmem:[%s381 + $0x58] sm:$0xf]
      %v405 = vld [vmem:[%s381 + $0x5c] sm:$0x1]
      %v406 = vld [vmem:[%s381 + $0x60] sm:$0xf]
      %v407 = vld [vmem:[%s381 + $0x64] sm:$0x1]
      %v408 = vld [vmem:[%s381 + $0x68] sm:$0xf]
      %v409 = vld [vmem:[%s381 + $0x6c] sm:$0x1]
      %v410 = vld [vmem:[%s381 + $0x78] sm:$0xf]
      %v411 = vld [vmem:[%s381 + $0x80] sm:$0xf]
      %v412 = vld [vmem:[%s381 + $0x88] sm:$0xf]
      %v413 = vld [vmem:[%s381 + $0x90] sm:$0xf]
      %v414 = vunpack.c.l.bf16 %v387
      %v415 = vunpack.c.l.bf16 %v388
      %v416 = vunpack.c.l.bf16 %v389
      %v417 = vunpack.c.l.bf16 %v390
      %v418 = vunpack.c.l.bf16 %v391
      %v419 = vunpack.c.l.bf16 %v392
      %v420 = vunpack.c.l.bf16 %v393
      %v421 = vunpack.c.l.bf16 %v394
      %v422 = vunpack.c.l.bf16 %v395
      %v423 = vunpack.c.l.bf16 %v396
      %v424 = vunpack.c.l.bf16 %v397
      %v425 = vunpack.c.l.bf16 %v398
      %v426 = vunpack.c.l.bf16 %v399
      %v427 = vunpack.c.l.bf16 %v400
      %v428 = vunpack.c.l.bf16 %v401
      %v429 = vunpack.c.l.bf16 %v402
      %v430 = vunpack.c.l.bf16 %v403
      %v431 = vunpack.c.l.bf16 %v404
      %v432 = vunpack.c.l.bf16 %v405
      %v433 = vunpack.c.l.bf16 %v406
      %v434 = vunpack.c.l.bf16 %v407
      %v435 = vunpack.c.l.bf16 %v408
      %v436 = vunpack.c.l.bf16 %v409
      %v437 = vunpack.c.l.bf16 %v410
      %v438 = vunpack.c.l.bf16 %v411
      %v439 = vunpack.c.l.bf16 %v412
      %v440 = vunpack.c.l.bf16 %v413
      %v441 = vld [vmem:[%s1] sm:$0xff]
      %v442 = vld [vmem:[%s1 + $0x8] sm:$0x1]
      %v443 = vperm.slane %v441, 0
      %v444 = vmul.f32 %v414, %v443
      %v445 = vmul.f32 %v416, %v443
      %v446 = vmul.f32 %v418, %v443
      %v447 = vmul.f32 %v420, %v443
      %v448 = vperm.slane %v441, 1
      %v449 = vmul.f32 %v424, %v448
      %v450 = vmul.f32 %v425, %v448
      %v451 = vmul.f32 %v426, %v448
      %v452 = vmul.f32 %v427, %v448
      %v453 = vadd.f32 %v444, %v449
      %v454 = vadd.f32 %v445, %v450
      %v455 = vadd.f32 %v446, %v451
      %v456 = vadd.f32 %v447, %v452
      %v457 = vperm.slane %v441, 2
      %v458 = vmul.f32 %v414, %v457
      %v459 = vmul.f32 %v415, %v457
      %v460 = vmul.f32 %v416, %v457
      %v461 = vmul.f32 %v417, %v457
      %v462 = vmul.f32 %v418, %v457
      %v463 = vmul.f32 %v419, %v457
      %v464 = vmul.f32 %v420, %v457
      %v465 = vmul.f32 %v421, %v457
      %vm474 = vcmask 1046528
      %v475 = vrot.slane %v458, 1
      %v476 = vrot.slane %v459, 1
      %v477 = vsel %vm474, %v475, %v476
      %v478 = vrot.slane %v460, 1
      %v479 = vrot.slane %v461, 1
      %v480 = vsel %vm474, %v478, %v479
      %v481 = vrot.slane %v462, 1
      %v482 = vrot.slane %v463, 1
      %v483 = vsel %vm474, %v481, %v482
      %v484 = vrot.slane %v464, 1
      %v485 = vrot.slane %v465, 1
      %v486 = vsel %vm474, %v484, %v485
      %v491 = vadd.f32 %v453, %v477
      %v492 = vadd.f32 %v454, %v480
      %v493 = vadd.f32 %v455, %v483
      %v494 = vadd.f32 %v456, %v486
      %v495 = vperm.slane %v441, 3
      %v496 = vmul.f32 %v429, %v495
      %v497 = vmul.f32 %v431, %v495
      %v498 = vmul.f32 %v433, %v495
      %v499 = vmul.f32 %v435, %v495
      %v500 = vadd.f32 %v491, %v496
      %v501 = vadd.f32 %v492, %v497
      %v502 = vadd.f32 %v493, %v498
      %v503 = vadd.f32 %v494, %v499
      %v504 = vperm.slane %v441, 4
      %v505 = vmul.f32 %v437, %v504
      %v506 = vmul.f32 %v438, %v504
      %v507 = vmul.f32 %v439, %v504
      %v508 = vmul.f32 %v440, %v504
      %v509 = vadd.f32 %v500, %v505
      %v510 = vadd.f32 %v501, %v506
      %v511 = vadd.f32 %v502, %v507
      %v512 = vadd.f32 %v503, %v508
      %v513 = vperm.slane %v441, 5
      %v514 = vmul.f32 %v429, %v513
      %v515 = vmul.f32 %v430, %v513
      %v516 = vmul.f32 %v431, %v513
      %v517 = vmul.f32 %v432, %v513
      %v518 = vmul.f32 %v433, %v513
      %v519 = vmul.f32 %v434, %v513
      %v520 = vmul.f32 %v435, %v513
      %v521 = vmul.f32 %v436, %v513
      %v530 = vrot.slane %v514, 1
      %v531 = vrot.slane %v515, 1
      %v532 = vsel %vm474, %v530, %v531
      %v533 = vrot.slane %v516, 1
      %v534 = vrot.slane %v517, 1
      %v535 = vsel %vm474, %v533, %v534
      %v536 = vrot.slane %v518, 1
      %v537 = vrot.slane %v519, 1
      %v538 = vsel %vm474, %v536, %v537
      %v539 = vrot.slane %v520, 1
      %v540 = vrot.slane %v521, 1
      %v541 = vsel %vm474, %v539, %v540
      %v546 = vadd.f32 %v509, %v532
      %v547 = vadd.f32 %v510, %v535
      %v548 = vadd.f32 %v511, %v538
      %v549 = vadd.f32 %v512, %v541
      %v550 = vperm.slane %v441, 6
      %v551 = vmul.f32 %v416, %v550
      %v552 = vmul.f32 %v418, %v550
      %v553 = vmul.f32 %v420, %v550
      %v554 = vmul.f32 %v422, %v550
      %v555 = vadd.f32 %v546, %v551
      %v556 = vadd.f32 %v547, %v552
      %v557 = vadd.f32 %v548, %v553
      %v558 = vadd.f32 %v549, %v554
      %v559 = vperm.slane %v441, 7
      %v560 = vmul.f32 %v425, %v559
      %v561 = vmul.f32 %v426, %v559
      %v562 = vmul.f32 %v427, %v559
      %v563 = vmul.f32 %v428, %v559
      %v564 = vadd.f32 %v555, %v560
      %v565 = vadd.f32 %v556, %v561
      %v566 = vadd.f32 %v557, %v562
      %v567 = vadd.f32 %v558, %v563
      %v568 = vperm.slane %v442, 0
      %v569 = vmul.f32 %v416, %v568
      %v570 = vmul.f32 %v417, %v568
      %v571 = vmul.f32 %v418, %v568
      %v572 = vmul.f32 %v419, %v568
      %v573 = vmul.f32 %v420, %v568
      %v574 = vmul.f32 %v421, %v568
      %v575 = vmul.f32 %v422, %v568
      %v576 = vmul.f32 %v423, %v568
      %v585 = vrot.slane %v569, 1
      %v586 = vrot.slane %v570, 1
      %v587 = vsel %vm474, %v585, %v586
      %v588 = vrot.slane %v571, 1
      %v589 = vrot.slane %v572, 1
      %v590 = vsel %vm474, %v588, %v589
      %v591 = vrot.slane %v573, 1
      %v592 = vrot.slane %v574, 1
      %v593 = vsel %vm474, %v591, %v592
      %v594 = vrot.slane %v575, 1
      %v595 = vrot.slane %v576, 1
      %v596 = vsel %vm474, %v594, %v595
      %v601 = vadd.f32 %v564, %v587
      %v602 = vadd.f32 %v565, %v590
      %v603 = vadd.f32 %v566, %v593
      %v604 = vadd.f32 %v567, %v596
      %v605 = vld [vmem:[%s2] sm:$0x1]
      %v607 = vperm.slane %v605, 0
      %v609 = vmul.f32 %v601, %v607
      %v610 = vmul.f32 %v602, %v607
      %v611 = vmul.f32 %v603, %v607
      %v612 = vmul.f32 %v604, %v607
      %v613 = vld [vmem:[%s3] sm:$0x1]
      %v615 = vperm.slane %v613, 0
      %v617 = vadd.f32 %v609, %v615
      %v618 = vadd.f32 %v610, %v615
      %v619 = vadd.f32 %v611, %v615
      %v620 = vadd.f32 %v612, %v615
      %v621 = vsub.f32 0.0, %v617
      %v622 = vsub.f32 0.0, %v618
      %v623 = vsub.f32 0.0, %v619
      %v624 = vsub.f32 0.0, %v620
      %v625 = vmin.f32 %v621, 60.0
      %v626 = vmin.f32 %v622, 60.0
      %v627 = vmin.f32 %v623, 60.0
      %v628 = vmin.f32 %v624, 60.0
      %v629 = vmul.f32 %v625, 1.442695
      %v630 = vpow.pop %v629
      %v631 = vmul.f32 %v626, 1.442695
      %v632 = vpow.pop %v631
      %v633 = vmul.f32 %v627, 1.442695
      %v634 = vpow.pop %v633
      %v635 = vmul.f32 %v628, 1.442695
      %v636 = vpow.pop %v635
      %v637 = vadd.f32 %v630, 1.0
      %v638 = vadd.f32 %v632, 1.0
      %v639 = vadd.f32 %v634, 1.0
      %v640 = vadd.f32 %v636, 1.0
      %v641 = vrcp.pop %v637
      %v642 = vrcp.pop %v638
      %v643 = vrcp.pop %v639
      %v644 = vrcp.pop %v640
      %v645 = vmul.f32 %v617, %v641
      %v646 = vmul.f32 %v618, %v642
      %v647 = vmul.f32 %v619, %v643
      %v648 = vmul.f32 %v620, %v644
      %v649 = vadd.f32 %v645, %v646
      %v650 = vadd.f32 %v649, %v647
      %v651 = vadd.f32 %v650, %v648
      %v652 = vrot.slane %v651, 4
      %v653 = vadd.f32 %v651, %v652
      %v654 = vrot.slane %v653, 2
      %v655 = vadd.f32 %v653, %v654
      %v656 = vrot.slane %v655, 1
      %v657 = vadd.f32 %v655, %v656
      %v658 = vrcp.pop 32.0
      %v659 = vmul.f32 32.0, %v658
      %v660 = vsub.f32 1.0, %v659
      %v661 = vmul.f32 %v658, %v660
      %v662 = vadd.f32 %v658, %v661
      %vm663 = vweird.f32 %v658
      %v664 = vsel %vm663, %v658, %v662
      %v665 = vmul.f32 %v657, %v664
      %v666 = vld [vmem:[%s4] sm:$0xff]
      %v667 = vld [vmem:[%s4 + $0x8] sm:$0xff]
      %v668 = vld [vmem:[%s4 + $0x10] sm:$0xff]
      %v669 = vld [vmem:[%s4 + $0x18] sm:$0xff]
      %v670 = vld [vmem:[%s4 + $0x20] sm:$0xff]
      %v671 = vld [vmem:[%s4 + $0x28] sm:$0xff]
      %v672 = vld [vmem:[%s4 + $0x30] sm:$0xff]
      %v673 = vld [vmem:[%s4 + $0x38] sm:$0xff]
      %v674 = vld [vmem:[%s4 + $0x40] sm:$0xff]
      %v675 = vld [vmem:[%s4 + $0x48] sm:$0xff]
      %v676 = vld [vmem:[%s4 + $0x50] sm:$0xff]
      %v677 = vld [vmem:[%s4 + $0x58] sm:$0xff]
      %v678 = vld [vmem:[%s4 + $0x60] sm:$0xff]
      %v679 = vld [vmem:[%s4 + $0x68] sm:$0xff]
      %v680 = vld [vmem:[%s4 + $0x70] sm:$0xff]
      %v681 = vld [vmem:[%s4 + $0x78] sm:$0xff]
      %v682 = vld [vmem:[%s5] sm:$0x1]
      %683 = vmatpush.msra.mxu0 %v681
      %684 = vmatpush.msra.mxu0 %v680
      %685 = vmatpush.msra.mxu0 %v679
      %686 = vmatpush.msra.mxu0 %v678
      %687 = vmatpush.msra.mxu0 %v677
      %688 = vmatpush.msra.mxu0 %v676
      %689 = vmatpush.msra.mxu0 %v675
      %690 = vmatpush.msra.mxu0 %v674
      %691 = vmatpush.msra.mxu0 %v673
      %692 = vmatpush.msra.mxu0 %v672
      %693 = vmatpush.msra.mxu0 %v671
      %694 = vmatpush.msra.mxu0 %v670
      %695 = vmatpush.msra.mxu0 %v669
      %696 = vmatpush.msra.mxu0 %v668
      %697 = vmatpush.msra.mxu0 %v667
      %698 = vmatpush.msra.mxu0 %v666
      %699 = vmatmul.f32.gmra.mxu0 %v665
      %v700 = vpop.f32.mrf.mxu0
      %v701 = vadd.f32 %v682, %v700
      %702 = vdwg.mxu0
      %v703 = vsub.f32 0.0, %v701
      %v704 = vmin.f32 %v703, 60.0
      %v705 = vmul.f32 %v704, 1.442695
      %v706 = vpow.pop %v705
      %v707 = vadd.f32 %v706, 1.0
      %v708 = vrcp.pop %v707
      %v709 = vmul.f32 %v701, %v708
      %v710 = vld [vmem:[%s6] sm:$0xff]
      %v711 = vld [vmem:[%s6 + $0x8] sm:$0xff]
      %v712 = vld [vmem:[%s6 + $0x10] sm:$0xff]
      %v713 = vld [vmem:[%s6 + $0x18] sm:$0xff]
      %v714 = vld [vmem:[%s6 + $0x20] sm:$0xff]
      %v715 = vld [vmem:[%s6 + $0x28] sm:$0xff]
      %v716 = vld [vmem:[%s6 + $0x30] sm:$0xff]
      %v717 = vld [vmem:[%s6 + $0x38] sm:$0xff]
      %v718 = vld [vmem:[%s6 + $0x40] sm:$0xff]
      %v719 = vld [vmem:[%s6 + $0x48] sm:$0xff]
      %v720 = vld [vmem:[%s6 + $0x50] sm:$0xff]
      %v721 = vld [vmem:[%s6 + $0x58] sm:$0xff]
      %v722 = vld [vmem:[%s6 + $0x60] sm:$0xff]
      %v723 = vld [vmem:[%s6 + $0x68] sm:$0xff]
      %v724 = vld [vmem:[%s6 + $0x70] sm:$0xff]
      %v725 = vld [vmem:[%s6 + $0x78] sm:$0xff]
      %v726 = vld [vmem:[%s7] sm:$0x1]
      %727 = vmatpush.msra.mxu0 %v725
      %728 = vmatpush.msra.mxu0 %v724
      %729 = vmatpush.msra.mxu0 %v723
      %730 = vmatpush.msra.mxu0 %v722
      %731 = vmatpush.msra.mxu0 %v721
      %732 = vmatpush.msra.mxu0 %v720
      %733 = vmatpush.msra.mxu0 %v719
      %734 = vmatpush.msra.mxu0 %v718
      %735 = vmatpush.msra.mxu0 %v717
      %736 = vmatpush.msra.mxu0 %v716
      %737 = vmatpush.msra.mxu0 %v715
      %738 = vmatpush.msra.mxu0 %v714
      %739 = vmatpush.msra.mxu0 %v713
      %740 = vmatpush.msra.mxu0 %v712
      %741 = vmatpush.msra.mxu0 %v711
      %742 = vmatpush.msra.mxu0 %v710
      %743 = vmatmul.f32.gmra.mxu0 %v709
      %v744 = vpop.f32.mrf.mxu0
      %v745 = vadd.f32 %v726, %v744
      %746 = vdwg.mxu0
      %v747 = vsub.f32 0.0, %v745
      %v748 = vmin.f32 %v747, 60.0
      %v749 = vmul.f32 %v748, 1.442695
      %v750 = vpow.pop %v749
      %v751 = vadd.f32 %v750, 1.0
      %v752 = vrcp.pop %v751
      %v753 = vperm.slane %v752, 0
      %v754 = vmul.f32 %v645, %v753
      %v755 = vmul.f32 %v646, %v753
      %v756 = vmul.f32 %v647, %v753
      %v757 = vmul.f32 %v648, %v753
      %v758 = vpack.c.bf16 %v755, %v754
      %v759 = vpack.c.bf16 %v757, %v756
      %v760 = vld [vmem:[%s8] sm:$0xf]
      %v761 = vld [vmem:[%s8 + $0x4] sm:$0xf]
      %v762 = vld [vmem:[%s8 + $0x8] sm:$0xf]
      %v763 = vld [vmem:[%s8 + $0xc] sm:$0xf]
      %v764 = vld [vmem:[%s8 + $0x10] sm:$0xf]
      %v765 = vld [vmem:[%s8 + $0x14] sm:$0xf]
      %v766 = vld [vmem:[%s8 + $0x18] sm:$0xf]
      %v767 = vld [vmem:[%s8 + $0x1c] sm:$0xf]
      %v768 = vld [vmem:[%s8 + $0x20] sm:$0xf]
      %v769 = vld [vmem:[%s8 + $0x24] sm:$0xf]
      %v770 = vld [vmem:[%s8 + $0x28] sm:$0xf]
      %v771 = vld [vmem:[%s8 + $0x2c] sm:$0xf]
      %v772 = vld [vmem:[%s8 + $0x30] sm:$0xf]
      %v773 = vld [vmem:[%s8 + $0x34] sm:$0xf]
      %v774 = vld [vmem:[%s8 + $0x38] sm:$0xf]
      %v775 = vld [vmem:[%s8 + $0x3c] sm:$0xf]
      %v792 = vunpack.c.l.b16 %v760
      %v793 = vunpack.c.l.b16 %v761
      %v794 = vunpack.c.l.b16 %v762
      %v795 = vunpack.c.l.b16 %v763
      %v796 = vunpack.c.l.b16 %v764
      %v797 = vunpack.c.l.b16 %v765
      %v798 = vunpack.c.l.b16 %v766
      %v799 = vunpack.c.l.b16 %v767
      %v800 = vunpack.c.l.b16 %v768
      %v801 = vunpack.c.l.b16 %v769
      %v802 = vunpack.c.l.b16 %v770
      %v803 = vunpack.c.l.b16 %v771
      %v804 = vunpack.c.l.b16 %v772
      %v805 = vunpack.c.l.b16 %v773
      %v806 = vunpack.c.l.b16 %v774
      %v807 = vunpack.c.l.b16 %v775
      %v808 = vpack.c.b16 %v793, %v792
      %v809 = vpack.c.b16 %v795, %v794
      %v810 = vpack.c.b16 %v797, %v796
      %v811 = vpack.c.b16 %v799, %v798
      %v812 = vpack.c.b16 %v801, %v800
      %v813 = vpack.c.b16 %v803, %v802
      %v814 = vpack.c.b16 %v805, %v804
      %v815 = vpack.c.b16 %v807, %v806
      %824 = vmatpush.bf16.msra.mxu0 %v815
      %825 = vmatpush.bf16.msra.mxu0 %v814
      %826 = vmatpush.bf16.msra.mxu0 %v813
      %827 = vmatpush.bf16.msra.mxu0 %v812
      %828 = vmatpush.bf16.msra.mxu0 %v811
      %829 = vmatpush.bf16.msra.mxu0 %v810
      %830 = vmatpush.bf16.msra.mxu0 %v809
      %831 = vmatpush.bf16.msra.mxu0 %v808
      %832 = vmatmul.bf16.gmra.mxu0 %v758
      %v833 = vpop.f32.mrf.mxu0
      %v834 = vadd.f32 0.0, %v833
      %v835 = vpop.f32.mrf.mxu0
      %v836 = vadd.f32 0.0, %v835
      %837 = vmatmul.bf16.gmra.mxu0 %v759
      %v838 = vpop.f32.mrf.mxu0
      %v839 = vadd.f32 0.0, %v838
      %v840 = vpop.f32.mrf.mxu0
      %v841 = vadd.f32 0.0, %v840
      %842 = vdwg.mxu0
      %v843 = vld [vmem:[%s9] sm:$0x1]
      %v845 = vperm.slane %v843, 0
      %v847 = vmul.f32 %v834, %v845
      %v848 = vmul.f32 %v836, %v845
      %v849 = vmul.f32 %v839, %v845
      %v850 = vmul.f32 %v841, %v845
      %v851 = vld [vmem:[%s10] sm:$0x1]
      %v853 = vperm.slane %v851, 0
      %v855 = vadd.f32 %v847, %v853
      %v856 = vadd.f32 %v848, %v853
      %v857 = vadd.f32 %v849, %v853
      %v858 = vadd.f32 %v850, %v853
      %v859 = vpack.c.bf16 %v855, %v855
      %v860 = vpack.c.bf16 %v856, %v856
      %v861 = vpack.c.bf16 %v857, %v857
      %v862 = vpack.c.bf16 %v858, %v858
      %863 = vst [vmem:[%s386] sm:$0xf] %v859
      %864 = vst [vmem:[%s386 + $0x4] sm:$0xf] %v860
      %865 = vst [vmem:[%s386 + $0x8] sm:$0xf] %v861
      %866 = vst [vmem:[%s386 + $0xc] sm:$0xf] %v862
      %p867 = scmp.lt.s32.totalorder %s22, 1
      %s868 = scalar_select %p867, %s22, 1
      %s869 = smul.addr %s868, 4
      %s870 = smul.addr %s869, 4
      %s871 = scalar_lea.vmem %s11, %s870
      // Predicated region
      $region65: #{efficientnet_b3_forward.6} parent=63 // pred_check
        %p872 = pneg %p276
      $region66: #{efficientnet_b3_forward.6} parent=63 // pred_check_branch
        %874 = sbr.rel (%p872) target = $region68
      $region67: #{efficientnet_b3_forward.6} parent=63 // pred_region
        _
      $region68: #{efficientnet_b3_forward.6} parent=63 // pred_fallthru
        _
    $region64: #{efficientnet_b3_forward.6} parent=5 // pred_fallthru
      _
    %p875 = scmp.le.s32.totalorder 2, %s17
    // Predicated region
    $region69: #{efficientnet_b3_forward.6} parent=5 // pred_check
      %p876 = pneg %p875
    $region70: #{efficientnet_b3_forward.6} parent=5 // pred_check_branch
      %878 = sbr.rel (%p876) target = $region72
    $region71: #{efficientnet_b3_forward.6} parent=5 // pred_region
      %s879 = ssub.s32 %s17, 2
      // Predicated region
      $region73: #{efficientnet_b3_forward.6} parent=71 // pred_check
        %p880 = pneg %p282
      $region74: #{efficientnet_b3_forward.6} parent=71 // pred_check_branch
        %882 = sbr.rel (%p880) target = $region76
      $region75: #{efficientnet_b3_forward.6} parent=71 // pred_region
        %p883 = scmp.lt.s32.totalorder %s23, 1
        %s884 = scalar_select %p883, %s23, 1
        %s885 = smul.addr %s884, 4
        %s886 = smul.addr %s885, 4
        %s887 = scalar_lea.vmem %s11, %s886
      $region76: #{efficientnet_b3_forward.6} parent=71 // pred_fallthru
        _
    $region72: #{efficientnet_b3_forward.6} parent=5 // pred_fallthru
      _
  $region6: #{efficientnet_b3_forward.6} parent=0 // loop_footer
    %s21 = sadd.s32 1, %s17
  $region7: #{efficientnet_b3_forward.6} parent=0 // loop_footer_branch
    %16 = sbr.rel target = $region3
  $region8: #{efficientnet_b3_forward.6} parent=0 // loop_exit
    _

// kernel: efficientnet_b3_forward.7
$region0: #{efficientnet_b3_forward.7}
  #allocation0 [shape = 'u32[]', space=smem, size = 0x4, offset = 0x4, fixed_abs, tag = 'smem constant byte address 0x4 - core index']
  #allocation1 [shape = 'u32[72,128]{1,0:T(1,128)}', space=vmem, size = 0x9000, scoped, tag = 'internal scratch']
  %s0 = inlined_call_operand.vmem [shape: bf16[2,4,3,5,128], index: 0, kind: input, shape index: {}]
  %s1 = inlined_call_operand.vmem [shape: f32[9,128], index: 1, kind: input, shape index: {}]
  %s2 = inlined_call_operand.vmem [shape: f32[1,128], index: 2, kind: input, shape index: {}]
  %s3 = inlined_call_operand.vmem [shape: f32[1,128], index: 3, kind: input, shape index: {}]
  %s4 = inlined_call_operand.vmem [shape: f32[128,128], index: 4, kind: input, shape index: {}]
  %s5 = inlined_call_operand.vmem [shape: f32[1,128], index: 5, kind: input, shape index: {}]
  %s6 = inlined_call_operand.vmem [shape: f32[128,128], index: 6, kind: input, shape index: {}]
  %s7 = inlined_call_operand.vmem [shape: f32[1,128], index: 7, kind: input, shape index: {}]
  %s8 = inlined_call_operand.vmem [shape: bf16[128,128], index: 8, kind: input, shape index: {}]
  %s9 = inlined_call_operand.vmem [shape: f32[1,128], index: 9, kind: input, shape index: {}]
  %s10 = inlined_call_operand.vmem [shape: f32[1,128], index: 10, kind: input, shape index: {}]
  %s11 = inlined_call_operand.hbm [shape: f32[2,8,128], index: 11, kind: output, shape index: {}]
  %s12 = sld [smem:[#allocation0]]
  $region77: #{efficientnet_b3_forward.7} parent=0
    _
  %s14 = ssub.s32 1, %s12
  %s15 = scalar_select 0, %s14, %s12
  $region1: #{efficientnet_b3_forward.7} parent=0
    #allocation2 [shape = 'u8[8192]{0}', space=vmem, size = 0x2000, scoped, tag = 'output window, operand 0']
    #allocation3 [shape = 's32[2]{0}', space=sflag, size = 0x8, scoped, tag = 'scoped memory for efficientnet_b3_forward.7']
    %16 = vsyncpa [#allocation3], 0
    %s17 = scalar_lea.sflag [#allocation3], 1
    %18 = vsyncpa %s17, 0
    loop: start=0, step=1, limit=4
    $region2: #{efficientnet_b3_forward.7} parent=1 // loop_pre_header
      _
    $region3: #{efficientnet_b3_forward.7} parent=1 // loop_header
      %s20 = sphi 0, %s24
      %p21 = scmp.ge.s32.totalorder %s20, 4
      %s30 = sphi 0, %s32
      %s33 = sphi 0, %s30
      %s34 = sphi 0, %s33
      %s50 = sphi 0, %s34
      %s54 = sphi 0, %s54
      %s56 = sphi 0, %s54
      %s57 = sphi 0, %s56
      %s71 = sphi 0, %s57
      %s75 = sphi 0, %s75
      %s77 = sphi 0, %s75
      %s78 = sphi 0, %s77
      %s92 = sphi 0, %s78
      %s96 = sphi 0, %s96
      %s98 = sphi 0, %s96
      %s99 = sphi 0, %s98
      %s113 = sphi 0, %s99
      %s117 = sphi 0, %s117
      %s119 = sphi 0, %s117
      %s120 = sphi 0, %s119
      %s134 = sphi 0, %s120
      %s138 = sphi 0, %s138
      %s140 = sphi 0, %s138
      %s141 = sphi 0, %s140
      %s155 = sphi 0, %s141
      %s159 = sphi 0, %s159
      %s161 = sphi 0, %s159
      %s162 = sphi 0, %s161
      %s176 = sphi 0, %s162
      %s180 = sphi 0, %s180
      %s182 = sphi 0, %s180
      %s183 = sphi 0, %s182
      %s197 = sphi 0, %s183
      %s201 = sphi 0, %s201
      %s203 = sphi 0, %s201
      %s204 = sphi 0, %s203
      %s218 = sphi 0, %s204
      %s222 = sphi 0, %s222
      %s224 = sphi 0, %s222
      %s225 = sphi 0, %s224
      %s239 = sphi 0, %s225
      %s243 = sphi 0, %s243
      %s245 = sphi 0, %s243
      %s246 = sphi 0, %s245
      %s260 = sphi 0, %s246
      %s266 = sphi 0, %s268
      %s269 = sphi 0, %s266
      %s270 = sphi 0, %s269
      %s286 = sphi 0, %s270
    $region4: #{efficientnet_b3_forward.7} parent=1 // loop_header_branch
      %23 = sbr.rel (%p21) target = $region8
    $region5: #{efficientnet_b3_forward.7} parent=1 // loop_body
      %s25 = ssub.s32 %s20, 1
      %s26 = ssub.s32 %s20, 2
      %s27 = sadd.s32 %s20, 1
      %s28 = ssub.s32 %s20, %s27
      %p29 = scmp.eq.s32.totalorder %s28, 0
      %s31 = sadd.s32 %s30, 1
      %s32 = scalar_select %p29, %s30, %s31
      %p35 = pneg %p29
      %p36 = scmp.eq.s32.totalorder %s20, 1
      %p37 = por %p35, %p36
      %p38 = scmp.ne.s32.totalorder %s30, %s33
      %p39 = scmp.eq.s32.totalorder %s20, 0
      %p40 = por %p38, %p39
      %p41 = scmp.ne.s32.totalorder %s30, %s33
      %p42 = scmp.eq.s32.totalorder %s25, 1
      %p43 = por %p41, %p42
      %p44 = scmp.ne.s32.totalorder %s33, %s34
      %p45 = scmp.eq.s32.totalorder %s25, 0
      %p46 = por %p44, %p45
      %p47 = scmp.ne.s32.totalorder %s33, %s34
      %p48 = scmp.eq.s32.totalorder %s26, 1
      %p49 = por %p47, %p48
      %p51 = scmp.ne.s32.totalorder %s34, %s50
      %p52 = scmp.eq.s32.totalorder %s26, 0
      %p53 = por %p51, %p52
      %s55 = sadd.s32 %s54, 1
      %p58 = scmp.eq.s32.totalorder %s20, 1
      %p59 = scmp.ne.s32.totalorder %s54, %s56
      %p60 = scmp.eq.s32.totalorder %s20, 0
      %p61 = por %p59, %p60
      %p62 = scmp.ne.s32.totalorder %s54, %s56
      %p63 = scmp.eq.s32.totalorder %s25, 1
      %p64 = por %p62, %p63
      %p65 = scmp.ne.s32.totalorder %s56, %s57
      %p66 = scmp.eq.s32.totalorder %s25, 0
      %p67 = por %p65, %p66
      %p68 = scmp.ne.s32.totalorder %s56, %s57
      %p69 = scmp.eq.s32.totalorder %s26, 1
      %p70 = por %p68, %p69
      %p72 = scmp.ne.s32.totalorder %s57, %s71
      %p73 = scmp.eq.s32.totalorder %s26, 0
      %p74 = por %p72, %p73
      %s76 = sadd.s32 %s75, 1
      %p79 = scmp.eq.s32.totalorder %s20, 1
      %p80 = scmp.ne.s32.totalorder %s75, %s77
      %p81 = scmp.eq.s32.totalorder %s20, 0
      %p82 = por %p80, %p81
      %p83 = scmp.ne.s32.totalorder %s75, %s77
      %p84 = scmp.eq.s32.totalorder %s25, 1
      %p85 = por %p83, %p84
      %p86 = scmp.ne.s32.totalorder %s77, %s78
      %p87 = scmp.eq.s32.totalorder %s25, 0
      %p88 = por %p86, %p87
      %p89 = scmp.ne.s32.totalorder %s77, %s78
      %p90 = scmp.eq.s32.totalorder %s26, 1
      %p91 = por %p89, %p90
      %p93 = scmp.ne.s32.totalorder %s78, %s92
      %p94 = scmp.eq.s32.totalorder %s26, 0
      %p95 = por %p93, %p94
      %s97 = sadd.s32 %s96, 1
      %p100 = scmp.eq.s32.totalorder %s20, 1
      %p101 = scmp.ne.s32.totalorder %s96, %s98
      %p102 = scmp.eq.s32.totalorder %s20, 0
      %p103 = por %p101, %p102
      %p104 = scmp.ne.s32.totalorder %s96, %s98
      %p105 = scmp.eq.s32.totalorder %s25, 1
      %p106 = por %p104, %p105
      %p107 = scmp.ne.s32.totalorder %s98, %s99
      %p108 = scmp.eq.s32.totalorder %s25, 0
      %p109 = por %p107, %p108
      %p110 = scmp.ne.s32.totalorder %s98, %s99
      %p111 = scmp.eq.s32.totalorder %s26, 1
      %p112 = por %p110, %p111
      %p114 = scmp.ne.s32.totalorder %s99, %s113
      %p115 = scmp.eq.s32.totalorder %s26, 0
      %p116 = por %p114, %p115
      %s118 = sadd.s32 %s117, 1
      %p121 = scmp.eq.s32.totalorder %s20, 1
      %p122 = scmp.ne.s32.totalorder %s117, %s119
      %p123 = scmp.eq.s32.totalorder %s20, 0
      %p124 = por %p122, %p123
      %p125 = scmp.ne.s32.totalorder %s117, %s119
      %p126 = scmp.eq.s32.totalorder %s25, 1
      %p127 = por %p125, %p126
      %p128 = scmp.ne.s32.totalorder %s119, %s120
      %p129 = scmp.eq.s32.totalorder %s25, 0
      %p130 = por %p128, %p129
      %p131 = scmp.ne.s32.totalorder %s119, %s120
      %p132 = scmp.eq.s32.totalorder %s26, 1
      %p133 = por %p131, %p132
      %p135 = scmp.ne.s32.totalorder %s120, %s134
      %p136 = scmp.eq.s32.totalorder %s26, 0
      %p137 = por %p135, %p136
      %s139 = sadd.s32 %s138, 1
      %p142 = scmp.eq.s32.totalorder %s20, 1
      %p143 = scmp.ne.s32.totalorder %s138, %s140
      %p144 = scmp.eq.s32.totalorder %s20, 0
      %p145 = por %p143, %p144
      %p146 = scmp.ne.s32.totalorder %s138, %s140
      %p147 = scmp.eq.s32.totalorder %s25, 1
      %p148 = por %p146, %p147
      %p149 = scmp.ne.s32.totalorder %s140, %s141
      %p150 = scmp.eq.s32.totalorder %s25, 0
      %p151 = por %p149, %p150
      %p152 = scmp.ne.s32.totalorder %s140, %s141
      %p153 = scmp.eq.s32.totalorder %s26, 1
      %p154 = por %p152, %p153
      %p156 = scmp.ne.s32.totalorder %s141, %s155
      %p157 = scmp.eq.s32.totalorder %s26, 0
      %p158 = por %p156, %p157
      %s160 = sadd.s32 %s159, 1
      %p163 = scmp.eq.s32.totalorder %s20, 1
      %p164 = scmp.ne.s32.totalorder %s159, %s161
      %p165 = scmp.eq.s32.totalorder %s20, 0
      %p166 = por %p164, %p165
      %p167 = scmp.ne.s32.totalorder %s159, %s161
      %p168 = scmp.eq.s32.totalorder %s25, 1
      %p169 = por %p167, %p168
      %p170 = scmp.ne.s32.totalorder %s161, %s162
      %p171 = scmp.eq.s32.totalorder %s25, 0
      %p172 = por %p170, %p171
      %p173 = scmp.ne.s32.totalorder %s161, %s162
      %p174 = scmp.eq.s32.totalorder %s26, 1
      %p175 = por %p173, %p174
      %p177 = scmp.ne.s32.totalorder %s162, %s176
      %p178 = scmp.eq.s32.totalorder %s26, 0
      %p179 = por %p177, %p178
      %s181 = sadd.s32 %s180, 1
      %p184 = scmp.eq.s32.totalorder %s20, 1
      %p185 = scmp.ne.s32.totalorder %s180, %s182
      %p186 = scmp.eq.s32.totalorder %s20, 0
      %p187 = por %p185, %p186
      %p188 = scmp.ne.s32.totalorder %s180, %s182
      %p189 = scmp.eq.s32.totalorder %s25, 1
      %p190 = por %p188, %p189
      %p191 = scmp.ne.s32.totalorder %s182, %s183
      %p192 = scmp.eq.s32.totalorder %s25, 0
      %p193 = por %p191, %p192
      %p194 = scmp.ne.s32.totalorder %s182, %s183
      %p195 = scmp.eq.s32.totalorder %s26, 1
      %p196 = por %p194, %p195
      %p198 = scmp.ne.s32.totalorder %s183, %s197
      %p199 = scmp.eq.s32.totalorder %s26, 0
      %p200 = por %p198, %p199
      %s202 = sadd.s32 %s201, 1
      %p205 = scmp.eq.s32.totalorder %s20, 1
      %p206 = scmp.ne.s32.totalorder %s201, %s203
      %p207 = scmp.eq.s32.totalorder %s20, 0
      %p208 = por %p206, %p207
      %p209 = scmp.ne.s32.totalorder %s201, %s203
      %p210 = scmp.eq.s32.totalorder %s25, 1
      %p211 = por %p209, %p210
      %p212 = scmp.ne.s32.totalorder %s203, %s204
      %p213 = scmp.eq.s32.totalorder %s25, 0
      %p214 = por %p212, %p213
      %p215 = scmp.ne.s32.totalorder %s203, %s204
      %p216 = scmp.eq.s32.totalorder %s26, 1
      %p217 = por %p215, %p216
      %p219 = scmp.ne.s32.totalorder %s204, %s218
      %p220 = scmp.eq.s32.totalorder %s26, 0
      %p221 = por %p219, %p220
      %s223 = sadd.s32 %s222, 1
      %p226 = scmp.eq.s32.totalorder %s20, 1
      %p227 = scmp.ne.s32.totalorder %s222, %s224
      %p228 = scmp.eq.s32.totalorder %s20, 0
      %p229 = por %p227, %p228
      %p230 = scmp.ne.s32.totalorder %s222, %s224
      %p231 = scmp.eq.s32.totalorder %s25, 1
      %p232 = por %p230, %p231
      %p233 = scmp.ne.s32.totalorder %s224, %s225
      %p234 = scmp.eq.s32.totalorder %s25, 0
      %p235 = por %p233, %p234
      %p236 = scmp.ne.s32.totalorder %s224, %s225
      %p237 = scmp.eq.s32.totalorder %s26, 1
      %p238 = por %p236, %p237
      %p240 = scmp.ne.s32.totalorder %s225, %s239
      %p241 = scmp.eq.s32.totalorder %s26, 0
      %p242 = por %p240, %p241
      %s244 = sadd.s32 %s243, 1
      %p247 = scmp.eq.s32.totalorder %s20, 1
      %p248 = scmp.ne.s32.totalorder %s243, %s245
      %p249 = scmp.eq.s32.totalorder %s20, 0
      %p250 = por %p248, %p249
      %p251 = scmp.ne.s32.totalorder %s243, %s245
      %p252 = scmp.eq.s32.totalorder %s25, 1
      %p253 = por %p251, %p252
      %p254 = scmp.ne.s32.totalorder %s245, %s246
      %p255 = scmp.eq.s32.totalorder %s25, 0
      %p256 = por %p254, %p255
      %p257 = scmp.ne.s32.totalorder %s245, %s246
      %p258 = scmp.eq.s32.totalorder %s26, 1
      %p259 = por %p257, %p258
      %p261 = scmp.ne.s32.totalorder %s246, %s260
      %p262 = scmp.eq.s32.totalorder %s26, 0
      %p263 = por %p261, %p262
      %s264 = ssub.s32 %s20, %s27
      %p265 = scmp.eq.s32.totalorder %s264, 0
      %s267 = sadd.s32 %s266, 1
      %s268 = scalar_select %p265, %s266, %s267
      %p271 = pneg %p265
      %p272 = scmp.eq.s32.totalorder %s20, 1
      %p273 = por %p271, %p272
      %p274 = scmp.ne.s32.totalorder %s266, %s269
      %p275 = scmp.eq.s32.totalorder %s20, 0
      %p276 = por %p274, %p275
      %p277 = scmp.ne.s32.totalorder %s266, %s269
      %p278 = scmp.eq.s32.totalorder %s25, 1
      %p279 = por %p277, %p278
      %p280 = scmp.ne.s32.totalorder %s269, %s270
      %p281 = scmp.eq.s32.totalorder %s25, 0
      %p282 = por %p280, %p281
      %p283 = scmp.ne.s32.totalorder %s269, %s270
      %p284 = scmp.eq.s32.totalorder %s26, 1
      %p285 = por %p283, %p284
      %p287 = scmp.ne.s32.totalorder %s270, %s286
      %p288 = scmp.eq.s32.totalorder %s26, 0
      %p289 = por %p287, %p288
      %p290 = scmp.le.s32.totalorder 1, %s20
      %p291 = scmp.lt.s32.totalorder %s20, 3
      %p292 = pnand %p290, %p291
      %p293 = pneg %p292
      // Predicated region
      $region9: #{efficientnet_b3_forward.7} parent=5 // pred_check
        _
      $region10: #{efficientnet_b3_forward.7} parent=5 // pred_check_branch
        %295 = sbr.rel (%p292) target = $region12
      $region11: #{efficientnet_b3_forward.7} parent=5 // pred_region
        %s296 = ssub.s32 %s20, 1
        // Predicated region
        $region13: #{efficientnet_b3_forward.7} parent=11 // pred_check
          %p297 = pneg %p67
        $region14: #{efficientnet_b3_forward.7} parent=11 // pred_check_branch
          %299 = sbr.rel (%p297) target = $region16
        $region15: #{efficientnet_b3_forward.7} parent=11 // pred_region
          _
        $region16: #{efficientnet_b3_forward.7} parent=11 // pred_fallthru
          _
        // Predicated region
        $region17: #{efficientnet_b3_forward.7} parent=11 // pred_check
          %p300 = pneg %p88
        $region18: #{efficientnet_b3_forward.7} parent=11 // pred_check_branch
          %302 = sbr.rel (%p300) target = $region20
        $region19: #{efficientnet_b3_forward.7} parent=11 // pred_region
          _
        $region20: #{efficientnet_b3_forward.7} parent=11 // pred_fallthru
          _
        // Predicated region
        $region21: #{efficientnet_b3_forward.7} parent=11 // pred_check
          %p303 = pneg %p109
        $region22: #{efficientnet_b3_forward.7} parent=11 // pred_check_branch
          %305 = sbr.rel (%p303) target = $region24
        $region23: #{efficientnet_b3_forward.7} parent=11 // pred_region
          _
        $region24: #{efficientnet_b3_forward.7} parent=11 // pred_fallthru
          _
        // Predicated region
        $region25: #{efficientnet_b3_forward.7} parent=11 // pred_check
          %p306 = pneg %p130
        $region26: #{efficientnet_b3_forward.7} parent=11 // pred_check_branch
          %308 = sbr.rel (%p306) target = $region28
        $region27: #{efficientnet_b3_forward.7} parent=11 // pred_region
          _
        $region28: #{efficientnet_b3_forward.7} parent=11 // pred_fallthru
          _
        // Predicated region
        $region29: #{efficientnet_b3_forward.7} parent=11 // pred_check
          %p309 = pneg %p151
        $region30: #{efficientnet_b3_forward.7} parent=11 // pred_check_branch
          %311 = sbr.rel (%p309) target = $region32
        $region31: #{efficientnet_b3_forward.7} parent=11 // pred_region
          _
        $region32: #{efficientnet_b3_forward.7} parent=11 // pred_fallthru
          _
        // Predicated region
        $region33: #{efficientnet_b3_forward.7} parent=11 // pred_check
          %p312 = pneg %p172
        $region34: #{efficientnet_b3_forward.7} parent=11 // pred_check_branch
          %314 = sbr.rel (%p312) target = $region36
        $region35: #{efficientnet_b3_forward.7} parent=11 // pred_region
          _
        $region36: #{efficientnet_b3_forward.7} parent=11 // pred_fallthru
          _
        // Predicated region
        $region37: #{efficientnet_b3_forward.7} parent=11 // pred_check
          %p315 = pneg %p193
        $region38: #{efficientnet_b3_forward.7} parent=11 // pred_check_branch
          %317 = sbr.rel (%p315) target = $region40
        $region39: #{efficientnet_b3_forward.7} parent=11 // pred_region
          _
        $region40: #{efficientnet_b3_forward.7} parent=11 // pred_fallthru
          _
        // Predicated region
        $region41: #{efficientnet_b3_forward.7} parent=11 // pred_check
          %p318 = pneg %p214
        $region42: #{efficientnet_b3_forward.7} parent=11 // pred_check_branch
          %320 = sbr.rel (%p318) target = $region44
        $region43: #{efficientnet_b3_forward.7} parent=11 // pred_region
          _
        $region44: #{efficientnet_b3_forward.7} parent=11 // pred_fallthru
          _
        // Predicated region
        $region45: #{efficientnet_b3_forward.7} parent=11 // pred_check
          %p321 = pneg %p235
        $region46: #{efficientnet_b3_forward.7} parent=11 // pred_check_branch
          %323 = sbr.rel (%p321) target = $region48
        $region47: #{efficientnet_b3_forward.7} parent=11 // pred_region
          _
        $region48: #{efficientnet_b3_forward.7} parent=11 // pred_fallthru
          _
        // Predicated region
        $region49: #{efficientnet_b3_forward.7} parent=11 // pred_check
          %p324 = pneg %p256
        $region50: #{efficientnet_b3_forward.7} parent=11 // pred_check_branch
          %326 = sbr.rel (%p324) target = $region52
        $region51: #{efficientnet_b3_forward.7} parent=11 // pred_region
          _
        $region52: #{efficientnet_b3_forward.7} parent=11 // pred_fallthru
          _
      $region12: #{efficientnet_b3_forward.7} parent=5 // pred_fallthru
        _
      %p327 = scmp.lt.s32.totalorder %s20, 2
      // Predicated region
      $region53: #{efficientnet_b3_forward.7} parent=5 // pred_check
        %p328 = pneg %p327
      $region54: #{efficientnet_b3_forward.7} parent=5 // pred_check_branch
        %330 = sbr.rel (%p328) target = $region56
      $region55: #{efficientnet_b3_forward.7} parent=5 // pred_region
        // Predicated region
        $region57: #{efficientnet_b3_forward.7} parent=55 // pred_check
          %p331 = pneg %p40
        $region58: #{efficientnet_b3_forward.7} parent=55 // pred_check_branch
          %333 = sbr.rel (%p331) target = $region60
        $region59: #{efficientnet_b3_forward.7} parent=55 // pred_region
          %p334 = scmp.lt.s32.totalorder %s20, 1
          %s335 = scalar_select %p334, %s20, 1
          %s336 = smul.addr %s335, 12
          %s337 = smul.addr %s336, 4
          %s338 = scalar_lea.vmem %s0, %s337
        $region60: #{efficientnet_b3_forward.7} parent=55 // pred_fallthru
          _
      $region56: #{efficientnet_b3_forward.7} parent=5 // pred_fallthru
        _
      %p339 = scmp.le.s32.totalorder 1, %s20
      %p340 = scmp.lt.s32.totalorder %s20, 3
      %p341 = pnand %p339, %p340
      %p342 = pneg %p341
      // Predicated region
      $region61: #{efficientnet_b3_forward.7} parent=5 // pred_check
        _
      $region62: #{efficientnet_b3_forward.7} parent=5 // pred_check_branch
        %344 = sbr.rel (%p341) target = $region64
      $region63: #{efficientnet_b3_forward.7} parent=5 // pred_region
        %s345 = ssub.s32 %s20, 1
        %p346 = scmp.lt.s32.totalorder %s25, 1
        %s347 = scalar_select %p346, %s25, 1
        %s348 = smul.addr %s347, 12
        %s349 = smul.addr %s348, 4
        %s350 = scalar_lea.vmem %s0, %s349
        %p351 = pneg %p46
        %p352 = pneg %p43
        %p353 = pneg %p67
        %p354 = pneg %p64
        %p355 = pneg %p88
        %p356 = pneg %p85
        %p357 = pneg %p109
        %p358 = pneg %p106
        %p359 = pneg %p130
        %p360 = pneg %p127
        %p361 = pneg %p151
        %p362 = pneg %p148
        %p363 = pneg %p172
        %p364 = pneg %p169
        %p365 = pneg %p193
        %p366 = pneg %p190
        %p367 = pneg %p214
        %p368 = pneg %p211
        %p369 = pneg %p235
        %p370 = pneg %p232
        %p371 = pneg %p256
        %p372 = pneg %p253
        %p373 = pneg %p282
        %p374 = pneg %p279
        %s375 = sand.u32 %s269, 1
        %s376 = scalar_lea.sflag [#allocation3], %s375
        %s377 = sand.u32 %s269, 1
        %s378 = smul.addr %s377, 8
        %s379 = scalar_lea.vmem [#allocation2], %s378
        %p380 = scmp.lt.s32.totalorder %s25, 1
        %s381 = scalar_select %p380, %s25, 1
        %s382 = smul.addr %s381, 12
        %s383 = smul.addr %s382, 4
        %s384 = scalar_lea.vmem %s0, %s383
        %v385 = vld [vmem:[%s384] sm:$0x7]
        %v386 = vld [vmem:[%s384 + $0x4] sm:$0x7]
        %v387 = vld [vmem:[%s384 + $0x8] sm:$0x7]
        %v388 = vld [vmem:[%s384 + $0xc] sm:$0x7]
        %v389 = vld [vmem:[%s384 + $0x10] sm:$0x7]
        %v390 = vld [vmem:[%s384 + $0x14] sm:$0x7]
        %v391 = vld [vmem:[%s384 + $0x18] sm:$0x7]
        %v392 = vld [vmem:[%s384 + $0x1c] sm:$0x7]
        %v393 = vld [vmem:[%s384 + $0x24] sm:$0x7]
        %v394 = vld [vmem:[%s384 + $0x28] sm:$0x7]
        %v395 = vunpack.c.l.bf16 %v385
        %v396 = vunpack.c.l.bf16 %v386
        %v397 = vunpack.c.l.bf16 %v387
        %v398 = vunpack.c.l.bf16 %v388
        %v399 = vunpack.c.l.bf16 %v389
        %v400 = vunpack.c.l.bf16 %v390
        %v401 = vunpack.c.l.bf16 %v391
        %v402 = vunpack.c.l.bf16 %v392
        %v403 = vunpack.c.l.bf16 %v393
        %v404 = vunpack.c.l.bf16 %v394
        %v405 = vld [vmem:[%s1] sm:$0xff]
        %v406 = vld [vmem:[%s1 + $0x8] sm:$0x1]
        %v407 = vperm.slane %v405, 0
        %v408 = vmul.f32 %v395, %v407
        %v409 = vmul.f32 %v396, %v407
        %v410 = vperm.slane %v405, 1
        %v411 = vmul.f32 %v398, %v410
        %v412 = vmul.f32 %v399, %v410
        %v413 = vadd.f32 %v408, %v411
        %v414 = vadd.f32 %v409, %v412
        %v415 = vperm.slane %v405, 2
        %v416 = vmul.f32 %v395, %v415
        %v417 = vmul.f32 %v396, %v415
        %v420 = vrot.slane %v416, 1
        %v421 = vrot.slane %v417, 1
        %v424 = vadd.f32 %v413, %v420
        %v425 = vadd.f32 %v414, %v421
        %v426 = vperm.slane %v405, 3
        %v427 = vmul.f32 %v401, %v426
        %v428 = vmul.f32 %v402, %v426
        %v429 = vadd.f32 %v424, %v427
        %v430 = vadd.f32 %v425, %v428
        %v431 = vperm.slane %v405, 4
        %v432 = vmul.f32 %v403, %v431
        %v433 = vmul.f32 %v404, %v431
        %v434 = vadd.f32 %v429, %v432
        %v435 = vadd.f32 %v430, %v433
        %v436 = vperm.slane %v405, 5
        %v437 = vmul.f32 %v401, %v436
        %v438 = vmul.f32 %v402, %v436
        %v441 = vrot.slane %v437, 1
        %v442 = vrot.slane %v438, 1
        %v445 = vadd.f32 %v434, %v441
        %v446 = vadd.f32 %v435, %v442
        %v447 = vperm.slane %v405, 6
        %v448 = vmul.f32 %v396, %v447
        %v449 = vmul.f32 %v397, %v447
        %v450 = vadd.f32 %v445, %v448
        %v451 = vadd.f32 %v446, %v449
        %v452 = vperm.slane %v405, 7
        %v453 = vmul.f32 %v399, %v452
        %v454 = vmul.f32 %v400, %v452
        %v455 = vadd.f32 %v450, %v453
        %v456 = vadd.f32 %v451, %v454
        %v457 = vperm.slane %v406, 0
        %v458 = vmul.f32 %v396, %v457
        %v459 = vmul.f32 %v397, %v457
        %v462 = vrot.slane %v458, 1
        %v463 = vrot.slane %v459, 1
        %v466 = vadd.f32 %v455, %v462
        %v467 = vadd.f32 %v456, %v463
        %v468 = vld [vmem:[%s2] sm:$0x1]
        %v470 = vperm.slane %v468, 0
        %v472 = vrot.slane %v470, 4
        %v474 = vmul.f32 %v466, %v470
        %v475 = vmul.f32 %v467, %v472
        %v476 = vld [vmem:[%s3] sm:$0x1]
        %v478 = vperm.slane %v476, 0
        %v480 = vrot.slane %v478, 4
        %v482 = vadd.f32 %v474, %v478
        %v483 = vadd.f32 %v475, %v480
        %v484 = vsub.f32 0.0, %v482
        %v485 = vsub.f32 0.0, %v483
        %v486 = vmin.f32 %v484, 60.0
        %v487 = vmin.f32 %v485, 60.0
        %v488 = vmul.f32 %v486, 1.442695
        %v489 = vpow.pop %v488
        %v490 = vmul.f32 %v487, 1.442695
        %v491 = vpow.pop %v490
        %v492 = vadd.f32 %v489, 1.0
        %v493 = vadd.f32 %v491, 1.0
        %v494 = vrcp.pop %v492
        %v495 = vrcp.pop %v493
        %v496 = vmul.f32 %v482, %v494
        %v497 = vmul.f32 %v483, %v495
        %500 = vst [vmem:[#allocation1] ss:$2 sm:$0xff] %v496
        %s501 = scalar_lea.vmem [#allocation1], 1
        %502 = vst [vmem:[%s501] ss:$2 sm:$0xff] %v497
        %v503 = vld.sshfl [vmem:[#allocation1] sm:$0xff pattern:$0x75316420]
        %v505 = vrot.slane %v503, 4
        %v506 = vadd.f32 %v503, %v505
        %v507 = vrot.slane %v506, 2
        %v508 = vadd.f32 %v506, %v507
        %v509 = vrot.slane %v508, 1
        %v510 = vadd.f32 %v508, %v509
        %v511 = vrcp.pop 8.0
        %v512 = vmul.f32 8.0, %v511
        %v513 = vsub.f32 1.0, %v512
        %v514 = vmul.f32 %v511, %v513
        %v515 = vadd.f32 %v511, %v514
        %vm516 = vweird.f32 %v511
        %v517 = vsel %vm516, %v511, %v515
        %v518 = vmul.f32 %v510, %v517
        %v519 = vld [vmem:[%s4] sm:$0xff]
        %v520 = vld [vmem:[%s4 + $0x8] sm:$0xff]
        %v521 = vld [vmem:[%s4 + $0x10] sm:$0xff]
        %v522 = vld [vmem:[%s4 + $0x18] sm:$0xff]
        %v523 = vld [vmem:[%s4 + $0x20] sm:$0xff]
        %v524 = vld [vmem:[%s4 + $0x28] sm:$0xff]
        %v525 = vld [vmem:[%s4 + $0x30] sm:$0xff]
        %v526 = vld [vmem:[%s4 + $0x38] sm:$0xff]
        %v527 = vld [vmem:[%s4 + $0x40] sm:$0xff]
        %v528 = vld [vmem:[%s4 + $0x48] sm:$0xff]
        %v529 = vld [vmem:[%s4 + $0x50] sm:$0xff]
        %v530 = vld [vmem:[%s4 + $0x58] sm:$0xff]
        %v531 = vld [vmem:[%s4 + $0x60] sm:$0xff]
        %v532 = vld [vmem:[%s4 + $0x68] sm:$0xff]
        %v533 = vld [vmem:[%s4 + $0x70] sm:$0xff]
        %v534 = vld [vmem:[%s4 + $0x78] sm:$0xff]
        %v535 = vld [vmem:[%s5] sm:$0x1]
        %536 = vmatpush.msra.mxu0 %v534
        %537 = vmatpush.msra.mxu0 %v533
        %538 = vmatpush.msra.mxu0 %v532
        %539 = vmatpush.msra.mxu0 %v531
        %540 = vmatpush.msra.mxu0 %v530
        %541 = vmatpush.msra.mxu0 %v529
        %542 = vmatpush.msra.mxu0 %v528
        %543 = vmatpush.msra.mxu0 %v527
        %544 = vmatpush.msra.mxu0 %v526
        %545 = vmatpush.msra.mxu0 %v525
        %546 = vmatpush.msra.mxu0 %v524
        %547 = vmatpush.msra.mxu0 %v523
        %548 = vmatpush.msra.mxu0 %v522
        %549 = vmatpush.msra.mxu0 %v521
        %550 = vmatpush.msra.mxu0 %v520
        %551 = vmatpush.msra.mxu0 %v519
        %552 = vmatmul.f32.gmra.mxu0 %v518
        %v553 = vpop.f32.mrf.mxu0
        %v554 = vadd.f32 %v535, %v553
        %555 = vdwg.mxu0
        %v556 = vsub.f32 0.0, %v554
        %v557 = vmin.f32 %v556, 60.0
        %v558 = vmul.f32 %v557, 1.442695
        %v559 = vpow.pop %v558
        %v560 = vadd.f32 %v559, 1.0
        %v561 = vrcp.pop %v560
        %v562 = vmul.f32 %v554, %v561
        %v563 = vld [vmem:[%s6] sm:$0xff]
        %v564 = vld [vmem:[%s6 + $0x8] sm:$0xff]
        %v565 = vld [vmem:[%s6 + $0x10] sm:$0xff]
        %v566 = vld [vmem:[%s6 + $0x18] sm:$0xff]
        %v567 = vld [vmem:[%s6 + $0x20] sm:$0xff]
        %v568 = vld [vmem:[%s6 + $0x28] sm:$0xff]
        %v569 = vld [vmem:[%s6 + $0x30] sm:$0xff]
        %v570 = vld [vmem:[%s6 + $0x38] sm:$0xff]
        %v571 = vld [vmem:[%s6 + $0x40] sm:$0xff]
        %v572 = vld [vmem:[%s6 + $0x48] sm:$0xff]
        %v573 = vld [vmem:[%s6 + $0x50] sm:$0xff]
        %v574 = vld [vmem:[%s6 + $0x58] sm:$0xff]
        %v575 = vld [vmem:[%s6 + $0x60] sm:$0xff]
        %v576 = vld [vmem:[%s6 + $0x68] sm:$0xff]
        %v577 = vld [vmem:[%s6 + $0x70] sm:$0xff]
        %v578 = vld [vmem:[%s6 + $0x78] sm:$0xff]
        %v579 = vld [vmem:[%s7] sm:$0x1]
        %580 = vmatpush.msra.mxu0 %v578
        %581 = vmatpush.msra.mxu0 %v577
        %582 = vmatpush.msra.mxu0 %v576
        %583 = vmatpush.msra.mxu0 %v575
        %584 = vmatpush.msra.mxu0 %v574
        %585 = vmatpush.msra.mxu0 %v573
        %586 = vmatpush.msra.mxu0 %v572
        %587 = vmatpush.msra.mxu0 %v571
        %588 = vmatpush.msra.mxu0 %v570
        %589 = vmatpush.msra.mxu0 %v569
        %590 = vmatpush.msra.mxu0 %v568
        %591 = vmatpush.msra.mxu0 %v567
        %592 = vmatpush.msra.mxu0 %v566
        %593 = vmatpush.msra.mxu0 %v565
        %594 = vmatpush.msra.mxu0 %v564
        %595 = vmatpush.msra.mxu0 %v563
        %596 = vmatmul.f32.gmra.mxu0 %v562
        %v597 = vpop.f32.mrf.mxu0
        %v598 = vadd.f32 %v579, %v597
        %599 = vdwg.mxu0
        %v600 = vsub.f32 0.0, %v598
        %v601 = vmin.f32 %v600, 60.0
        %v602 = vmul.f32 %v601, 1.442695
        %v603 = vpow.pop %v602
        %v604 = vadd.f32 %v603, 1.0
        %v605 = vrcp.pop %v604
        %v606 = vperm.slane %v605, 0
        %v608 = vrot.slane %v606, 4
        %v610 = vmul.f32 %v496, %v606
        %v611 = vmul.f32 %v497, %v608
        %614 = vst [vmem:[#allocation1] ss:$2 sm:$0xff] %v610
        %s615 = scalar_lea.vmem [#allocation1], 1
        %616 = vst [vmem:[%s615] ss:$2 sm:$0xff] %v611
        %v617 = vld.sshfl [vmem:[#allocation1] sm:$0xff pattern:$0x75316420]
        %v619 = vpack.c.bf16 %v617, %v617
        %v620 = vld [vmem:[%s8] sm:$0xf]
        %v621 = vld [vmem:[%s8 + $0x4] sm:$0xf]
        %v622 = vld [vmem:[%s8 + $0x8] sm:$0xf]
        %v623 = vld [vmem:[%s8 + $0xc] sm:$0xf]
        %v624 = vld [vmem:[%s8 + $0x10] sm:$0xf]
        %v625 = vld [vmem:[%s8 + $0x14] sm:$0xf]
        %v626 = vld [vmem:[%s8 + $0x18] sm:$0xf]
        %v627 = vld [vmem:[%s8 + $0x1c] sm:$0xf]
        %v628 = vld [vmem:[%s8 + $0x20] sm:$0xf]
        %v629 = vld [vmem:[%s8 + $0x24] sm:$0xf]
        %v630 = vld [vmem:[%s8 + $0x28] sm:$0xf]
        %v631 = vld [vmem:[%s8 + $0x2c] sm:$0xf]
        %v632 = vld [vmem:[%s8 + $0x30] sm:$0xf]
        %v633 = vld [vmem:[%s8 + $0x34] sm:$0xf]
        %v634 = vld [vmem:[%s8 + $0x38] sm:$0xf]
        %v635 = vld [vmem:[%s8 + $0x3c] sm:$0xf]
        %v652 = vunpack.c.l.b16 %v620
        %v653 = vunpack.c.l.b16 %v621
        %v654 = vunpack.c.l.b16 %v622
        %v655 = vunpack.c.l.b16 %v623
        %v656 = vunpack.c.l.b16 %v624
        %v657 = vunpack.c.l.b16 %v625
        %v658 = vunpack.c.l.b16 %v626
        %v659 = vunpack.c.l.b16 %v627
        %v660 = vunpack.c.l.b16 %v628
        %v661 = vunpack.c.l.b16 %v629
        %v662 = vunpack.c.l.b16 %v630
        %v663 = vunpack.c.l.b16 %v631
        %v664 = vunpack.c.l.b16 %v632
        %v665 = vunpack.c.l.b16 %v633
        %v666 = vunpack.c.l.b16 %v634
        %v667 = vunpack.c.l.b16 %v635
        %v668 = vpack.c.b16 %v653, %v652
        %v669 = vpack.c.b16 %v655, %v654
        %v670 = vpack.c.b16 %v657, %v656
        %v671 = vpack.c.b16 %v659, %v658
        %v672 = vpack.c.b16 %v661, %v660
        %v673 = vpack.c.b16 %v663, %v662
        %v674 = vpack.c.b16 %v665, %v664
        %v675 = vpack.c.b16 %v667, %v666
        %684 = vmatpush.bf16.msra.mxu0 %v675
        %685 = vmatpush.bf16.msra.mxu0 %v674
        %686 = vmatpush.bf16.msra.mxu0 %v673
        %687 = vmatpush.bf16.msra.mxu0 %v672
        %688 = vmatpush.bf16.msra.mxu0 %v671
        %689 = vmatpush.bf16.msra.mxu0 %v670
        %690 = vmatpush.bf16.msra.mxu0 %v669
        %691 = vmatpush.bf16.msra.mxu0 %v668
        %692 = vmatmul.bf16.gmra.mxu0 %v619
        %v693 = vpop.f32.mrf.mxu0
        %v694 = vadd.f32 0.0, %v693
        %v695 = vpop.f32.mrf.mxu0
        %696 = vdwg.mxu0
        %v697 = vld [vmem:[%s9] sm:$0x1]
        %v699 = vperm.slane %v697, 0
        %v701 = vmul.f32 %v694, %v699
        %v702 = vld [vmem:[%s10] sm:$0x1]
        %v704 = vperm.slane %v702, 0
        %v706 = vadd.f32 %v701, %v704
        %707 = vst [vmem:[%s379] sm:$0xff] %v706
        %s708 = sand.u32 %s269, 1
        %s709 = scalar_lea.sflag [#allocation3], %s708
        %s710 = sand.u32 %s269, 1
        %s711 = smul.addr %s710, 8
        %s712 = scalar_lea.vmem [#allocation2], %s711
        // Predicated region
        $region65: #{efficientnet_b3_forward.7} parent=63 // pred_check
          %p713 = pneg %p279
        $region66: #{efficientnet_b3_forward.7} parent=63 // pred_check_branch
          %715 = sbr.rel (%p713) target = $region68
        $region67: #{efficientnet_b3_forward.7} parent=63 // pred_region
          %717 = vsyncadd %s709, 0
          %s718 = smul.addr %s25, 8
          %s719 = scalar_lea.hbm %s11, %s718
          %s721 = sshll.u32 %s712, 4
          %s722 = int_to_ptr.vmem [resolvable:$true] %s721
          %s723 = sshll.u32 %s719, 4
          %s724 = int_to_ptr.hbm [resolvable:$true] %s723
          %726 = dma.vmem_to_hbm [thread:$0]  %s722, 128, %s724, %s709
        $region68: #{efficientnet_b3_forward.7} parent=63 // pred_fallthru
          _
      $region64: #{efficientnet_b3_forward.7} parent=5 // pred_fallthru
        _
      %p727 = scmp.le.s32.totalorder 2, %s20
      // Predicated region
      $region69: #{efficientnet_b3_forward.7} parent=5 // pred_check
        %p728 = pneg %p727
      $region70: #{efficientnet_b3_forward.7} parent=5 // pred_check_branch
        %730 = sbr.rel (%p728) target = $region72
      $region71: #{efficientnet_b3_forward.7} parent=5 // pred_region
        %s731 = ssub.s32 %s20, 2
        // Predicated region
        $region73: #{efficientnet_b3_forward.7} parent=71 // pred_check
          %p732 = pneg %p285
        $region74: #{efficientnet_b3_forward.7} parent=71 // pred_check_branch
          %734 = sbr.rel (%p732) target = $region76
        $region75: #{efficientnet_b3_forward.7} parent=71 // pred_region
          %s735 = sand.u32 %s270, 1
          %s736 = scalar_lea.sflag [#allocation3], %s735
          %s737 = sand.u32 %s270, 1
          %s738 = smul.addr %s737, 8
          %s739 = scalar_lea.vmem [#allocation2], %s738
          %741 = dma.done %s736, 128
        $region76: #{efficientnet_b3_forward.7} parent=71 // pred_fallthru
          _
      $region72: #{efficientnet_b3_forward.7} parent=5 // pred_fallthru
        _
    $region6: #{efficientnet_b3_forward.7} parent=1 // loop_footer
      %s24 = sadd.s32 1, %s20
    $region7: #{efficientnet_b3_forward.7} parent=1 // loop_footer_branch
      %19 = sbr.rel target = $region3
    $region8: #{efficientnet_b3_forward.7} parent=1 // loop_exit
      _
    %742 = vsyncpa [#allocation3], 1
    %s743 = scalar_lea.sflag [#allocation3], 1
    %744 = vsyncpa %s743, 1

</llo_original>
